<compile_context>
chip_gen: v7x
topology: tpu7x:2x2x1
jax: 0.10.0
libtpu: 0.0.40
codegen_flags: <defaults>
</compile_context>

<pallas_src>
import functools

import jax
import jax.numpy as jnp
from jax import lax
from jax.experimental import pallas as pl
from jax.experimental.pallas import tpu as pltpu

BN_EPS = 1e-5
LANE = 128


def _round_up(x, m):
    return ((x + m - 1) // m) * m


def _pick_row_tile(m):
    """Row tile for the batch-folded im2col matmuls.

    Small layers run as ONE big tile (no forced 2-step split on single-TC
    chips); large layers get >=4 grid steps so each v7x TensorCore still sees
    >=2 steps (input-DMA / compute overlap), while on v5e/v6e the tiles stay
    large and lane-dense (per-step overhead ~0.35us is negligible here).
    """
    if m <= 256:
        return m
    for want in (4, 2):
        for t in (1024, 512, 256, 128):
            if m % t == 0 and m // t >= want:
                return t
    return m


def _cparams(semantics):
    # < 2 MiB VMEM per call -> default scoped-VMEM limit is plenty; an
    # explicit 48 MiB cap (previous version) was pure risk on v7x (64 MiB).
    return pltpu.CompilerParams(dimension_semantics=semantics)


# ----------------------------------------------------------------------------
# Pallas kernels
# ----------------------------------------------------------------------------
def _mm_kernel(x_ref, w_ref, o_ref, *, leaky):
    """Plain im2col conv tile: one bf16 matmul (+ optional fused LeakyReLU)."""
    acc = jnp.dot(x_ref[...], w_ref[...], preferred_element_type=jnp.float32)
    if leaky:
        acc = jnp.where(acc > 0, acc, 0.2 * acc)
    o_ref[...] = acc.astype(o_ref.dtype)


def _mm_stats_kernel(x_ref, w_ref, o_ref, sum_ref, sq_ref):
    """im2col conv tile + fused per-channel BN sum / sum-of-squares epilogue.

    Stats are taken from the f32 accumulator; the stored activation is bf16.
    Stats blocks are revisited across grid steps (accumulator pattern).
    """
    acc = jnp.dot(x_ref[...], w_ref[...], preferred_element_type=jnp.float32)
    o_ref[...] = acc.astype(o_ref.dtype)

    @pl.when(pl.program_id(0) == 0)
    def _():
        sum_ref[...] = jnp.zeros_like(sum_ref)
        sq_ref[...] = jnp.zeros_like(sq_ref)

    sum_ref[...] += jnp.sum(acc, axis=0, keepdims=True)
    sq_ref[...] += jnp.sum(acc * acc, axis=0, keepdims=True)


def _paired_conv_stats_kernel(x_ref, w_ref, o_ref, sum_ref, sq_ref, *, tm, wo):
    """4x4/stride-2 conv (space-to-depth W-paired layout) + BN stats.

    x_ref : ((ho+1)*wo, 8*Cin) bf16 -- whole batch element, resident across j.
    w_ref : (2, 8*Cin, Cout)   bf16 -- one slab per output-row phase.
    Grid   : (batch, row_split); step j computes output rows [j*tm, (j+1)*tm).
    """
    j = pl.program_id(1)
    r0 = pl.multiple_of(j * tm, 8)
    r1 = pl.multiple_of(j * tm + wo, 8)
    acc = jnp.dot(x_ref[pl.ds(r0, tm), :], w_ref[0],
                  preferred_element_type=jnp.float32)
    acc = acc + jnp.dot(x_ref[pl.ds(r1, tm), :], w_ref[1],
                        preferred_element_type=jnp.float32)
    o_ref[...] = acc.astype(o_ref.dtype)

    @pl.when(j == 0)
    def _():
        sum_ref[...] = jnp.zeros_like(sum_ref)
        sq_ref[...] = jnp.zeros_like(sq_ref)

    sum_ref[...] += jnp.sum(acc, axis=0, keepdims=True)
    sq_ref[...] += jnp.sum(acc * acc, axis=0, keepdims=True)


def _head_kernel(x_ref, scale_ref, bias_ref, w5_ref, o_ref):
    """BN affine + LeakyReLU + final 4x4 conv (C->1) + sigmoid, all batch elems.

    x: (N, 16, C) raw layer-4 conv rows; w5: (16, C); o: (N, 1, 1) -- tiny
    direct store (no (8,128) broadcast block, no post-kernel slice).
    """
    y = x_ref[...].astype(jnp.float32) * scale_ref[...] + bias_ref[...]
    y = jnp.where(y > 0, y, 0.2 * y)
    z = jnp.sum(y * w5_ref[...], axis=2, keepdims=True)   # (N, 16, 1)
    z = jnp.sum(z, axis=1, keepdims=True)                  # (N, 1, 1)
    o_ref[...] = jax.nn.sigmoid(z)


# ----------------------------------------------------------------------------
# Pallas wrappers
# ----------------------------------------------------------------------------
def matmul_conv(x2d, w2d, *, leaky=False, with_stats=False):
    """Batch-folded im2col conv: x2d (M, K) bf16 @ w2d (K, Cout_pad) bf16."""
    m, k = x2d.shape
    cout = w2d.shape[1]
    tm = _pick_row_tile(m)
    steps = m // tm
    x_spec = pl.BlockSpec((tm, k), lambda i: (i, 0))
    w_spec = pl.BlockSpec((k, cout), lambda i: (0, 0))
    rows_spec = pl.BlockSpec((tm, cout), lambda i: (i, 0))
    if with_stats:
        return pl.pallas_call(
            _mm_stats_kernel,
            out_shape=(jax.ShapeDtypeStruct((m, cout), jnp.bfloat16),
                       jax.ShapeDtypeStruct((1, cout), jnp.float32),
                       jax.ShapeDtypeStruct((1, cout), jnp.float32)),
            grid=(steps,),
            in_specs=[x_spec, w_spec],
            out_specs=(rows_spec,
                       pl.BlockSpec((1, cout), lambda i: (0, 0)),
                       pl.BlockSpec((1, cout), lambda i: (0, 0))),
            compiler_params=_cparams(("arbitrary",)),
        )(x2d, w2d)
    return pl.pallas_call(
        functools.partial(_mm_kernel, leaky=leaky),
        out_shape=jax.ShapeDtypeStruct((m, cout), jnp.bfloat16),
        grid=(steps,),
        in_specs=[x_spec, w_spec],
        out_specs=rows_spec,
        compiler_params=_cparams(("parallel",)),
    )(x2d, w2d)


def paired_conv_stats(xw, w_packed, ho, wo):
    """Layer-2 conv: xw (N, (ho+1)*wo, 8*Cin) bf16, w (2, 8*Cin, Cout) bf16."""
    n, rows_in, k = xw.shape
    cout = w_packed.shape[-1]
    m = ho * wo
    splits = 2 if (m % 16 == 0 and m >= 256) else 1   # >=2 steps/elem for v7x
    tm = m // splits
    return pl.pallas_call(
        functools.partial(_paired_conv_stats_kernel, tm=tm, wo=wo),
        out_shape=(jax.ShapeDtypeStruct((n, m, cout), jnp.bfloat16),
                   jax.ShapeDtypeStruct((n, 1, cout), jnp.float32),
                   jax.ShapeDtypeStruct((n, 1, cout), jnp.float32)),
        grid=(n, splits),
        in_specs=[pl.BlockSpec((None, rows_in, k), lambda i, j: (i, 0, 0)),
                  pl.BlockSpec((2, k, cout), lambda i, j: (0, 0, 0))],
        out_specs=(pl.BlockSpec((None, tm, cout), lambda i, j: (i, j, 0)),
                   pl.BlockSpec((None, 1, cout), lambda i, j: (i, 0, 0)),
                   pl.BlockSpec((None, 1, cout), lambda i, j: (i, 0, 0))),
        compiler_params=_cparams(("parallel", "arbitrary")),
    )(xw, w_packed)


def final_head(rows4, scale, bias, w5mat):
    n, r, c = rows4.shape
    out = pl.pallas_call(
        _head_kernel,
        out_shape=jax.ShapeDtypeStruct((n, 1, 1), jnp.float32),
        grid=(1,),
        in_specs=[pl.BlockSpec((n, r, c), lambda i: (0, 0, 0)),
                  pl.BlockSpec((1, c), lambda i: (0, 0)),
                  pl.BlockSpec((1, c), lambda i: (0, 0)),
                  pl.BlockSpec((r, c), lambda i: (0, 0))],
        out_specs=pl.BlockSpec((n, 1, 1), lambda i: (0, 0, 0)),
        compiler_params=_cparams(("arbitrary",)),
    )(rows4, scale, bias, w5mat)
    return out.reshape(n, 1, 1, 1)


# ----------------------------------------------------------------------------
# XLA glue: relayouts, weight packing, BN scale/bias (fused by XLA)
# ----------------------------------------------------------------------------
def _pad_hw(x):
    return jnp.pad(x, ((0, 0), (1, 1), (1, 1), (0, 0)))


def im2col_4x4_s2(x_nhwc):
    """Full-window im2col for a 4x4/stride-2/pad-1 conv.

    (N, H, W, C) -> (N*H/2*W/2, 16*C) bf16, K index = (kh*4 + kw)*C + ci.
    """
    n, h, w, c = x_nhwc.shape
    xp = _pad_hw(x_nhwc)
    cols = []
    for kh in range(4):
        for kw in range(4):
            cols.append(xp[:, kh:kh + h - 1:2, kw:kw + w - 1:2, :])
    patches = jnp.concatenate(cols, axis=-1)              # (n, h/2, w/2, 16c)
    return patches.reshape(n * (h // 2) * (w // 2), 16 * c).astype(jnp.bfloat16)


def paired_relayout(x_nhwc):
    """Zero-pad(1) + space-to-depth(2) + pair adjacent W blocks.

    (N, H, W, C) -> (N, (H/2+1)*(W/2), 8*C) bf16.  Only ~2x the raw bytes
    (vs 4x for full im2col) -- used for the large-spatial layer-2 input.
    """
    n, h, w, c = x_nhwc.shape
    xp = _pad_hw(x_nhwc)
    hp, wp = h + 2, w + 2
    xs = xp.reshape(n, hp // 2, 2, wp // 2, 2, c)
    xs = jnp.transpose(xs, (0, 1, 3, 2, 4, 5)).reshape(n, hp // 2, wp // 2, 4 * c)
    wo = w // 2
    xw = jnp.concatenate([xs[:, :, :wo, :], xs[:, :, 1:, :]], axis=-1)
    return xw.reshape(n, (h // 2 + 1) * wo, 8 * c).astype(jnp.bfloat16)


def pack_w_im2col(w, cin_pad, cout_pad):
    """OIHW (Cout, Cin, 4, 4) -> (16*cin_pad, cout_pad) bf16 (im2col order)."""
    cout, cin, kh, kw = w.shape
    w = jnp.pad(w, ((0, cout_pad - cout), (0, cin_pad - cin), (0, 0), (0, 0)))
    wm = jnp.transpose(w, (2, 3, 1, 0)).reshape(kh * kw * cin_pad, cout_pad)
    return wm.astype(jnp.bfloat16)


def pack_w_paired(w, cin_pad, cout_pad):
    """OIHW -> (2, 8*cin_pad, cout_pad) bf16 matching paired_relayout lanes."""
    cout, cin, _, _ = w.shape
    w = jnp.pad(w, ((0, cout_pad - cout), (0, cin_pad - cin), (0, 0), (0, 0)))
    w = w.reshape(cout_pad, cin_pad, 2, 2, 2, 2)        # (co, ci, py, dy, px, dx)
    w = jnp.transpose(w, (2, 4, 3, 5, 1, 0))             # (py, px, dy, dx, ci, co)
    return w.reshape(2, 8 * cin_pad, cout_pad).astype(jnp.bfloat16)


def pack_w_final(w5, cin_pad):
    """(1, Cin, 4, 4) -> (16, cin_pad) f32, row order h*4 + w, channel-last."""
    _, cin, kh, kw = w5.shape
    wm = jnp.transpose(w5[0], (1, 2, 0)).reshape(kh * kw, cin)
    return jnp.pad(wm, ((0, 0), (0, cin_pad - cin))).astype(jnp.float32)


def bn_scale_bias(ssum, ssq, gamma, beta, count):
    """Training-mode BatchNorm batch stats folded into per-channel scale/bias."""
    c = gamma.shape[0]
    s = ssum.reshape(-1, ssum.shape[-1]).sum(axis=0)[:c]
    q = ssq.reshape(-1, ssq.shape[-1]).sum(axis=0)[:c]
    mean = s / count
    var = jnp.maximum(q / count - mean * mean, 0.0)       # biased var, clamped
    inv = gamma / jnp.sqrt(var + BN_EPS)
    return inv.astype(jnp.float32), (beta - mean * inv).astype(jnp.float32)


def bn_leaky_nhwc(rows, c_take, scale, bias, n, h, w):
    """BN affine + LeakyReLU on the first c_take channels, back to NHWC.

    Runs as plain XLA so it fuses with the following im2col relayout: the
    activation is read once and written once (replaces the previous standalone
    affine_leaky pallas_call and avoids the zero-pad masking hazard).
    """
    c = scale.shape[0]
    sc = jnp.pad(scale, (0, c_take - c))
    bi = jnp.pad(bias, (0, c_take - c))
    y = rows[:, :c_take].astype(jnp.float32) * sc + bi
    y = jnp.where(y > 0, y, 0.2 * y)
    return y.reshape(n, h, w, c_take)


# ----------------------------------------------------------------------------
# Discriminator forward
# ----------------------------------------------------------------------------
def discriminator_forward(x_nchw, p):
    n, nc, h, w = x_nchw.shape
    x = jnp.transpose(x_nchw, (0, 2, 3, 1)).astype(jnp.float32)  # NCHW -> NHWC

    c1, c2, c3, c4 = (p[k].shape[0] for k in ("w1", "w2", "w3", "w4"))
    c1p, c2p, c3p, c4p = (_round_up(c, LANE) for c in (c1, c2, c3, c4))
    # Channels carried into the NEXT layer's contraction dim: real count rounded
    # to 16 only (K = 8*c / 16*c lands on a clean lane multiple), never to 128.
    c1k, c2k, c3k = (_round_up(c, 16) for c in (c1, c2, c3))

    w1p = pack_w_im2col(p["w1"], nc, c1p)     # K = 16*nc (=48), single matmul
    w2p = pack_w_paired(p["w2"], c1k, c2p)    # K = 8*c1k
    w3p = pack_w_im2col(p["w3"], c2k, c3p)    # K = 16*c2k
    w4p = pack_w_im2col(p["w4"], c3k, c4p)    # K = 16*c3k
    w5p = pack_w_final(p["w5"], c4p)          # (16, c4p)

    ho1, wo1 = h // 2, w // 2
    ho2, wo2 = ho1 // 2, wo1 // 2
    ho3, wo3 = ho2 // 2, wo2 // 2
    ho4, wo4 = ho3 // 2, wo3 // 2
    assert ho4 == 4 and wo4 == 4, "final 4x4 conv requires 64x64 input"

    # layer 1: conv + LeakyReLU (batch-folded im2col, one matmul, fused act)
    rows1 = matmul_conv(im2col_4x4_s2(x), w1p, leaky=True)       # (n*ho1*wo1, c1p)

    # layer 2: conv + fused BN statistics (paired two-matmul form, K = 8*c1k)
    a1 = rows1[:, :c1k].reshape(n, ho1, wo1, c1k)
    rows2, s2, q2 = paired_conv_stats(paired_relayout(a1), w2p, ho2, wo2)
    sc2, bi2 = bn_scale_bias(s2, q2, p["g2"], p["b2"], n * ho2 * wo2)

    # layer 3: BN affine + LeakyReLU fused into the XLA im2col, then conv+stats
    a2 = bn_leaky_nhwc(rows2.reshape(n * ho2 * wo2, c2p), c2k, sc2, bi2, n, ho2, wo2)
    rows3, s3, q3 = matmul_conv(im2col_4x4_s2(a2), w3p, with_stats=True)
    sc3, bi3 = bn_scale_bias(s3, q3, p["g3"], p["b3"], n * ho3 * wo3)

    # layer 4
    a3 = bn_leaky_nhwc(rows3, c3k, sc3, bi3, n, ho3, wo3)
    rows4, s4, q4 = matmul_conv(im2col_4x4_s2(a3), w4p, with_stats=True)
    sc4, bi4 = bn_scale_bias(s4, q4, p["g4"], p["b4"], n * ho4 * wo4)

    # final head: BN affine + LeakyReLU + 4x4 conv (C4 -> 1) + sigmoid, one kernel
    sc4p = jnp.pad(sc4, (0, c4p - c4)).reshape(1, c4p)
    bi4p = jnp.pad(bi4, (0, c4p - c4)).reshape(1, c4p)
    return final_head(rows4.reshape(n, ho4 * wo4, c4p), sc4p, bi4p, w5p)  # (N,1,1,1)


# ----------------------------------------------------------------------------
# Pure-JAX f32 reference (for correctness check)
# ----------------------------------------------------------------------------
def ref_forward(x, p):
    def conv(h, w, stride, pad):
        return lax.conv_general_dilated(
            h, w, (stride, stride), [(pad, pad), (pad, pad)],
            dimension_numbers=("NCHW", "OIHW", "NCHW"),
            precision=lax.Precision.HIGHEST)

    def bn(h, gamma, beta):
        mean = jnp.mean(h, axis=(0, 2, 3), keepdims=True)
        var = jnp.var(h, axis=(0, 2, 3), keepdims=True)
        return (h - mean) / jnp.sqrt(var + BN_EPS) * gamma.reshape(1, -1, 1, 1) \
            + beta.reshape(1, -1, 1, 1)

    def lrelu(h):
        return jnp.where(h > 0, h, 0.2 * h)

    h = lrelu(conv(x, p["w1"], 2, 1))
    h = lrelu(bn(conv(h, p["w2"], 2, 1), p["g2"], p["b2"]))
    h = lrelu(bn(conv(h, p["w3"], 2, 1), p["g3"], p["b3"]))
    h = lrelu(bn(conv(h, p["w4"], 2, 1), p["g4"], p["b4"]))
    return jax.nn.sigmoid(conv(h, p["w5"], 1, 0))


# ----------------------------------------------------------------------------
# Main
# ----------------------------------------------------------------------------
if __name__ == "__main__":
    NDF, NC, BATCH, RES = 8, 3, 2, 64   # RES=64 is required by the topology

    key = jax.random.PRNGKey(0)
    ks = jax.random.split(key, 6)
    params = {
        "w1": jax.random.normal(ks[0], (NDF, NC, 4, 4), jnp.float32) * 0.02,
        "w2": jax.random.normal(ks[1], (NDF * 2, NDF, 4, 4), jnp.float32) * 0.02,
        "w3": jax.random.normal(ks[2], (NDF * 4, NDF * 2, 4, 4), jnp.float32) * 0.02,
        "w4": jax.random.normal(ks[3], (NDF * 8, NDF * 4, 4, 4), jnp.float32) * 0.02,
        "w5": jax.random.normal(ks[4], (1, NDF * 8, 4, 4), jnp.float32) * 0.02,
        "g2": jnp.ones((NDF * 2,), jnp.float32), "b2": jnp.zeros((NDF * 2,), jnp.float32),
        "g3": jnp.ones((NDF * 4,), jnp.float32), "b3": jnp.zeros((NDF * 4,), jnp.float32),
        "g4": jnp.ones((NDF * 8,), jnp.float32), "b4": jnp.zeros((NDF * 8,), jnp.float32),
    }
    x = jax.random.normal(ks[5], (BATCH, NC, RES, RES), jnp.float32)

    out = jax.block_until_ready(jax.jit(discriminator_forward)(x, params))
    ref = jax.block_until_ready(jax.jit(ref_forward)(x, params))

    assert out.shape == (BATCH, 1, 1, 1), out.shape
    assert bool(jnp.all(jnp.isfinite(out)))
    # Tolerance relaxed vs pure-f32: MXU operands and stored intermediate
    # activations are bf16 (BN statistics themselves are exact-f32-accumulated).
    assert jnp.allclose(out, ref, rtol=5e-2, atol=5e-3), (out, ref)
    print("KERNEL_OK")
</pallas_src>

<mosaic_0001>
module attributes {stable_mosaic.version = 11 : i64} {
  func.func @_mm_kernel(%arg0: i32, %arg1: memref<512x48xbf16, #tpu.memory_space<vmem>>, %arg2: memref<48x128xbf16, #tpu.memory_space<vmem>>, %arg3: memref<512x128xbf16, #tpu.memory_space<vmem>>) attributes {dimension_semantics = [#tpu.dimension_semantics<parallel>], iteration_bounds = array<i64: 4>, scalar_prefetch = 0 : i64, scratch_operands = 0 : i64, tpu.core_type = #tpu.core_type<tc>, window_params = [{transform_indices = @transform_0, window_bounds = array<i64: 512, 48>}, {pipeline_mode = #tpu.pipeline_mode<synchronous>, transform_indices = @transform_1, window_bounds = array<i64: 48, 128>}, {transform_indices = @transform_2, window_bounds = array<i64: 512, 128>}]} {
    %c0 = arith.constant 0 : index
    %c0_0 = arith.constant 0 : index
    %0 = vector.load %arg1[%c0, %c0_0] : memref<512x48xbf16, #tpu.memory_space<vmem>>, vector<512x48xbf16>
    %c0_1 = arith.constant 0 : index
    %c0_2 = arith.constant 0 : index
    %1 = vector.load %arg2[%c0_1, %c0_2] : memref<48x128xbf16, #tpu.memory_space<vmem>>, vector<48x128xbf16>
    %cst = arith.constant dense<0.000000e+00> : vector<512x128xf32>
    %2 = tpu.matmul %0, %1, %cst {dimension_numbers = #tpu.dot_dimension_numbers<[1], [0], [0], [1], [0, 0, 1, 1], [], []>} : vector<512x48xbf16>, vector<48x128xbf16>, vector<512x128xf32> -> vector<512x128xf32>
    %cst_3 = arith.constant 0.000000e+00 : f32
    %3 = vector.broadcast %cst_3 : f32 to vector<512x128xf32>
    %4 = arith.cmpf ogt, %2, %3 : vector<512x128xf32>
    %cst_4 = arith.constant 2.000000e-01 : f32
    %5 = vector.broadcast %cst_4 : f32 to vector<512x128xf32>
    %6 = arith.mulf %5, %2 : vector<512x128xf32>
    %7 = arith.select %4, %2, %6 : vector<512x128xi1>, vector<512x128xf32>
    %8 = arith.truncf %7 : vector<512x128xf32> to vector<512x128xbf16>
    %c0_5 = arith.constant 0 : index
    %c0_6 = arith.constant 0 : index
    %9 = vector.load %arg3[%c0_5, %c0_6] : memref<512x128xbf16, #tpu.memory_space<vmem>>, vector<512x128xbf16>
    tpu.vector_store %arg3[%c0_5, %c0_6], %8 {strides = array<i32>} : memref<512x128xbf16, #tpu.memory_space<vmem>>, vector<512x128xbf16>,
    return
  }
  func.func @transform_0(%arg0: i32) -> (i32, i32) {
    %c0_i32 = arith.constant 0 : i32
    %c0_i32_0 = arith.constant 0 : i32
    return %arg0, %c0_i32 : i32, i32
  }
  func.func @transform_1(%arg0: i32) -> (i32, i32) {
    %c0_i32 = arith.constant 0 : i32
    %c0_i32_0 = arith.constant 0 : i32
    %c0_i32_1 = arith.constant 0 : i32
    return %c0_i32, %c0_i32_0 : i32, i32
  }
  func.func @transform_2(%arg0: i32) -> (i32, i32) {
    %c0_i32 = arith.constant 0 : i32
    %c0_i32_0 = arith.constant 0 : i32
    return %arg0, %c0_i32 : i32, i32
  }
}

module attributes {stable_mosaic.version = 11 : i64} {
  func.func @_paired_conv_stats_kernel(%arg0: i32, %arg1: i32, %arg2: memref<1x272x128xbf16, #tpu.memory_space<vmem>>, %arg3: memref<2x128x128xbf16, #tpu.memory_space<vmem>>, %arg4: memref<1x128x128xbf16, #tpu.memory_space<vmem>>, %arg5: memref<1x1x128xf32, #tpu.memory_space<vmem>>, %arg6: memref<1x1x128xf32, #tpu.memory_space<vmem>>) attributes {dimension_semantics = [#tpu.dimension_semantics<parallel>, #tpu.dimension_semantics<arbitrary>], iteration_bounds = array<i64: 2, 2>, scalar_prefetch = 0 : i64, scratch_operands = 0 : i64, tpu.core_type = #tpu.core_type<tc>, window_params = [{transform_indices = @transform_0, window_bounds = array<i64: 1, 272, 128>}, {pipeline_mode = #tpu.pipeline_mode<synchronous>, transform_indices = @transform_1, window_bounds = array<i64: 2, 128, 128>}, {transform_indices = @transform_2, window_bounds = array<i64: 1, 128, 128>}, {transform_indices = @transform_3, window_bounds = array<i64: 1, 1, 128>}, {transform_indices = @transform_4, window_bounds = array<i64: 1, 1, 128>}]} {
    %c128_i32 = arith.constant 128 : i32
    %0 = arith.muli %arg1, %c128_i32 : i32
    %1 = tpu.assume_multiple %0, 8 : i32
    %c128_i32_0 = arith.constant 128 : i32
    %2 = arith.muli %arg1, %c128_i32_0 : i32
    %c16_i32 = arith.constant 16 : i32
    %3 = arith.addi %2, %c16_i32 : i32
    %4 = tpu.assume_multiple %3, 8 : i32
    %c0 = arith.constant 0 : index
    %5 = arith.index_cast %1 : i32 to index
    %c0_1 = arith.constant 0 : index
    %6 = vector.load %arg2[%c0, %5, %c0_1] : memref<1x272x128xbf16, #tpu.memory_space<vmem>>, vector<1x128x128xbf16>
    %7 = vector.shape_cast %6 : vector<1x128x128xbf16> to vector<128x128xbf16>
    %c0_2 = arith.constant 0 : index
    %c0_3 = arith.constant 0 : index
    %c0_4 = arith.constant 0 : index
    %8 = vector.load %arg3[%c0_2, %c0_3, %c0_4] : memref<2x128x128xbf16, #tpu.memory_space<vmem>>, vector<1x128x128xbf16>
    %9 = vector.shape_cast %8 : vector<1x128x128xbf16> to vector<128x128xbf16>
    %cst = arith.constant dense<0.000000e+00> : vector<128x128xf32>
    %10 = tpu.matmul %7, %9, %cst {dimension_numbers = #tpu.dot_dimension_numbers<[1], [0], [0], [1], [0, 0, 1, 1], [], []>} : vector<128x128xbf16>, vector<128x128xbf16>, vector<128x128xf32> -> vector<128x128xf32>
    %c0_5 = arith.constant 0 : index
    %11 = arith.index_cast %4 : i32 to index
    %c0_6 = arith.constant 0 : index
    %12 = vector.load %arg2[%c0_5, %11, %c0_6] : memref<1x272x128xbf16, #tpu.memory_space<vmem>>, vector<1x128x128xbf16>
    %13 = vector.shape_cast %12 : vector<1x128x128xbf16> to vector<128x128xbf16>
    %c1 = arith.constant 1 : index
    %c0_7 = arith.constant 0 : index
    %c0_8 = arith.constant 0 : index
    %14 = vector.load %arg3[%c1, %c0_7, %c0_8] : memref<2x128x128xbf16, #tpu.memory_space<vmem>>, vector<1x128x128xbf16>
    %15 = vector.shape_cast %14 : vector<1x128x128xbf16> to vector<128x128xbf16>
    %cst_9 = arith.constant dense<0.000000e+00> : vector<128x128xf32>
    %16 = tpu.matmul %13, %15, %cst_9 {dimension_numbers = #tpu.dot_dimension_numbers<[1], [0], [0], [1], [0, 0, 1, 1], [], []>} : vector<128x128xbf16>, vector<128x128xbf16>, vector<128x128xf32> -> vector<128x128xf32>
    %17 = arith.addf %10, %16 : vector<128x128xf32>
    %18 = arith.truncf %17 : vector<128x128xf32> to vector<128x128xbf16>
    %c0_10 = arith.constant 0 : index
    %c0_11 = arith.constant 0 : index
    %c0_12 = arith.constant 0 : index
    %19 = vector.load %arg4[%c0_10, %c0_11, %c0_12] : memref<1x128x128xbf16, #tpu.memory_space<vmem>>, vector<1x128x128xbf16>
    %20 = vector.shape_cast %19 : vector<1x128x128xbf16> to vector<128x128xbf16>
    %21 = vector.shape_cast %18 : vector<128x128xbf16> to vector<1x128x128xbf16>
    tpu.vector_store %arg4[%c0_10, %c0_11, %c0_12], %21 {strides = array<i32>} : memref<1x128x128xbf16, #tpu.memory_space<vmem>>, vector<1x128x128xbf16>,
    %c0_i32 = arith.constant 0 : i32
    %22 = arith.cmpi eq, %arg1, %c0_i32 : i32
    %23 = arith.extui %22 : i1 to i32
    %c0_i32_13 = arith.constant 0 : i32
    %24 = arith.cmpi ne, %23, %c0_i32_13 : i32
    scf.if %24 {
      %cst_28 = arith.constant 0.000000e+00 : f32
      %42 = vector.broadcast %cst_28 : f32 to vector<1x128xf32>
      %c0_29 = arith.constant 0 : index
      %c0_30 = arith.constant 0 : index
      %c0_31 = arith.constant 0 : index
      %43 = vector.load %arg5[%c0_29, %c0_30, %c0_31] : memref<1x1x128xf32, #tpu.memory_space<vmem>>, vector<1x1x128xf32>
      %44 = vector.shape_cast %43 : vector<1x1x128xf32> to vector<1x128xf32>
      %45 = vector.shape_cast %42 : vector<1x128xf32> to vector<1x1x128xf32>
      tpu.vector_store %arg5[%c0_29, %c0_30, %c0_31], %45 {strides = array<i32>} : memref<1x1x128xf32, #tpu.memory_space<vmem>>, vector<1x1x128xf32>,
      %cst_32 = arith.constant 0.000000e+00 : f32
      %46 = vector.broadcast %cst_32 : f32 to vector<1x128xf32>
      %c0_33 = arith.constant 0 : index
      %c0_34 = arith.constant 0 : index
      %c0_35 = arith.constant 0 : index
      %47 = vector.load %arg6[%c0_33, %c0_34, %c0_35] : memref<1x1x128xf32, #tpu.memory_space<vmem>>, vector<1x1x128xf32>
      %48 = vector.shape_cast %47 : vector<1x1x128xf32> to vector<1x128xf32>
      %49 = vector.shape_cast %46 : vector<1x128xf32> to vector<1x1x128xf32>
      tpu.vector_store %arg6[%c0_33, %c0_34, %c0_35], %49 {strides = array<i32>} : memref<1x1x128xf32, #tpu.memory_space<vmem>>, vector<1x1x128xf32>,
    } else {
    }
    %c0_14 = arith.constant 0 : index
    %c0_15 = arith.constant 0 : index
    %c0_16 = arith.constant 0 : index
    %25 = vector.load %arg5[%c0_14, %c0_15, %c0_16] : memref<1x1x128xf32, #tpu.memory_space<vmem>>, vector<1x1x128xf32>
    %26 = vector.shape_cast %25 : vector<1x1x128xf32> to vector<1x128xf32>
    %cst_17 = arith.constant dense<0.000000e+00> : vector<128xf32>
    %27 = vector.multi_reduction <add>, %17, %cst_17 [0] : vector<128x128xf32> to vector<128xf32>
    %28 = vector.shape_cast %27 : vector<128xf32> to vector<1x128xf32>
    %29 = arith.addf %26, %28 : vector<1x128xf32>
    %c0_18 = arith.constant 0 : index
    %c0_19 = arith.constant 0 : index
    %c0_20 = arith.constant 0 : index
    %30 = vector.load %arg5[%c0_18, %c0_19, %c0_20] : memref<1x1x128xf32, #tpu.memory_space<vmem>>, vector<1x1x128xf32>
    %31 = vector.shape_cast %30 : vector<1x1x128xf32> to vector<1x128xf32>
    %32 = vector.shape_cast %29 : vector<1x128xf32> to vector<1x1x128xf32>
    tpu.vector_store %arg5[%c0_18, %c0_19, %c0_20], %32 {strides = array<i32>} : memref<1x1x128xf32, #tpu.memory_space<vmem>>, vector<1x1x128xf32>,
    %c0_21 = arith.constant 0 : index
    %c0_22 = arith.constant 0 : index
    %c0_23 = arith.constant 0 : index
    %33 = vector.load %arg6[%c0_21, %c0_22, %c0_23] : memref<1x1x128xf32, #tpu.memory_space<vmem>>, vector<1x1x128xf32>
    %34 = vector.shape_cast %33 : vector<1x1x128xf32> to vector<1x128xf32>
    %35 = arith.mulf %17, %17 : vector<128x128xf32>
    %cst_24 = arith.constant dense<0.000000e+00> : vector<128xf32>
    %36 = vector.multi_reduction <add>, %35, %cst_24 [0] : vector<128x128xf32> to vector<128xf32>
    %37 = vector.shape_cast %36 : vector<128xf32> to vector<1x128xf32>
    %38 = arith.addf %34, %37 : vector<1x128xf32>
    %c0_25 = arith.constant 0 : index
    %c0_26 = arith.constant 0 : index
    %c0_27 = arith.constant 0 : index
    %39 = vector.load %arg6[%c0_25, %c0_26, %c0_27] : memref<1x1x128xf32, #tpu.memory_space<vmem>>, vector<1x1x128xf32>
    %40 = vector.shape_cast %39 : vector<1x1x128xf32> to vector<1x128xf32>
    %41 = vector.shape_cast %38 : vector<1x128xf32> to vector<1x1x128xf32>
    tpu.vector_store %arg6[%c0_25, %c0_26, %c0_27], %41 {strides = array<i32>} : memref<1x1x128xf32, #tpu.memory_space<vmem>>, vector<1x1x128xf32>,
    return
  }
  func.func @transform_0(%arg0: i32, %arg1: i32) -> (i32, i32, i32) {
    %c0_i32 = arith.constant 0 : i32
    %c0_i32_0 = arith.constant 0 : i32
    %c0_i32_1 = arith.constant 0 : i32
    return %arg0, %c0_i32, %c0_i32_0 : i32, i32, i32
  }
  func.func @transform_1(%arg0: i32, %arg1: i32) -> (i32, i32, i32) {
    %c0_i32 = arith.constant 0 : i32
    %c0_i32_0 = arith.constant 0 : i32
    %c0_i32_1 = arith.constant 0 : i32
    %c0_i32_2 = arith.constant 0 : i32
    return %c0_i32, %c0_i32_0, %c0_i32_1 : i32, i32, i32
  }
  func.func @transform_2(%arg0: i32, %arg1: i32) -> (i32, i32, i32) {
    %c0_i32 = arith.constant 0 : i32
    %c0_i32_0 = arith.constant 0 : i32
    return %arg0, %arg1, %c0_i32 : i32, i32, i32
  }
  func.func @transform_3(%arg0: i32, %arg1: i32) -> (i32, i32, i32) {
    %c0_i32 = arith.constant 0 : i32
    %c0_i32_0 = arith.constant 0 : i32
    %c0_i32_1 = arith.constant 0 : i32
    return %arg0, %c0_i32, %c0_i32_0 : i32, i32, i32
  }
  func.func @transform_4(%arg0: i32, %arg1: i32) -> (i32, i32, i32) {
    %c0_i32 = arith.constant 0 : i32
    %c0_i32_0 = arith.constant 0 : i32
    %c0_i32_1 = arith.constant 0 : i32
    return %arg0, %c0_i32, %c0_i32_0 : i32, i32, i32
  }
}

module attributes {stable_mosaic.version = 11 : i64} {
  func.func @_mm_stats_kernel(%arg0: i32, %arg1: memref<128x256xbf16, #tpu.memory_space<vmem>>, %arg2: memref<256x128xbf16, #tpu.memory_space<vmem>>, %arg3: memref<128x128xbf16, #tpu.memory_space<vmem>>, %arg4: memref<1x128xf32, #tpu.memory_space<vmem>>, %arg5: memref<1x128xf32, #tpu.memory_space<vmem>>) attributes {dimension_semantics = [#tpu.dimension_semantics<arbitrary>], iteration_bounds = array<i64: 1>, scalar_prefetch = 0 : i64, scratch_operands = 0 : i64, tpu.core_type = #tpu.core_type<tc>, window_params = [{transform_indices = @transform_0, window_bounds = array<i64: 128, 256>}, {pipeline_mode = #tpu.pipeline_mode<synchronous>, transform_indices = @transform_1, window_bounds = array<i64: 256, 128>}, {transform_indices = @transform_2, window_bounds = array<i64: 128, 128>}, {pipeline_mode = #tpu.pipeline_mode<synchronous>, transform_indices = @transform_3, window_bounds = array<i64: 1, 128>}, {pipeline_mode = #tpu.pipeline_mode<synchronous>, transform_indices = @transform_4, window_bounds = array<i64: 1, 128>}]} {
    %c0 = arith.constant 0 : index
    %c0_0 = arith.constant 0 : index
    %0 = vector.load %arg1[%c0, %c0_0] : memref<128x256xbf16, #tpu.memory_space<vmem>>, vector<128x256xbf16>
    %c0_1 = arith.constant 0 : index
    %c0_2 = arith.constant 0 : index
    %1 = vector.load %arg2[%c0_1, %c0_2] : memref<256x128xbf16, #tpu.memory_space<vmem>>, vector<256x128xbf16>
    %cst = arith.constant dense<0.000000e+00> : vector<128x128xf32>
    %2 = tpu.matmul %0, %1, %cst {dimension_numbers = #tpu.dot_dimension_numbers<[1], [0], [0], [1], [0, 0, 1, 1], [], []>} : vector<128x256xbf16>, vector<256x128xbf16>, vector<128x128xf32> -> vector<128x128xf32>
    %3 = arith.truncf %2 : vector<128x128xf32> to vector<128x128xbf16>
    %c0_3 = arith.constant 0 : index
    %c0_4 = arith.constant 0 : index
    %4 = vector.load %arg3[%c0_3, %c0_4] : memref<128x128xbf16, #tpu.memory_space<vmem>>, vector<128x128xbf16>
    tpu.vector_store %arg3[%c0_3, %c0_4], %3 {strides = array<i32>} : memref<128x128xbf16, #tpu.memory_space<vmem>>, vector<128x128xbf16>,
    %c0_i32 = arith.constant 0 : i32
    %5 = arith.cmpi eq, %arg0, %c0_i32 : i32
    %6 = arith.extui %5 : i1 to i32
    %c0_i32_5 = arith.constant 0 : i32
    %7 = arith.cmpi ne, %6, %c0_i32_5 : i32
    scf.if %7 {
      %cst_16 = arith.constant 0.000000e+00 : f32
      %19 = vector.broadcast %cst_16 : f32 to vector<1x128xf32>
      %c0_17 = arith.constant 0 : index
      %c0_18 = arith.constant 0 : index
      %20 = vector.load %arg4[%c0_17, %c0_18] : memref<1x128xf32, #tpu.memory_space<vmem>>, vector<1x128xf32>
      tpu.vector_store %arg4[%c0_17, %c0_18], %19 {strides = array<i32>} : memref<1x128xf32, #tpu.memory_space<vmem>>, vector<1x128xf32>,
      %cst_19 = arith.constant 0.000000e+00 : f32
      %21 = vector.broadcast %cst_19 : f32 to vector<1x128xf32>
      %c0_20 = arith.constant 0 : index
      %c0_21 = arith.constant 0 : index
      %22 = vector.load %arg5[%c0_20, %c0_21] : memref<1x128xf32, #tpu.memory_space<vmem>>, vector<1x128xf32>
      tpu.vector_store %arg5[%c0_20, %c0_21], %21 {strides = array<i32>} : memref<1x128xf32, #tpu.memory_space<vmem>>, vector<1x128xf32>,
    } else {
    }
    %c0_6 = arith.constant 0 : index
    %c0_7 = arith.constant 0 : index
    %8 = vector.load %arg4[%c0_6, %c0_7] : memref<1x128xf32, #tpu.memory_space<vmem>>, vector<1x128xf32>
    %cst_8 = arith.constant dense<0.000000e+00> : vector<128xf32>
    %9 = vector.multi_reduction <add>, %2, %cst_8 [0] : vector<128x128xf32> to vector<128xf32>
    %10 = vector.shape_cast %9 : vector<128xf32> to vector<1x128xf32>
    %11 = arith.addf %8, %10 : vector<1x128xf32>
    %c0_9 = arith.constant 0 : index
    %c0_10 = arith.constant 0 : index
    %12 = vector.load %arg4[%c0_9, %c0_10] : memref<1x128xf32, #tpu.memory_space<vmem>>, vector<1x128xf32>
    tpu.vector_store %arg4[%c0_9, %c0_10], %11 {strides = array<i32>} : memref<1x128xf32, #tpu.memory_space<vmem>>, vector<1x128xf32>,
    %c0_11 = arith.constant 0 : index
    %c0_12 = arith.constant 0 : index
    %13 = vector.load %arg5[%c0_11, %c0_12] : memref<1x128xf32, #tpu.memory_space<vmem>>, vector<1x128xf32>
    %14 = arith.mulf %2, %2 : vector<128x128xf32>
    %cst_13 = arith.constant dense<0.000000e+00> : vector<128xf32>
    %15 = vector.multi_reduction <add>, %14, %cst_13 [0] : vector<128x128xf32> to vector<128xf32>
    %16 = vector.shape_cast %15 : vector<128xf32> to vector<1x128xf32>
    %17 = arith.addf %13, %16 : vector<1x128xf32>
    %c0_14 = arith.constant 0 : index
    %c0_15 = arith.constant 0 : index
    %18 = vector.load %arg5[%c0_14, %c0_15] : memref<1x128xf32, #tpu.memory_space<vmem>>, vector<1x128xf32>
    tpu.vector_store %arg5[%c0_14, %c0_15], %17 {strides = array<i32>} : memref<1x128xf32, #tpu.memory_space<vmem>>, vector<1x128xf32>,
    return
  }
  func.func @transform_0(%arg0: i32) -> (i32, i32) {
    %c0_i32 = arith.constant 0 : i32
    %c0_i32_0 = arith.constant 0 : i32
    return %arg0, %c0_i32 : i32, i32
  }
  func.func @transform_1(%arg0: i32) -> (i32, i32) {
    %c0_i32 = arith.constant 0 : i32
    %c0_i32_0 = arith.constant 0 : i32
    %c0_i32_1 = arith.constant 0 : i32
    return %c0_i32, %c0_i32_0 : i32, i32
  }
  func.func @transform_2(%arg0: i32) -> (i32, i32) {
    %c0_i32 = arith.constant 0 : i32
    %c0_i32_0 = arith.constant 0 : i32
    return %arg0, %c0_i32 : i32, i32
  }
  func.func @transform_3(%arg0: i32) -> (i32, i32) {
    %c0_i32 = arith.constant 0 : i32
    %c0_i32_0 = arith.constant 0 : i32
    %c0_i32_1 = arith.constant 0 : i32
    return %c0_i32, %c0_i32_0 : i32, i32
  }
  func.func @transform_4(%arg0: i32) -> (i32, i32) {
    %c0_i32 = arith.constant 0 : i32
    %c0_i32_0 = arith.constant 0 : i32
    %c0_i32_1 = arith.constant 0 : i32
    return %c0_i32, %c0_i32_0 : i32, i32
  }
}

module attributes {stable_mosaic.version = 11 : i64} {
  func.func @_mm_stats_kernel(%arg0: i32, %arg1: memref<32x512xbf16, #tpu.memory_space<vmem>>, %arg2: memref<512x128xbf16, #tpu.memory_space<vmem>>, %arg3: memref<32x128xbf16, #tpu.memory_space<vmem>>, %arg4: memref<1x128xf32, #tpu.memory_space<vmem>>, %arg5: memref<1x128xf32, #tpu.memory_space<vmem>>) attributes {dimension_semantics = [#tpu.dimension_semantics<arbitrary>], iteration_bounds = array<i64: 1>, scalar_prefetch = 0 : i64, scratch_operands = 0 : i64, tpu.core_type = #tpu.core_type<tc>, window_params = [{transform_indices = @transform_0, window_bounds = array<i64: 32, 512>}, {pipeline_mode = #tpu.pipeline_mode<synchronous>, transform_indices = @transform_1, window_bounds = array<i64: 512, 128>}, {transform_indices = @transform_2, window_bounds = array<i64: 32, 128>}, {pipeline_mode = #tpu.pipeline_mode<synchronous>, transform_indices = @transform_3, window_bounds = array<i64: 1, 128>}, {pipeline_mode = #tpu.pipeline_mode<synchronous>, transform_indices = @transform_4, window_bounds = array<i64: 1, 128>}]} {
    %c0 = arith.constant 0 : index
    %c0_0 = arith.constant 0 : index
    %0 = vector.load %arg1[%c0, %c0_0] : memref<32x512xbf16, #tpu.memory_space<vmem>>, vector<32x512xbf16>
    %c0_1 = arith.constant 0 : index
    %c0_2 = arith.constant 0 : index
    %1 = vector.load %arg2[%c0_1, %c0_2] : memref<512x128xbf16, #tpu.memory_space<vmem>>, vector<512x128xbf16>
    %cst = arith.constant dense<0.000000e+00> : vector<32x128xf32>
    %2 = tpu.matmul %0, %1, %cst {dimension_numbers = #tpu.dot_dimension_numbers<[1], [0], [0], [1], [0, 0, 1, 1], [], []>} : vector<32x512xbf16>, vector<512x128xbf16>, vector<32x128xf32> -> vector<32x128xf32>
    %3 = arith.truncf %2 : vector<32x128xf32> to vector<32x128xbf16>
    %c0_3 = arith.constant 0 : index
    %c0_4 = arith.constant 0 : index
    %4 = vector.load %arg3[%c0_3, %c0_4] : memref<32x128xbf16, #tpu.memory_space<vmem>>, vector<32x128xbf16>
    tpu.vector_store %arg3[%c0_3, %c0_4], %3 {strides = array<i32>} : memref<32x128xbf16, #tpu.memory_space<vmem>>, vector<32x128xbf16>,
    %c0_i32 = arith.constant 0 : i32
    %5 = arith.cmpi eq, %arg0, %c0_i32 : i32
    %6 = arith.extui %5 : i1 to i32
    %c0_i32_5 = arith.constant 0 : i32
    %7 = arith.cmpi ne, %6, %c0_i32_5 : i32
    scf.if %7 {
      %cst_16 = arith.constant 0.000000e+00 : f32
      %19 = vector.broadcast %cst_16 : f32 to vector<1x128xf32>
      %c0_17 = arith.constant 0 : index
      %c0_18 = arith.constant 0 : index
      %20 = vector.load %arg4[%c0_17, %c0_18] : memref<1x128xf32, #tpu.memory_space<vmem>>, vector<1x128xf32>
      tpu.vector_store %arg4[%c0_17, %c0_18], %19 {strides = array<i32>} : memref<1x128xf32, #tpu.memory_space<vmem>>, vector<1x128xf32>,
      %cst_19 = arith.constant 0.000000e+00 : f32
      %21 = vector.broadcast %cst_19 : f32 to vector<1x128xf32>
      %c0_20 = arith.constant 0 : index
      %c0_21 = arith.constant 0 : index
      %22 = vector.load %arg5[%c0_20, %c0_21] : memref<1x128xf32, #tpu.memory_space<vmem>>, vector<1x128xf32>
      tpu.vector_store %arg5[%c0_20, %c0_21], %21 {strides = array<i32>} : memref<1x128xf32, #tpu.memory_space<vmem>>, vector<1x128xf32>,
    } else {
    }
    %c0_6 = arith.constant 0 : index
    %c0_7 = arith.constant 0 : index
    %8 = vector.load %arg4[%c0_6, %c0_7] : memref<1x128xf32, #tpu.memory_space<vmem>>, vector<1x128xf32>
    %cst_8 = arith.constant dense<0.000000e+00> : vector<128xf32>
    %9 = vector.multi_reduction <add>, %2, %cst_8 [0] : vector<32x128xf32> to vector<128xf32>
    %10 = vector.shape_cast %9 : vector<128xf32> to vector<1x128xf32>
    %11 = arith.addf %8, %10 : vector<1x128xf32>
    %c0_9 = arith.constant 0 : index
    %c0_10 = arith.constant 0 : index
    %12 = vector.load %arg4[%c0_9, %c0_10] : memref<1x128xf32, #tpu.memory_space<vmem>>, vector<1x128xf32>
    tpu.vector_store %arg4[%c0_9, %c0_10], %11 {strides = array<i32>} : memref<1x128xf32, #tpu.memory_space<vmem>>, vector<1x128xf32>,
    %c0_11 = arith.constant 0 : index
    %c0_12 = arith.constant 0 : index
    %13 = vector.load %arg5[%c0_11, %c0_12] : memref<1x128xf32, #tpu.memory_space<vmem>>, vector<1x128xf32>
    %14 = arith.mulf %2, %2 : vector<32x128xf32>
    %cst_13 = arith.constant dense<0.000000e+00> : vector<128xf32>
    %15 = vector.multi_reduction <add>, %14, %cst_13 [0] : vector<32x128xf32> to vector<128xf32>
    %16 = vector.shape_cast %15 : vector<128xf32> to vector<1x128xf32>
    %17 = arith.addf %13, %16 : vector<1x128xf32>
    %c0_14 = arith.constant 0 : index
    %c0_15 = arith.constant 0 : index
    %18 = vector.load %arg5[%c0_14, %c0_15] : memref<1x128xf32, #tpu.memory_space<vmem>>, vector<1x128xf32>
    tpu.vector_store %arg5[%c0_14, %c0_15], %17 {strides = array<i32>} : memref<1x128xf32, #tpu.memory_space<vmem>>, vector<1x128xf32>,
    return
  }
  func.func @transform_0(%arg0: i32) -> (i32, i32) {
    %c0_i32 = arith.constant 0 : i32
    %c0_i32_0 = arith.constant 0 : i32
    return %arg0, %c0_i32 : i32, i32
  }
  func.func @transform_1(%arg0: i32) -> (i32, i32) {
    %c0_i32 = arith.constant 0 : i32
    %c0_i32_0 = arith.constant 0 : i32
    %c0_i32_1 = arith.constant 0 : i32
    return %c0_i32, %c0_i32_0 : i32, i32
  }
  func.func @transform_2(%arg0: i32) -> (i32, i32) {
    %c0_i32 = arith.constant 0 : i32
    %c0_i32_0 = arith.constant 0 : i32
    return %arg0, %c0_i32 : i32, i32
  }
  func.func @transform_3(%arg0: i32) -> (i32, i32) {
    %c0_i32 = arith.constant 0 : i32
    %c0_i32_0 = arith.constant 0 : i32
    %c0_i32_1 = arith.constant 0 : i32
    return %c0_i32, %c0_i32_0 : i32, i32
  }
  func.func @transform_4(%arg0: i32) -> (i32, i32) {
    %c0_i32 = arith.constant 0 : i32
    %c0_i32_0 = arith.constant 0 : i32
    %c0_i32_1 = arith.constant 0 : i32
    return %c0_i32, %c0_i32_0 : i32, i32
  }
}

module attributes {stable_mosaic.version = 11 : i64} {
  func.func @_head_kernel(%arg0: i32, %arg1: memref<2x16x128xbf16, #tpu.memory_space<vmem>>, %arg2: memref<1x128xf32, #tpu.memory_space<vmem>>, %arg3: memref<1x128xf32, #tpu.memory_space<vmem>>, %arg4: memref<16x128xf32, #tpu.memory_space<vmem>>, %arg5: memref<2x1x1xf32, #tpu.memory_space<vmem>>) attributes {dimension_semantics = [#tpu.dimension_semantics<arbitrary>], iteration_bounds = array<i64: 1>, scalar_prefetch = 0 : i64, scratch_operands = 0 : i64, tpu.core_type = #tpu.core_type<tc>, window_params = [{pipeline_mode = #tpu.pipeline_mode<synchronous>, transform_indices = @transform_0, window_bounds = array<i64: 2, 16, 128>}, {pipeline_mode = #tpu.pipeline_mode<synchronous>, transform_indices = @transform_1, window_bounds = array<i64: 1, 128>}, {pipeline_mode = #tpu.pipeline_mode<synchronous>, transform_indices = @transform_2, window_bounds = array<i64: 1, 128>}, {pipeline_mode = #tpu.pipeline_mode<synchronous>, transform_indices = @transform_3, window_bounds = array<i64: 16, 128>}, {pipeline_mode = #tpu.pipeline_mode<synchronous>, transform_indices = @transform_4, window_bounds = array<i64: 2, 1, 1>}]} {
    %c0 = arith.constant 0 : index
    %c0_0 = arith.constant 0 : index
    %c0_1 = arith.constant 0 : index
    %0 = vector.load %arg1[%c0, %c0_0, %c0_1] : memref<2x16x128xbf16, #tpu.memory_space<vmem>>, vector<2x16x128xbf16>
    %1 = arith.extf %0 : vector<2x16x128xbf16> to vector<2x16x128xf32>
    %c0_2 = arith.constant 0 : index
    %c0_3 = arith.constant 0 : index
    %2 = vector.load %arg2[%c0_2, %c0_3] : memref<1x128xf32, #tpu.memory_space<vmem>>, vector<1x128xf32>
    %3 = vector.shape_cast %2 : vector<1x128xf32> to vector<1x1x128xf32>
    %4 = vector.broadcast %3 : vector<1x1x128xf32> to vector<2x16x128xf32>
    %5 = arith.mulf %1, %4 : vector<2x16x128xf32>
    %c0_4 = arith.constant 0 : index
    %c0_5 = arith.constant 0 : index
    %6 = vector.load %arg3[%c0_4, %c0_5] : memref<1x128xf32, #tpu.memory_space<vmem>>, vector<1x128xf32>
    %7 = vector.shape_cast %6 : vector<1x128xf32> to vector<1x1x128xf32>
    %8 = vector.broadcast %7 : vector<1x1x128xf32> to vector<2x16x128xf32>
    %9 = arith.addf %5, %8 : vector<2x16x128xf32>
    %cst = arith.constant 0.000000e+00 : f32
    %10 = vector.broadcast %cst : f32 to vector<2x16x128xf32>
    %11 = arith.cmpf ogt, %9, %10 : vector<2x16x128xf32>
    %cst_6 = arith.constant 2.000000e-01 : f32
    %12 = vector.broadcast %cst_6 : f32 to vector<2x16x128xf32>
    %13 = arith.mulf %12, %9 : vector<2x16x128xf32>
    %14 = arith.select %11, %9, %13 : vector<2x16x128xi1>, vector<2x16x128xf32>
    %c0_7 = arith.constant 0 : index
    %c0_8 = arith.constant 0 : index
    %15 = vector.load %arg4[%c0_7, %c0_8] : memref<16x128xf32, #tpu.memory_space<vmem>>, vector<16x128xf32>
    %16 = vector.shape_cast %15 : vector<16x128xf32> to vector<1x16x128xf32>
    %17 = vector.broadcast %16 : vector<1x16x128xf32> to vector<2x16x128xf32>
    %18 = arith.mulf %14, %17 : vector<2x16x128xf32>
    %cst_9 = arith.constant dense<0.000000e+00> : vector<2x16xf32>
    %19 = vector.multi_reduction <add>, %18, %cst_9 [2] : vector<2x16x128xf32> to vector<2x16xf32>
    %20 = vector.shape_cast %19 : vector<2x16xf32> to vector<2x16x1xf32>
    %cst_10 = arith.constant dense<0.000000e+00> : vector<2x1xf32>
    %21 = vector.multi_reduction <add>, %20, %cst_10 [1] : vector<2x16x1xf32> to vector<2x1xf32>
    %22 = vector.shape_cast %21 : vector<2x1xf32> to vector<2x1x1xf32>
    %23 = arith.negf %22 : vector<2x1x1xf32>
    %24 = math.exp %23 : vector<2x1x1xf32>
    %cst_11 = arith.constant 1.000000e+00 : f32
    %25 = vector.broadcast %cst_11 : f32 to vector<2x1x1xf32>
    %26 = arith.addf %25, %24 : vector<2x1x1xf32>
    %27 = arith.divf %25, %26 : vector<2x1x1xf32>
    %c0_12 = arith.constant 0 : index
    %c0_13 = arith.constant 0 : index
    %c0_14 = arith.constant 0 : index
    %28 = vector.load %arg5[%c0_12, %c0_13, %c0_14] : memref<2x1x1xf32, #tpu.memory_space<vmem>>, vector<2x1x1xf32>
    tpu.vector_store %arg5[%c0_12, %c0_13, %c0_14], %27 {strides = array<i32>} : memref<2x1x1xf32, #tpu.memory_space<vmem>>, vector<2x1x1xf32>,
    return
  }
  func.func @transform_0(%arg0: i32) -> (i32, i32, i32) {
    %c0_i32 = arith.constant 0 : i32
    %c0_i32_0 = arith.constant 0 : i32
    %c0_i32_1 = arith.constant 0 : i32
    %c0_i32_2 = arith.constant 0 : i32
    return %c0_i32, %c0_i32_0, %c0_i32_1 : i32, i32, i32
  }
  func.func @transform_1(%arg0: i32) -> (i32, i32) {
    %c0_i32 = arith.constant 0 : i32
    %c0_i32_0 = arith.constant 0 : i32
    %c0_i32_1 = arith.constant 0 : i32
    return %c0_i32, %c0_i32_0 : i32, i32
  }
  func.func @transform_2(%arg0: i32) -> (i32, i32) {
    %c0_i32 = arith.constant 0 : i32
    %c0_i32_0 = arith.constant 0 : i32
    %c0_i32_1 = arith.constant 0 : i32
    return %c0_i32, %c0_i32_0 : i32, i32
  }
  func.func @transform_3(%arg0: i32) -> (i32, i32) {
    %c0_i32 = arith.constant 0 : i32
    %c0_i32_0 = arith.constant 0 : i32
    %c0_i32_1 = arith.constant 0 : i32
    return %c0_i32, %c0_i32_0 : i32, i32
  }
  func.func @transform_4(%arg0: i32) -> (i32, i32, i32) {
    %c0_i32 = arith.constant 0 : i32
    %c0_i32_0 = arith.constant 0 : i32
    %c0_i32_1 = arith.constant 0 : i32
    %c0_i32_2 = arith.constant 0 : i32
    return %c0_i32, %c0_i32_0, %c0_i32_1 : i32, i32, i32
  }
}

</mosaic_0001>

<llo_original>
// kernel: discriminator_forward.5
$region0: #{discriminator_forward.5}
  #allocation0 [shape = 'u32[]', space=smem, size = 0x4, offset = 0x4, fixed_abs, tag = 'smem constant byte address 0x4 - core index']
  #allocation1 [shape = 'u32[144,128]{1,0:T(1,128)}', space=vmem, size = 0x12000, scoped, tag = 'internal scratch']
  %s0 = inlined_call_operand.vmem [shape: bf16[2048,48], index: 0, kind: input, shape index: {}]
  %s1 = inlined_call_operand.vmem [shape: bf16[48,128], index: 1, kind: input, shape index: {}]
  %s2 = inlined_call_operand.vmem [shape: bf16[2048,128], index: 2, kind: output, shape index: {}]
  %s3 = sld [smem:[#allocation0]]
  $region41: #{discriminator_forward.5} parent=0
    _
  %s5 = ssub.s32 1, %s3
  %s6 = scalar_select 0, %s5, %s3
  loop: start=0, step=1, limit=6
  $region2: #{discriminator_forward.5} parent=0 // loop_pre_header
    _
  $region3: #{discriminator_forward.5} parent=0 // loop_header
    %s8 = sphi 0, %s12
    %p9 = scmp.ge.s32.totalorder %s8, 6
    %s18 = sphi 0, %s20
    %s21 = sphi 0, %s18
    %s22 = sphi 0, %s21
    %s38 = sphi 0, %s22
    %s42 = sphi 0, %s42
    %s44 = sphi 0, %s42
    %s45 = sphi 0, %s44
    %s59 = sphi 0, %s45
    %s65 = sphi 0, %s67
    %s68 = sphi 0, %s65
    %s69 = sphi 0, %s68
    %s85 = sphi 0, %s69
  $region4: #{discriminator_forward.5} parent=0 // loop_header_branch
    %11 = sbr.rel (%p9) target = $region8
  $region5: #{discriminator_forward.5} parent=0 // loop_body
    %s13 = ssub.s32 %s8, 1
    %s14 = ssub.s32 %s8, 2
    %s15 = sadd.s32 %s8, 1
    %s16 = ssub.s32 %s8, %s15
    %p17 = scmp.eq.s32.totalorder %s16, 0
    %s19 = sadd.s32 %s18, 1
    %s20 = scalar_select %p17, %s18, %s19
    %p23 = pneg %p17
    %p24 = scmp.eq.s32.totalorder %s8, 3
    %p25 = por %p23, %p24
    %p26 = scmp.ne.s32.totalorder %s18, %s21
    %p27 = scmp.eq.s32.totalorder %s8, 0
    %p28 = por %p26, %p27
    %p29 = scmp.ne.s32.totalorder %s18, %s21
    %p30 = scmp.eq.s32.totalorder %s13, 3
    %p31 = por %p29, %p30
    %p32 = scmp.ne.s32.totalorder %s21, %s22
    %p33 = scmp.eq.s32.totalorder %s13, 0
    %p34 = por %p32, %p33
    %p35 = scmp.ne.s32.totalorder %s21, %s22
    %p36 = scmp.eq.s32.totalorder %s14, 3
    %p37 = por %p35, %p36
    %p39 = scmp.ne.s32.totalorder %s22, %s38
    %p40 = scmp.eq.s32.totalorder %s14, 0
    %p41 = por %p39, %p40
    %s43 = sadd.s32 %s42, 1
    %p46 = scmp.eq.s32.totalorder %s8, 3
    %p47 = scmp.ne.s32.totalorder %s42, %s44
    %p48 = scmp.eq.s32.totalorder %s8, 0
    %p49 = por %p47, %p48
    %p50 = scmp.ne.s32.totalorder %s42, %s44
    %p51 = scmp.eq.s32.totalorder %s13, 3
    %p52 = por %p50, %p51
    %p53 = scmp.ne.s32.totalorder %s44, %s45
    %p54 = scmp.eq.s32.totalorder %s13, 0
    %p55 = por %p53, %p54
    %p56 = scmp.ne.s32.totalorder %s44, %s45
    %p57 = scmp.eq.s32.totalorder %s14, 3
    %p58 = por %p56, %p57
    %p60 = scmp.ne.s32.totalorder %s45, %s59
    %p61 = scmp.eq.s32.totalorder %s14, 0
    %p62 = por %p60, %p61
    %s63 = ssub.s32 %s8, %s15
    %p64 = scmp.eq.s32.totalorder %s63, 0
    %s66 = sadd.s32 %s65, 1
    %s67 = scalar_select %p64, %s65, %s66
    %p70 = pneg %p64
    %p71 = scmp.eq.s32.totalorder %s8, 3
    %p72 = por %p70, %p71
    %p73 = scmp.ne.s32.totalorder %s65, %s68
    %p74 = scmp.eq.s32.totalorder %s8, 0
    %p75 = por %p73, %p74
    %p76 = scmp.ne.s32.totalorder %s65, %s68
    %p77 = scmp.eq.s32.totalorder %s13, 3
    %p78 = por %p76, %p77
    %p79 = scmp.ne.s32.totalorder %s68, %s69
    %p80 = scmp.eq.s32.totalorder %s13, 0
    %p81 = por %p79, %p80
    %p82 = scmp.ne.s32.totalorder %s68, %s69
    %p83 = scmp.eq.s32.totalorder %s14, 3
    %p84 = por %p82, %p83
    %p86 = scmp.ne.s32.totalorder %s69, %s85
    %p87 = scmp.eq.s32.totalorder %s14, 0
    %p88 = por %p86, %p87
    %p89 = scmp.le.s32.totalorder 1, %s8
    %p90 = scmp.lt.s32.totalorder %s8, 5
    %p91 = pnand %p89, %p90
    %p92 = pneg %p91
    // Predicated region
    $region9: #{discriminator_forward.5} parent=5 // pred_check
      _
    $region10: #{discriminator_forward.5} parent=5 // pred_check_branch
      %94 = sbr.rel (%p91) target = $region12
    $region11: #{discriminator_forward.5} parent=5 // pred_region
      %s95 = ssub.s32 %s8, 1
      // Predicated region
      $region13: #{discriminator_forward.5} parent=11 // pred_check
        %p96 = pneg %p55
      $region14: #{discriminator_forward.5} parent=11 // pred_check_branch
        %98 = sbr.rel (%p96) target = $region16
      $region15: #{discriminator_forward.5} parent=11 // pred_region
        _
      $region16: #{discriminator_forward.5} parent=11 // pred_fallthru
        _
    $region12: #{discriminator_forward.5} parent=5 // pred_fallthru
      _
    %p99 = scmp.lt.s32.totalorder %s8, 4
    // Predicated region
    $region17: #{discriminator_forward.5} parent=5 // pred_check
      %p100 = pneg %p99
    $region18: #{discriminator_forward.5} parent=5 // pred_check_branch
      %102 = sbr.rel (%p100) target = $region20
    $region19: #{discriminator_forward.5} parent=5 // pred_region
      // Predicated region
      $region21: #{discriminator_forward.5} parent=19 // pred_check
        %p103 = pneg %p28
      $region22: #{discriminator_forward.5} parent=19 // pred_check_branch
        %105 = sbr.rel (%p103) target = $region24
      $region23: #{discriminator_forward.5} parent=19 // pred_region
        %s106 = smul.u32 64, %s8
        %p107 = scmp.lt.s32.totalorder %s106, 255
        %s108 = scalar_select %p107, %s106, 255
        %s109 = smul.addr %s108, 4
        %s110 = scalar_lea.vmem %s0, %s109
        %s111 = smul.u32 64, %s8
      $region24: #{discriminator_forward.5} parent=19 // pred_fallthru
        _
    $region20: #{discriminator_forward.5} parent=5 // pred_fallthru
      _
    %p112 = scmp.le.s32.totalorder 1, %s8
    %p113 = scmp.lt.s32.totalorder %s8, 5
    %p114 = pnand %p112, %p113
    %p115 = pneg %p114
    // Predicated region
    $region25: #{discriminator_forward.5} parent=5 // pred_check
      _
    $region26: #{discriminator_forward.5} parent=5 // pred_check_branch
      %117 = sbr.rel (%p114) target = $region28
    $region27: #{discriminator_forward.5} parent=5 // pred_region
      %s118 = ssub.s32 %s8, 1
      %s119 = smul.u32 64, %s13
      %p120 = scmp.lt.s32.totalorder %s119, 255
      %s121 = scalar_select %p120, %s119, 255
      %s122 = smul.addr %s121, 4
      %s123 = scalar_lea.vmem %s0, %s122
      %p124 = pneg %p34
      %p125 = pneg %p31
      %p126 = pneg %p55
      %p127 = pneg %p52
      %p128 = pneg %p81
      %p129 = pneg %p78
      %s130 = smul.u32 64, %s13
      %p131 = scmp.lt.s32.totalorder %s130, 255
      %s132 = scalar_select %p131, %s130, 255
      %s133 = smul.addr %s132, 4
      %s134 = scalar_lea.vmem %s2, %s133
      %s135 = smul.u32 64, %s13
      %p136 = scmp.lt.s32.totalorder %s135, 255
      %s137 = scalar_select %p136, %s135, 255
      %s138 = smul.addr %s137, 4
      %s139 = scalar_lea.vmem %s0, %s138
      %s140 = smul.u32 64, %s13
      %s141 = smul.u32 64, %s13
      %p142 = scmp.lt.s32.totalorder %s141, 255
      %s143 = scalar_select %p142, %s141, 255
      %s144 = smul.addr %s143, 4
      %s145 = scalar_lea.vmem %s2, %s144
      %s146 = smul.u32 64, %s13
      %v148 = vld [vmem:[%s139] sm:$0xf]
      %v149 = vld [vmem:[%s139 + $0x4] sm:$0xf]
      %v150 = vld [vmem:[%s139 + $0x8] sm:$0xf]
      %v151 = vld [vmem:[%s139 + $0xc] sm:$0xf]
      %v152 = vld [vmem:[%s139 + $0x10] sm:$0xf]
      %v153 = vld [vmem:[%s139 + $0x14] sm:$0xf]
      %v154 = vld [vmem:[%s139 + $0x18] sm:$0xf]
      %v155 = vld [vmem:[%s139 + $0x1c] sm:$0xf]
      %v156 = vld [vmem:[%s139 + $0x20] sm:$0xf]
      %v157 = vld [vmem:[%s139 + $0x24] sm:$0xf]
      %v158 = vld [vmem:[%s139 + $0x28] sm:$0xf]
      %v159 = vld [vmem:[%s139 + $0x2c] sm:$0xf]
      %v160 = vld [vmem:[%s139 + $0x30] sm:$0xf]
      %v161 = vld [vmem:[%s139 + $0x34] sm:$0xf]
      %v162 = vld [vmem:[%s139 + $0x38] sm:$0xf]
      %v163 = vld [vmem:[%s139 + $0x3c] sm:$0xf]
      %v164 = vld [vmem:[%s139 + $0x40] sm:$0xf]
      %v165 = vld [vmem:[%s139 + $0x44] sm:$0xf]
      %v166 = vld [vmem:[%s139 + $0x48] sm:$0xf]
      %v167 = vld [vmem:[%s139 + $0x4c] sm:$0xf]
      %v168 = vld [vmem:[%s139 + $0x50] sm:$0xf]
      %v169 = vld [vmem:[%s139 + $0x54] sm:$0xf]
      %v170 = vld [vmem:[%s139 + $0x58] sm:$0xf]
      %v171 = vld [vmem:[%s139 + $0x5c] sm:$0xf]
      %v172 = vld [vmem:[%s139 + $0x60] sm:$0xf]
      %v173 = vld [vmem:[%s139 + $0x64] sm:$0xf]
      %v174 = vld [vmem:[%s139 + $0x68] sm:$0xf]
      %v175 = vld [vmem:[%s139 + $0x6c] sm:$0xf]
      %v176 = vld [vmem:[%s139 + $0x70] sm:$0xf]
      %v177 = vld [vmem:[%s139 + $0x74] sm:$0xf]
      %v178 = vld [vmem:[%s139 + $0x78] sm:$0xf]
      %v179 = vld [vmem:[%s139 + $0x7c] sm:$0xf]
      %v180 = vld [vmem:[%s139 + $0x80] sm:$0xf]
      %v181 = vld [vmem:[%s139 + $0x84] sm:$0xf]
      %v182 = vld [vmem:[%s139 + $0x88] sm:$0xf]
      %v183 = vld [vmem:[%s139 + $0x8c] sm:$0xf]
      %v184 = vld [vmem:[%s139 + $0x90] sm:$0xf]
      %v185 = vld [vmem:[%s139 + $0x94] sm:$0xf]
      %v186 = vld [vmem:[%s139 + $0x98] sm:$0xf]
      %v187 = vld [vmem:[%s139 + $0x9c] sm:$0xf]
      %v188 = vld [vmem:[%s139 + $0xa0] sm:$0xf]
      %v189 = vld [vmem:[%s139 + $0xa4] sm:$0xf]
      %v190 = vld [vmem:[%s139 + $0xa8] sm:$0xf]
      %v191 = vld [vmem:[%s139 + $0xac] sm:$0xf]
      %v192 = vld [vmem:[%s139 + $0xb0] sm:$0xf]
      %v193 = vld [vmem:[%s139 + $0xb4] sm:$0xf]
      %v194 = vld [vmem:[%s139 + $0xb8] sm:$0xf]
      %v195 = vld [vmem:[%s139 + $0xbc] sm:$0xf]
      %v196 = vld [vmem:[%s139 + $0xc0] sm:$0xf]
      %v197 = vld [vmem:[%s139 + $0xc4] sm:$0xf]
      %v198 = vld [vmem:[%s139 + $0xc8] sm:$0xf]
      %v199 = vld [vmem:[%s139 + $0xcc] sm:$0xf]
      %v200 = vld [vmem:[%s139 + $0xd0] sm:$0xf]
      %v201 = vld [vmem:[%s139 + $0xd4] sm:$0xf]
      %v202 = vld [vmem:[%s139 + $0xd8] sm:$0xf]
      %v203 = vld [vmem:[%s139 + $0xdc] sm:$0xf]
      %v204 = vld [vmem:[%s139 + $0xe0] sm:$0xf]
      %v205 = vld [vmem:[%s139 + $0xe4] sm:$0xf]
      %v206 = vld [vmem:[%s139 + $0xe8] sm:$0xf]
      %v207 = vld [vmem:[%s139 + $0xec] sm:$0xf]
      %v208 = vld [vmem:[%s139 + $0xf0] sm:$0xf]
      %v209 = vld [vmem:[%s139 + $0xf4] sm:$0xf]
      %v210 = vld [vmem:[%s139 + $0xf8] sm:$0xf]
      %v211 = vld [vmem:[%s139 + $0xfc] sm:$0xf]
      %v212 = vld [vmem:[%s1] sm:$0xf]
      %v213 = vld [vmem:[%s1 + $0x4] sm:$0xf]
      %v214 = vld [vmem:[%s1 + $0x8] sm:$0xf]
      %v215 = vld [vmem:[%s1 + $0xc] sm:$0xf]
      %v216 = vld [vmem:[%s1 + $0x10] sm:$0xf]
      %v217 = vld [vmem:[%s1 + $0x14] sm:$0xf]
      %v282 = vunpack.c.l.b16 %v148
      %v283 = vunpack.c.l.b16 %v149
      %v284 = vunpack.c.l.b16 %v150
      %v285 = vunpack.c.l.b16 %v151
      %v286 = vunpack.c.l.b16 %v152
      %v287 = vunpack.c.l.b16 %v153
      %v288 = vunpack.c.l.b16 %v154
      %v289 = vunpack.c.l.b16 %v155
      %v290 = vunpack.c.l.b16 %v156
      %v291 = vunpack.c.l.b16 %v157
      %v292 = vunpack.c.l.b16 %v158
      %v293 = vunpack.c.l.b16 %v159
      %v294 = vunpack.c.l.b16 %v160
      %v295 = vunpack.c.l.b16 %v161
      %v296 = vunpack.c.l.b16 %v162
      %v297 = vunpack.c.l.b16 %v163
      %v298 = vunpack.c.l.b16 %v164
      %v299 = vunpack.c.l.b16 %v165
      %v300 = vunpack.c.l.b16 %v166
      %v301 = vunpack.c.l.b16 %v167
      %v302 = vunpack.c.l.b16 %v168
      %v303 = vunpack.c.l.b16 %v169
      %v304 = vunpack.c.l.b16 %v170
      %v305 = vunpack.c.l.b16 %v171
      %v306 = vunpack.c.l.b16 %v172
      %v307 = vunpack.c.l.b16 %v173
      %v308 = vunpack.c.l.b16 %v174
      %v309 = vunpack.c.l.b16 %v175
      %v310 = vunpack.c.l.b16 %v176
      %v311 = vunpack.c.l.b16 %v177
      %v312 = vunpack.c.l.b16 %v178
      %v313 = vunpack.c.l.b16 %v179
      %v314 = vunpack.c.l.b16 %v180
      %v315 = vunpack.c.l.b16 %v181
      %v316 = vunpack.c.l.b16 %v182
      %v317 = vunpack.c.l.b16 %v183
      %v318 = vunpack.c.l.b16 %v184
      %v319 = vunpack.c.l.b16 %v185
      %v320 = vunpack.c.l.b16 %v186
      %v321 = vunpack.c.l.b16 %v187
      %v322 = vunpack.c.l.b16 %v188
      %v323 = vunpack.c.l.b16 %v189
      %v324 = vunpack.c.l.b16 %v190
      %v325 = vunpack.c.l.b16 %v191
      %v326 = vunpack.c.l.b16 %v192
      %v327 = vunpack.c.l.b16 %v193
      %v328 = vunpack.c.l.b16 %v194
      %v329 = vunpack.c.l.b16 %v195
      %v330 = vunpack.c.l.b16 %v196
      %v331 = vunpack.c.l.b16 %v197
      %v332 = vunpack.c.l.b16 %v198
      %v333 = vunpack.c.l.b16 %v199
      %v334 = vunpack.c.l.b16 %v200
      %v335 = vunpack.c.l.b16 %v201
      %v336 = vunpack.c.l.b16 %v202
      %v337 = vunpack.c.l.b16 %v203
      %v338 = vunpack.c.l.b16 %v204
      %v339 = vunpack.c.l.b16 %v205
      %v340 = vunpack.c.l.b16 %v206
      %v341 = vunpack.c.l.b16 %v207
      %v342 = vunpack.c.l.b16 %v208
      %v343 = vunpack.c.l.b16 %v209
      %v344 = vunpack.c.l.b16 %v210
      %v345 = vunpack.c.l.b16 %v211
      %v346 = vpack.c.b16 %v283, %v282
      %v347 = vpack.c.b16 %v285, %v284
      %v348 = vpack.c.b16 %v287, %v286
      %v349 = vpack.c.b16 %v289, %v288
      %v350 = vpack.c.b16 %v291, %v290
      %v351 = vpack.c.b16 %v293, %v292
      %v352 = vpack.c.b16 %v295, %v294
      %v353 = vpack.c.b16 %v297, %v296
      %v354 = vpack.c.b16 %v299, %v298
      %v355 = vpack.c.b16 %v301, %v300
      %v356 = vpack.c.b16 %v303, %v302
      %v357 = vpack.c.b16 %v305, %v304
      %v358 = vpack.c.b16 %v307, %v306
      %v359 = vpack.c.b16 %v309, %v308
      %v360 = vpack.c.b16 %v311, %v310
      %v361 = vpack.c.b16 %v313, %v312
      %v362 = vpack.c.b16 %v315, %v314
      %v363 = vpack.c.b16 %v317, %v316
      %v364 = vpack.c.b16 %v319, %v318
      %v365 = vpack.c.b16 %v321, %v320
      %v366 = vpack.c.b16 %v323, %v322
      %v367 = vpack.c.b16 %v325, %v324
      %v368 = vpack.c.b16 %v327, %v326
      %v369 = vpack.c.b16 %v329, %v328
      %v370 = vpack.c.b16 %v331, %v330
      %v371 = vpack.c.b16 %v333, %v332
      %v372 = vpack.c.b16 %v335, %v334
      %v373 = vpack.c.b16 %v337, %v336
      %v374 = vpack.c.b16 %v339, %v338
      %v375 = vpack.c.b16 %v341, %v340
      %v376 = vpack.c.b16 %v343, %v342
      %v377 = vpack.c.b16 %v345, %v344
      %v384 = vunpack.c.l.b16 %v212
      %v385 = vunpack.c.l.b16 %v213
      %v386 = vunpack.c.l.b16 %v214
      %v387 = vunpack.c.l.b16 %v215
      %v388 = vunpack.c.l.b16 %v216
      %v389 = vunpack.c.l.b16 %v217
      %v390 = vpack.c.b16 %v385, %v384
      %v391 = vpack.c.b16 %v387, %v386
      %v392 = vpack.c.b16 %v389, %v388
      %vm396 = vcmask 392192
      %v398 = vsel %vm396, %v346, 0
      %v401 = vsel %vm396, %v347, 0
      %v404 = vsel %vm396, %v348, 0
      %v407 = vsel %vm396, %v349, 0
      %v410 = vsel %vm396, %v350, 0
      %v413 = vsel %vm396, %v351, 0
      %v416 = vsel %vm396, %v352, 0
      %v419 = vsel %vm396, %v353, 0
      %v422 = vsel %vm396, %v354, 0
      %v425 = vsel %vm396, %v355, 0
      %v428 = vsel %vm396, %v356, 0
      %v431 = vsel %vm396, %v357, 0
      %v434 = vsel %vm396, %v358, 0
      %v437 = vsel %vm396, %v359, 0
      %v440 = vsel %vm396, %v360, 0
      %v443 = vsel %vm396, %v361, 0
      %v446 = vsel %vm396, %v362, 0
      %v449 = vsel %vm396, %v363, 0
      %v452 = vsel %vm396, %v364, 0
      %v455 = vsel %vm396, %v365, 0
      %v458 = vsel %vm396, %v366, 0
      %v461 = vsel %vm396, %v367, 0
      %v464 = vsel %vm396, %v368, 0
      %v467 = vsel %vm396, %v369, 0
      %v470 = vsel %vm396, %v370, 0
      %v473 = vsel %vm396, %v371, 0
      %v476 = vsel %vm396, %v372, 0
      %v479 = vsel %vm396, %v373, 0
      %v482 = vsel %vm396, %v374, 0
      %v485 = vsel %vm396, %v375, 0
      %v488 = vsel %vm396, %v376, 0
      %v491 = vsel %vm396, %v377, 0
      %493 = vmatprep.subr.bf16.mxu0 0
      %494 = vmatpush1.bf16.msra.mxu0 %v390
      %495 = vmatprep.subr.bf16.mxu0 0
      %496 = vmatpush1.bf16.msra.mxu0 %v391
      %497 = vmatprep.subr.bf16.mxu0 0
      %498 = vmatpush1.bf16.msra.mxu0 %v392
      %499 = vmatprep.subr.bf16.mxu0 0
      %500 = vmatpush1.bf16.msra.mxu0 0
      %501 = vmatprep.subr.bf16.mxu0 0
      %502 = vmatpush1.bf16.msra.mxu0 0
      %503 = vmatprep.subr.bf16.mxu0 0
      %504 = vmatpush1.bf16.msra.mxu0 0
      %505 = vmatprep.subr.bf16.mxu0 0
      %506 = vmatpush1.bf16.msra.mxu0 0
      %507 = vmatprep.subr.bf16.mxu0 0
      %508 = vmatpush1.bf16.msra.mxu0 0
      %509 = vmatprep.subr.bf16.mxu0 0
      %510 = vmatpush1.bf16.msra.mxu0 0
      %511 = vmatprep.subr.bf16.mxu0 0
      %512 = vmatpush1.bf16.msra.mxu0 0
      %513 = vmatprep.subr.bf16.mxu0 0
      %514 = vmatpush1.bf16.msra.mxu0 0
      %515 = vmatprep.subr.bf16.mxu0 0
      %516 = vmatpush1.bf16.msra.mxu0 0
      %517 = vmatprep.subr.bf16.mxu0 0
      %518 = vmatpush1.bf16.msra.mxu0 0
      %519 = vmatprep.subr.bf16.mxu0 0
      %520 = vmatpush1.bf16.msra.mxu0 0
      %521 = vmatprep.subr.bf16.mxu0 0
      %522 = vmatpush1.bf16.msra.mxu0 0
      %523 = vmatprep.subr.bf16.mxu0 0
      %524 = vmatpush1.bf16.msra.mxu0 0
      %525 = vmatprep.mubr.bf16.mxu0 0
      %526 = vmatmul.mubr.bf16.gmra.mrb[0].mxu0 %v398
      %v527 = vpop.f32.mrb[0].mxu0
      %v528 = vadd.f32 0.0, %v527
      %v529 = vpop.f32.mrb[0].mxu0
      %v530 = vpop.f32.mrb[0].mxu0
      %v531 = vadd.f32 0.0, %v530
      %v532 = vpop.f32.mrb[0].mxu0
      %533 = vmatprep.mubr.bf16.mxu0 0
      %534 = vmatmul.mubr.bf16.gmra.mrb[0].mxu0 %v401
      %v535 = vpop.f32.mrb[0].mxu0
      %v536 = vadd.f32 0.0, %v535
      %v537 = vpop.f32.mrb[0].mxu0
      %v538 = vpop.f32.mrb[0].mxu0
      %v539 = vadd.f32 0.0, %v538
      %v540 = vpop.f32.mrb[0].mxu0
      %541 = vmatprep.mubr.bf16.mxu0 0
      %542 = vmatmul.mubr.bf16.gmra.mrb[0].mxu0 %v404
      %v543 = vpop.f32.mrb[0].mxu0
      %v544 = vadd.f32 0.0, %v543
      %v545 = vpop.f32.mrb[0].mxu0
      %v546 = vpop.f32.mrb[0].mxu0
      %v547 = vadd.f32 0.0, %v546
      %v548 = vpop.f32.mrb[0].mxu0
      %549 = vmatprep.mubr.bf16.mxu0 0
      %550 = vmatmul.mubr.bf16.gmra.mrb[0].mxu0 %v407
      %v551 = vpop.f32.mrb[0].mxu0
      %v552 = vadd.f32 0.0, %v551
      %v553 = vpop.f32.mrb[0].mxu0
      %v554 = vpop.f32.mrb[0].mxu0
      %v555 = vadd.f32 0.0, %v554
      %v556 = vpop.f32.mrb[0].mxu0
      %557 = vmatprep.mubr.bf16.mxu0 0
      %558 = vmatmul.mubr.bf16.gmra.mrb[0].mxu0 %v410
      %v559 = vpop.f32.mrb[0].mxu0
      %v560 = vadd.f32 0.0, %v559
      %v561 = vpop.f32.mrb[0].mxu0
      %v562 = vpop.f32.mrb[0].mxu0
      %v563 = vadd.f32 0.0, %v562
      %v564 = vpop.f32.mrb[0].mxu0
      %565 = vmatprep.mubr.bf16.mxu0 0
      %566 = vmatmul.mubr.bf16.gmra.mrb[0].mxu0 %v413
      %v567 = vpop.f32.mrb[0].mxu0
      %v568 = vadd.f32 0.0, %v567
      %v569 = vpop.f32.mrb[0].mxu0
      %v570 = vpop.f32.mrb[0].mxu0
      %v571 = vadd.f32 0.0, %v570
      %v572 = vpop.f32.mrb[0].mxu0
      %573 = vmatprep.mubr.bf16.mxu0 0
      %574 = vmatmul.mubr.bf16.gmra.mrb[0].mxu0 %v416
      %v575 = vpop.f32.mrb[0].mxu0
      %v576 = vadd.f32 0.0, %v575
      %v577 = vpop.f32.mrb[0].mxu0
      %v578 = vpop.f32.mrb[0].mxu0
      %v579 = vadd.f32 0.0, %v578
      %v580 = vpop.f32.mrb[0].mxu0
      %581 = vmatprep.mubr.bf16.mxu0 0
      %582 = vmatmul.mubr.bf16.gmra.mrb[0].mxu0 %v419
      %v583 = vpop.f32.mrb[0].mxu0
      %v584 = vadd.f32 0.0, %v583
      %v585 = vpop.f32.mrb[0].mxu0
      %v586 = vpop.f32.mrb[0].mxu0
      %v587 = vadd.f32 0.0, %v586
      %v588 = vpop.f32.mrb[0].mxu0
      %589 = vmatprep.mubr.bf16.mxu0 0
      %590 = vmatmul.mubr.bf16.gmra.mrb[0].mxu0 %v422
      %v591 = vpop.f32.mrb[0].mxu0
      %v592 = vadd.f32 0.0, %v591
      %v593 = vpop.f32.mrb[0].mxu0
      %v594 = vpop.f32.mrb[0].mxu0
      %v595 = vadd.f32 0.0, %v594
      %v596 = vpop.f32.mrb[0].mxu0
      %597 = vmatprep.mubr.bf16.mxu0 0
      %598 = vmatmul.mubr.bf16.gmra.mrb[0].mxu0 %v425
      %v599 = vpop.f32.mrb[0].mxu0
      %v600 = vadd.f32 0.0, %v599
      %v601 = vpop.f32.mrb[0].mxu0
      %v602 = vpop.f32.mrb[0].mxu0
      %v603 = vadd.f32 0.0, %v602
      %v604 = vpop.f32.mrb[0].mxu0
      %605 = vmatprep.mubr.bf16.mxu0 0
      %606 = vmatmul.mubr.bf16.gmra.mrb[0].mxu0 %v428
      %v607 = vpop.f32.mrb[0].mxu0
      %v608 = vadd.f32 0.0, %v607
      %v609 = vpop.f32.mrb[0].mxu0
      %v610 = vpop.f32.mrb[0].mxu0
      %v611 = vadd.f32 0.0, %v610
      %v612 = vpop.f32.mrb[0].mxu0
      %613 = vmatprep.mubr.bf16.mxu0 0
      %614 = vmatmul.mubr.bf16.gmra.mrb[0].mxu0 %v431
      %v615 = vpop.f32.mrb[0].mxu0
      %v616 = vadd.f32 0.0, %v615
      %v617 = vpop.f32.mrb[0].mxu0
      %v618 = vpop.f32.mrb[0].mxu0
      %v619 = vadd.f32 0.0, %v618
      %v620 = vpop.f32.mrb[0].mxu0
      %621 = vmatprep.mubr.bf16.mxu0 0
      %622 = vmatmul.mubr.bf16.gmra.mrb[0].mxu0 %v434
      %v623 = vpop.f32.mrb[0].mxu0
      %v624 = vadd.f32 0.0, %v623
      %v625 = vpop.f32.mrb[0].mxu0
      %v626 = vpop.f32.mrb[0].mxu0
      %v627 = vadd.f32 0.0, %v626
      %v628 = vpop.f32.mrb[0].mxu0
      %629 = vmatprep.mubr.bf16.mxu0 0
      %630 = vmatmul.mubr.bf16.gmra.mrb[0].mxu0 %v437
      %v631 = vpop.f32.mrb[0].mxu0
      %v632 = vadd.f32 0.0, %v631
      %v633 = vpop.f32.mrb[0].mxu0
      %v634 = vpop.f32.mrb[0].mxu0
      %v635 = vadd.f32 0.0, %v634
      %v636 = vpop.f32.mrb[0].mxu0
      %637 = vmatprep.mubr.bf16.mxu0 0
      %638 = vmatmul.mubr.bf16.gmra.mrb[0].mxu0 %v440
      %v639 = vpop.f32.mrb[0].mxu0
      %v640 = vadd.f32 0.0, %v639
      %v641 = vpop.f32.mrb[0].mxu0
      %v642 = vpop.f32.mrb[0].mxu0
      %v643 = vadd.f32 0.0, %v642
      %v644 = vpop.f32.mrb[0].mxu0
      %645 = vmatprep.mubr.bf16.mxu0 0
      %646 = vmatmul.mubr.bf16.gmra.mrb[0].mxu0 %v443
      %v647 = vpop.f32.mrb[0].mxu0
      %v648 = vadd.f32 0.0, %v647
      %v649 = vpop.f32.mrb[0].mxu0
      %v650 = vpop.f32.mrb[0].mxu0
      %v651 = vadd.f32 0.0, %v650
      %v652 = vpop.f32.mrb[0].mxu0
      %653 = vmatprep.mubr.bf16.mxu0 0
      %654 = vmatmul.mubr.bf16.gmra.mrb[0].mxu0 %v446
      %v655 = vpop.f32.mrb[0].mxu0
      %v656 = vadd.f32 0.0, %v655
      %v657 = vpop.f32.mrb[0].mxu0
      %v658 = vpop.f32.mrb[0].mxu0
      %v659 = vadd.f32 0.0, %v658
      %v660 = vpop.f32.mrb[0].mxu0
      %661 = vmatprep.mubr.bf16.mxu0 0
      %662 = vmatmul.mubr.bf16.gmra.mrb[0].mxu0 %v449
      %v663 = vpop.f32.mrb[0].mxu0
      %v664 = vadd.f32 0.0, %v663
      %v665 = vpop.f32.mrb[0].mxu0
      %v666 = vpop.f32.mrb[0].mxu0
      %v667 = vadd.f32 0.0, %v666
      %v668 = vpop.f32.mrb[0].mxu0
      %669 = vmatprep.mubr.bf16.mxu0 0
      %670 = vmatmul.mubr.bf16.gmra.mrb[0].mxu0 %v452
      %v671 = vpop.f32.mrb[0].mxu0
      %v672 = vadd.f32 0.0, %v671
      %v673 = vpop.f32.mrb[0].mxu0
      %v674 = vpop.f32.mrb[0].mxu0
      %v675 = vadd.f32 0.0, %v674
      %v676 = vpop.f32.mrb[0].mxu0
      %677 = vmatprep.mubr.bf16.mxu0 0
      %678 = vmatmul.mubr.bf16.gmra.mrb[0].mxu0 %v455
      %v679 = vpop.f32.mrb[0].mxu0
      %v680 = vadd.f32 0.0, %v679
      %v681 = vpop.f32.mrb[0].mxu0
      %v682 = vpop.f32.mrb[0].mxu0
      %v683 = vadd.f32 0.0, %v682
      %v684 = vpop.f32.mrb[0].mxu0
      %685 = vmatprep.mubr.bf16.mxu0 0
      %686 = vmatmul.mubr.bf16.gmra.mrb[0].mxu0 %v458
      %v687 = vpop.f32.mrb[0].mxu0
      %v688 = vadd.f32 0.0, %v687
      %v689 = vpop.f32.mrb[0].mxu0
      %v690 = vpop.f32.mrb[0].mxu0
      %v691 = vadd.f32 0.0, %v690
      %v692 = vpop.f32.mrb[0].mxu0
      %693 = vmatprep.mubr.bf16.mxu0 0
      %694 = vmatmul.mubr.bf16.gmra.mrb[0].mxu0 %v461
      %v695 = vpop.f32.mrb[0].mxu0
      %v696 = vadd.f32 0.0, %v695
      %v697 = vpop.f32.mrb[0].mxu0
      %v698 = vpop.f32.mrb[0].mxu0
      %v699 = vadd.f32 0.0, %v698
      %v700 = vpop.f32.mrb[0].mxu0
      %701 = vmatprep.mubr.bf16.mxu0 0
      %702 = vmatmul.mubr.bf16.gmra.mrb[0].mxu0 %v464
      %v703 = vpop.f32.mrb[0].mxu0
      %v704 = vadd.f32 0.0, %v703
      %v705 = vpop.f32.mrb[0].mxu0
      %v706 = vpop.f32.mrb[0].mxu0
      %v707 = vadd.f32 0.0, %v706
      %v708 = vpop.f32.mrb[0].mxu0
      %709 = vmatprep.mubr.bf16.mxu0 0
      %710 = vmatmul.mubr.bf16.gmra.mrb[0].mxu0 %v467
      %v711 = vpop.f32.mrb[0].mxu0
      %v712 = vadd.f32 0.0, %v711
      %v713 = vpop.f32.mrb[0].mxu0
      %v714 = vpop.f32.mrb[0].mxu0
      %v715 = vadd.f32 0.0, %v714
      %v716 = vpop.f32.mrb[0].mxu0
      %717 = vmatprep.mubr.bf16.mxu0 0
      %718 = vmatmul.mubr.bf16.gmra.mrb[0].mxu0 %v470
      %v719 = vpop.f32.mrb[0].mxu0
      %v720 = vadd.f32 0.0, %v719
      %v721 = vpop.f32.mrb[0].mxu0
      %v722 = vpop.f32.mrb[0].mxu0
      %v723 = vadd.f32 0.0, %v722
      %v724 = vpop.f32.mrb[0].mxu0
      %725 = vmatprep.mubr.bf16.mxu0 0
      %726 = vmatmul.mubr.bf16.gmra.mrb[0].mxu0 %v473
      %v727 = vpop.f32.mrb[0].mxu0
      %v728 = vadd.f32 0.0, %v727
      %v729 = vpop.f32.mrb[0].mxu0
      %v730 = vpop.f32.mrb[0].mxu0
      %v731 = vadd.f32 0.0, %v730
      %v732 = vpop.f32.mrb[0].mxu0
      %733 = vmatprep.mubr.bf16.mxu0 0
      %734 = vmatmul.mubr.bf16.gmra.mrb[0].mxu0 %v476
      %v735 = vpop.f32.mrb[0].mxu0
      %v736 = vadd.f32 0.0, %v735
      %v737 = vpop.f32.mrb[0].mxu0
      %v738 = vpop.f32.mrb[0].mxu0
      %v739 = vadd.f32 0.0, %v738
      %v740 = vpop.f32.mrb[0].mxu0
      %741 = vmatprep.mubr.bf16.mxu0 0
      %742 = vmatmul.mubr.bf16.gmra.mrb[0].mxu0 %v479
      %v743 = vpop.f32.mrb[0].mxu0
      %v744 = vadd.f32 0.0, %v743
      %v745 = vpop.f32.mrb[0].mxu0
      %v746 = vpop.f32.mrb[0].mxu0
      %v747 = vadd.f32 0.0, %v746
      %v748 = vpop.f32.mrb[0].mxu0
      %749 = vmatprep.mubr.bf16.mxu0 0
      %750 = vmatmul.mubr.bf16.gmra.mrb[0].mxu0 %v482
      %v751 = vpop.f32.mrb[0].mxu0
      %v752 = vadd.f32 0.0, %v751
      %v753 = vpop.f32.mrb[0].mxu0
      %v754 = vpop.f32.mrb[0].mxu0
      %v755 = vadd.f32 0.0, %v754
      %v756 = vpop.f32.mrb[0].mxu0
      %757 = vmatprep.mubr.bf16.mxu0 0
      %758 = vmatmul.mubr.bf16.gmra.mrb[0].mxu0 %v485
      %v759 = vpop.f32.mrb[0].mxu0
      %v760 = vadd.f32 0.0, %v759
      %v761 = vpop.f32.mrb[0].mxu0
      %v762 = vpop.f32.mrb[0].mxu0
      %v763 = vadd.f32 0.0, %v762
      %v764 = vpop.f32.mrb[0].mxu0
      %765 = vmatprep.mubr.bf16.mxu0 0
      %766 = vmatmul.mubr.bf16.gmra.mrb[0].mxu0 %v488
      %v767 = vpop.f32.mrb[0].mxu0
      %v768 = vadd.f32 0.0, %v767
      %v769 = vpop.f32.mrb[0].mxu0
      %v770 = vpop.f32.mrb[0].mxu0
      %v771 = vadd.f32 0.0, %v770
      %v772 = vpop.f32.mrb[0].mxu0
      %773 = vmatprep.mubr.bf16.mxu0 0
      %774 = vmatmul.mubr.bf16.gmra.mrb[0].mxu0 %v491
      %v775 = vpop.f32.mrb[0].mxu0
      %v776 = vadd.f32 0.0, %v775
      %v777 = vpop.f32.mrb[0].mxu0
      %v778 = vpop.f32.mrb[0].mxu0
      %v779 = vadd.f32 0.0, %v778
      %v780 = vpop.f32.mrb[0].mxu0
      %781 = vdwg.mxu0
      %vm782 = vcmp.gt.f32.partialorder %v528, 0.0
      %vm783 = vcmp.gt.f32.partialorder %v531, 0.0
      %vm784 = vcmp.gt.f32.partialorder %v536, 0.0
      %vm785 = vcmp.gt.f32.partialorder %v539, 0.0
      %vm786 = vcmp.gt.f32.partialorder %v544, 0.0
      %vm787 = vcmp.gt.f32.partialorder %v547, 0.0
      %vm788 = vcmp.gt.f32.partialorder %v552, 0.0
      %vm789 = vcmp.gt.f32.partialorder %v555, 0.0
      %vm790 = vcmp.gt.f32.partialorder %v560, 0.0
      %vm791 = vcmp.gt.f32.partialorder %v563, 0.0
      %vm792 = vcmp.gt.f32.partialorder %v568, 0.0
      %vm793 = vcmp.gt.f32.partialorder %v571, 0.0
      %vm794 = vcmp.gt.f32.partialorder %v576, 0.0
      %vm795 = vcmp.gt.f32.partialorder %v579, 0.0
      %vm796 = vcmp.gt.f32.partialorder %v584, 0.0
      %vm797 = vcmp.gt.f32.partialorder %v587, 0.0
      %vm798 = vcmp.gt.f32.partialorder %v592, 0.0
      %vm799 = vcmp.gt.f32.partialorder %v595, 0.0
      %vm800 = vcmp.gt.f32.partialorder %v600, 0.0
      %vm801 = vcmp.gt.f32.partialorder %v603, 0.0
      %vm802 = vcmp.gt.f32.partialorder %v608, 0.0
      %vm803 = vcmp.gt.f32.partialorder %v611, 0.0
      %vm804 = vcmp.gt.f32.partialorder %v616, 0.0
      %vm805 = vcmp.gt.f32.partialorder %v619, 0.0
      %vm806 = vcmp.gt.f32.partialorder %v624, 0.0
      %vm807 = vcmp.gt.f32.partialorder %v627, 0.0
      %vm808 = vcmp.gt.f32.partialorder %v632, 0.0
      %vm809 = vcmp.gt.f32.partialorder %v635, 0.0
      %vm810 = vcmp.gt.f32.partialorder %v640, 0.0
      %vm811 = vcmp.gt.f32.partialorder %v643, 0.0
      %vm812 = vcmp.gt.f32.partialorder %v648, 0.0
      %vm813 = vcmp.gt.f32.partialorder %v651, 0.0
      %vm814 = vcmp.gt.f32.partialorder %v656, 0.0
      %vm815 = vcmp.gt.f32.partialorder %v659, 0.0
      %vm816 = vcmp.gt.f32.partialorder %v664, 0.0
      %vm817 = vcmp.gt.f32.partialorder %v667, 0.0
      %vm818 = vcmp.gt.f32.partialorder %v672, 0.0
      %vm819 = vcmp.gt.f32.partialorder %v675, 0.0
      %vm820 = vcmp.gt.f32.partialorder %v680, 0.0
      %vm821 = vcmp.gt.f32.partialorder %v683, 0.0
      %vm822 = vcmp.gt.f32.partialorder %v688, 0.0
      %vm823 = vcmp.gt.f32.partialorder %v691, 0.0
      %vm824 = vcmp.gt.f32.partialorder %v696, 0.0
      %vm825 = vcmp.gt.f32.partialorder %v699, 0.0
      %vm826 = vcmp.gt.f32.partialorder %v704, 0.0
      %vm827 = vcmp.gt.f32.partialorder %v707, 0.0
      %vm828 = vcmp.gt.f32.partialorder %v712, 0.0
      %vm829 = vcmp.gt.f32.partialorder %v715, 0.0
      %vm830 = vcmp.gt.f32.partialorder %v720, 0.0
      %vm831 = vcmp.gt.f32.partialorder %v723, 0.0
      %vm832 = vcmp.gt.f32.partialorder %v728, 0.0
      %vm833 = vcmp.gt.f32.partialorder %v731, 0.0
      %vm834 = vcmp.gt.f32.partialorder %v736, 0.0
      %vm835 = vcmp.gt.f32.partialorder %v739, 0.0
      %vm836 = vcmp.gt.f32.partialorder %v744, 0.0
      %vm837 = vcmp.gt.f32.partialorder %v747, 0.0
      %vm838 = vcmp.gt.f32.partialorder %v752, 0.0
      %vm839 = vcmp.gt.f32.partialorder %v755, 0.0
      %vm840 = vcmp.gt.f32.partialorder %v760, 0.0
      %vm841 = vcmp.gt.f32.partialorder %v763, 0.0
      %vm842 = vcmp.gt.f32.partialorder %v768, 0.0
      %vm843 = vcmp.gt.f32.partialorder %v771, 0.0
      %vm844 = vcmp.gt.f32.partialorder %v776, 0.0
      %vm845 = vcmp.gt.f32.partialorder %v779, 0.0
      %v846 = vmul.f32 %v528, 0.2
      %v847 = vmul.f32 %v531, 0.2
      %v848 = vmul.f32 %v536, 0.2
      %v849 = vmul.f32 %v539, 0.2
      %v850 = vmul.f32 %v544, 0.2
      %v851 = vmul.f32 %v547, 0.2
      %v852 = vmul.f32 %v552, 0.2
      %v853 = vmul.f32 %v555, 0.2
      %v854 = vmul.f32 %v560, 0.2
      %v855 = vmul.f32 %v563, 0.2
      %v856 = vmul.f32 %v568, 0.2
      %v857 = vmul.f32 %v571, 0.2
      %v858 = vmul.f32 %v576, 0.2
      %v859 = vmul.f32 %v579, 0.2
      %v860 = vmul.f32 %v584, 0.2
      %v861 = vmul.f32 %v587, 0.2
      %v862 = vmul.f32 %v592, 0.2
      %v863 = vmul.f32 %v595, 0.2
      %v864 = vmul.f32 %v600, 0.2
      %v865 = vmul.f32 %v603, 0.2
      %v866 = vmul.f32 %v608, 0.2
      %v867 = vmul.f32 %v611, 0.2
      %v868 = vmul.f32 %v616, 0.2
      %v869 = vmul.f32 %v619, 0.2
      %v870 = vmul.f32 %v624, 0.2
      %v871 = vmul.f32 %v627, 0.2
      %v872 = vmul.f32 %v632, 0.2
      %v873 = vmul.f32 %v635, 0.2
      %v874 = vmul.f32 %v640, 0.2
      %v875 = vmul.f32 %v643, 0.2
      %v876 = vmul.f32 %v648, 0.2
      %v877 = vmul.f32 %v651, 0.2
      %v878 = vmul.f32 %v656, 0.2
      %v879 = vmul.f32 %v659, 0.2
      %v880 = vmul.f32 %v664, 0.2
      %v881 = vmul.f32 %v667, 0.2
      %v882 = vmul.f32 %v672, 0.2
      %v883 = vmul.f32 %v675, 0.2
      %v884 = vmul.f32 %v680, 0.2
      %v885 = vmul.f32 %v683, 0.2
      %v886 = vmul.f32 %v688, 0.2
      %v887 = vmul.f32 %v691, 0.2
      %v888 = vmul.f32 %v696, 0.2
      %v889 = vmul.f32 %v699, 0.2
      %v890 = vmul.f32 %v704, 0.2
      %v891 = vmul.f32 %v707, 0.2
      %v892 = vmul.f32 %v712, 0.2
      %v893 = vmul.f32 %v715, 0.2
      %v894 = vmul.f32 %v720, 0.2
      %v895 = vmul.f32 %v723, 0.2
      %v896 = vmul.f32 %v728, 0.2
      %v897 = vmul.f32 %v731, 0.2
      %v898 = vmul.f32 %v736, 0.2
      %v899 = vmul.f32 %v739, 0.2
      %v900 = vmul.f32 %v744, 0.2
      %v901 = vmul.f32 %v747, 0.2
      %v902 = vmul.f32 %v752, 0.2
      %v903 = vmul.f32 %v755, 0.2
      %v904 = vmul.f32 %v760, 0.2
      %v905 = vmul.f32 %v763, 0.2
      %v906 = vmul.f32 %v768, 0.2
      %v907 = vmul.f32 %v771, 0.2
      %v908 = vmul.f32 %v776, 0.2
      %v909 = vmul.f32 %v779, 0.2
      %v910 = vsel %vm782, %v528, %v846
      %v911 = vsel %vm783, %v531, %v847
      %v912 = vsel %vm784, %v536, %v848
      %v913 = vsel %vm785, %v539, %v849
      %v914 = vsel %vm786, %v544, %v850
      %v915 = vsel %vm787, %v547, %v851
      %v916 = vsel %vm788, %v552, %v852
      %v917 = vsel %vm789, %v555, %v853
      %v918 = vsel %vm790, %v560, %v854
      %v919 = vsel %vm791, %v563, %v855
      %v920 = vsel %vm792, %v568, %v856
      %v921 = vsel %vm793, %v571, %v857
      %v922 = vsel %vm794, %v576, %v858
      %v923 = vsel %vm795, %v579, %v859
      %v924 = vsel %vm796, %v584, %v860
      %v925 = vsel %vm797, %v587, %v861
      %v926 = vsel %vm798, %v592, %v862
      %v927 = vsel %vm799, %v595, %v863
      %v928 = vsel %vm800, %v600, %v864
      %v929 = vsel %vm801, %v603, %v865
      %v930 = vsel %vm802, %v608, %v866
      %v931 = vsel %vm803, %v611, %v867
      %v932 = vsel %vm804, %v616, %v868
      %v933 = vsel %vm805, %v619, %v869
      %v934 = vsel %vm806, %v624, %v870
      %v935 = vsel %vm807, %v627, %v871
      %v936 = vsel %vm808, %v632, %v872
      %v937 = vsel %vm809, %v635, %v873
      %v938 = vsel %vm810, %v640, %v874
      %v939 = vsel %vm811, %v643, %v875
      %v940 = vsel %vm812, %v648, %v876
      %v941 = vsel %vm813, %v651, %v877
      %v942 = vsel %vm814, %v656, %v878
      %v943 = vsel %vm815, %v659, %v879
      %v944 = vsel %vm816, %v664, %v880
      %v945 = vsel %vm817, %v667, %v881
      %v946 = vsel %vm818, %v672, %v882
      %v947 = vsel %vm819, %v675, %v883
      %v948 = vsel %vm820, %v680, %v884
      %v949 = vsel %vm821, %v683, %v885
      %v950 = vsel %vm822, %v688, %v886
      %v951 = vsel %vm823, %v691, %v887
      %v952 = vsel %vm824, %v696, %v888
      %v953 = vsel %vm825, %v699, %v889
      %v954 = vsel %vm826, %v704, %v890
      %v955 = vsel %vm827, %v707, %v891
      %v956 = vsel %vm828, %v712, %v892
      %v957 = vsel %vm829, %v715, %v893
      %v958 = vsel %vm830, %v720, %v894
      %v959 = vsel %vm831, %v723, %v895
      %v960 = vsel %vm832, %v728, %v896
      %v961 = vsel %vm833, %v731, %v897
      %v962 = vsel %vm834, %v736, %v898
      %v963 = vsel %vm835, %v739, %v899
      %v964 = vsel %vm836, %v744, %v900
      %v965 = vsel %vm837, %v747, %v901
      %v966 = vsel %vm838, %v752, %v902
      %v967 = vsel %vm839, %v755, %v903
      %v968 = vsel %vm840, %v760, %v904
      %v969 = vsel %vm841, %v763, %v905
      %v970 = vsel %vm842, %v768, %v906
      %v971 = vsel %vm843, %v771, %v907
      %v972 = vsel %vm844, %v776, %v908
      %v973 = vsel %vm845, %v779, %v909
      %v974 = vpack.c.bf16 %v911, %v910
      %v975 = vpack.c.bf16 %v913, %v912
      %v976 = vpack.c.bf16 %v915, %v914
      %v977 = vpack.c.bf16 %v917, %v916
      %v978 = vpack.c.bf16 %v919, %v918
      %v979 = vpack.c.bf16 %v921, %v920
      %v980 = vpack.c.bf16 %v923, %v922
      %v981 = vpack.c.bf16 %v925, %v924
      %v982 = vpack.c.bf16 %v927, %v926
      %v983 = vpack.c.bf16 %v929, %v928
      %v984 = vpack.c.bf16 %v931, %v930
      %v985 = vpack.c.bf16 %v933, %v932
      %v986 = vpack.c.bf16 %v935, %v934
      %v987 = vpack.c.bf16 %v937, %v936
      %v988 = vpack.c.bf16 %v939, %v938
      %v989 = vpack.c.bf16 %v941, %v940
      %v990 = vpack.c.bf16 %v943, %v942
      %v991 = vpack.c.bf16 %v945, %v944
      %v992 = vpack.c.bf16 %v947, %v946
      %v993 = vpack.c.bf16 %v949, %v948
      %v994 = vpack.c.bf16 %v951, %v950
      %v995 = vpack.c.bf16 %v953, %v952
      %v996 = vpack.c.bf16 %v955, %v954
      %v997 = vpack.c.bf16 %v957, %v956
      %v998 = vpack.c.bf16 %v959, %v958
      %v999 = vpack.c.bf16 %v961, %v960
      %v1000 = vpack.c.bf16 %v963, %v962
      %v1001 = vpack.c.bf16 %v965, %v964
      %v1002 = vpack.c.bf16 %v967, %v966
      %v1003 = vpack.c.bf16 %v969, %v968
      %v1004 = vpack.c.bf16 %v971, %v970
      %v1005 = vpack.c.bf16 %v973, %v972
      %v1038 = vunpack.c.l.b16 %v974
      %v1039 = vunpack.c.h.b16 %v974
      %v1040 = vunpack.c.l.b16 %v975
      %v1041 = vunpack.c.h.b16 %v975
      %v1042 = vunpack.c.l.b16 %v976
      %v1043 = vunpack.c.h.b16 %v976
      %v1044 = vunpack.c.l.b16 %v977
      %v1045 = vunpack.c.h.b16 %v977
      %v1046 = vunpack.c.l.b16 %v978
      %v1047 = vunpack.c.h.b16 %v978
      %v1048 = vunpack.c.l.b16 %v979
      %v1049 = vunpack.c.h.b16 %v979
      %v1050 = vunpack.c.l.b16 %v980
      %v1051 = vunpack.c.h.b16 %v980
      %v1052 = vunpack.c.l.b16 %v981
      %v1053 = vunpack.c.h.b16 %v981
      %v1054 = vunpack.c.l.b16 %v982
      %v1055 = vunpack.c.h.b16 %v982
      %v1056 = vunpack.c.l.b16 %v983
      %v1057 = vunpack.c.h.b16 %v983
      %v1058 = vunpack.c.l.b16 %v984
      %v1059 = vunpack.c.h.b16 %v984
      %v1060 = vunpack.c.l.b16 %v985
      %v1061 = vunpack.c.h.b16 %v985
      %v1062 = vunpack.c.l.b16 %v986
      %v1063 = vunpack.c.h.b16 %v986
      %v1064 = vunpack.c.l.b16 %v987
      %v1065 = vunpack.c.h.b16 %v987
      %v1066 = vunpack.c.l.b16 %v988
      %v1067 = vunpack.c.h.b16 %v988
      %v1068 = vunpack.c.l.b16 %v989
      %v1069 = vunpack.c.h.b16 %v989
      %v1070 = vunpack.c.l.b16 %v990
      %v1071 = vunpack.c.h.b16 %v990
      %v1072 = vunpack.c.l.b16 %v991
      %v1073 = vunpack.c.h.b16 %v991
      %v1074 = vunpack.c.l.b16 %v992
      %v1075 = vunpack.c.h.b16 %v992
      %v1076 = vunpack.c.l.b16 %v993
      %v1077 = vunpack.c.h.b16 %v993
      %v1078 = vunpack.c.l.b16 %v994
      %v1079 = vunpack.c.h.b16 %v994
      %v1080 = vunpack.c.l.b16 %v995
      %v1081 = vunpack.c.h.b16 %v995
      %v1082 = vunpack.c.l.b16 %v996
      %v1083 = vunpack.c.h.b16 %v996
      %v1084 = vunpack.c.l.b16 %v997
      %v1085 = vunpack.c.h.b16 %v997
      %v1086 = vunpack.c.l.b16 %v998
      %v1087 = vunpack.c.h.b16 %v998
      %v1088 = vunpack.c.l.b16 %v999
      %v1089 = vunpack.c.h.b16 %v999
      %v1090 = vunpack.c.l.b16 %v1000
      %v1091 = vunpack.c.h.b16 %v1000
      %v1092 = vunpack.c.l.b16 %v1001
      %v1093 = vunpack.c.h.b16 %v1001
      %v1094 = vunpack.c.l.b16 %v1002
      %v1095 = vunpack.c.h.b16 %v1002
      %v1096 = vunpack.c.l.b16 %v1003
      %v1097 = vunpack.c.h.b16 %v1003
      %v1098 = vunpack.c.l.b16 %v1004
      %v1099 = vunpack.c.h.b16 %v1004
      %v1100 = vunpack.c.l.b16 %v1005
      %v1101 = vunpack.c.h.b16 %v1005
      %v1102 = vpack.c.b16 %v1038, %v1038
      %v1103 = vpack.c.b16 %v1039, %v1039
      %v1104 = vpack.c.b16 %v1040, %v1040
      %v1105 = vpack.c.b16 %v1041, %v1041
      %v1106 = vpack.c.b16 %v1042, %v1042
      %v1107 = vpack.c.b16 %v1043, %v1043
      %v1108 = vpack.c.b16 %v1044, %v1044
      %v1109 = vpack.c.b16 %v1045, %v1045
      %v1110 = vpack.c.b16 %v1046, %v1046
      %v1111 = vpack.c.b16 %v1047, %v1047
      %v1112 = vpack.c.b16 %v1048, %v1048
      %v1113 = vpack.c.b16 %v1049, %v1049
      %v1114 = vpack.c.b16 %v1050, %v1050
      %v1115 = vpack.c.b16 %v1051, %v1051
      %v1116 = vpack.c.b16 %v1052, %v1052
      %v1117 = vpack.c.b16 %v1053, %v1053
      %v1118 = vpack.c.b16 %v1054, %v1054
      %v1119 = vpack.c.b16 %v1055, %v1055
      %v1120 = vpack.c.b16 %v1056, %v1056
      %v1121 = vpack.c.b16 %v1057, %v1057
      %v1122 = vpack.c.b16 %v1058, %v1058
      %v1123 = vpack.c.b16 %v1059, %v1059
      %v1124 = vpack.c.b16 %v1060, %v1060
      %v1125 = vpack.c.b16 %v1061, %v1061
      %v1126 = vpack.c.b16 %v1062, %v1062
      %v1127 = vpack.c.b16 %v1063, %v1063
      %v1128 = vpack.c.b16 %v1064, %v1064
      %v1129 = vpack.c.b16 %v1065, %v1065
      %v1130 = vpack.c.b16 %v1066, %v1066
      %v1131 = vpack.c.b16 %v1067, %v1067
      %v1132 = vpack.c.b16 %v1068, %v1068
      %v1133 = vpack.c.b16 %v1069, %v1069
      %v1134 = vpack.c.b16 %v1070, %v1070
      %v1135 = vpack.c.b16 %v1071, %v1071
      %v1136 = vpack.c.b16 %v1072, %v1072
      %v1137 = vpack.c.b16 %v1073, %v1073
      %v1138 = vpack.c.b16 %v1074, %v1074
      %v1139 = vpack.c.b16 %v1075, %v1075
      %v1140 = vpack.c.b16 %v1076, %v1076
      %v1141 = vpack.c.b16 %v1077, %v1077
      %v1142 = vpack.c.b16 %v1078, %v1078
      %v1143 = vpack.c.b16 %v1079, %v1079
      %v1144 = vpack.c.b16 %v1080, %v1080
      %v1145 = vpack.c.b16 %v1081, %v1081
      %v1146 = vpack.c.b16 %v1082, %v1082
      %v1147 = vpack.c.b16 %v1083, %v1083
      %v1148 = vpack.c.b16 %v1084, %v1084
      %v1149 = vpack.c.b16 %v1085, %v1085
      %v1150 = vpack.c.b16 %v1086, %v1086
      %v1151 = vpack.c.b16 %v1087, %v1087
      %v1152 = vpack.c.b16 %v1088, %v1088
      %v1153 = vpack.c.b16 %v1089, %v1089
      %v1154 = vpack.c.b16 %v1090, %v1090
      %v1155 = vpack.c.b16 %v1091, %v1091
      %v1156 = vpack.c.b16 %v1092, %v1092
      %v1157 = vpack.c.b16 %v1093, %v1093
      %v1158 = vpack.c.b16 %v1094, %v1094
      %v1159 = vpack.c.b16 %v1095, %v1095
      %v1160 = vpack.c.b16 %v1096, %v1096
      %v1161 = vpack.c.b16 %v1097, %v1097
      %v1162 = vpack.c.b16 %v1098, %v1098
      %v1163 = vpack.c.b16 %v1099, %v1099
      %v1164 = vpack.c.b16 %v1100, %v1100
      %v1165 = vpack.c.b16 %v1101, %v1101
      %1230 = vst [vmem:[%s145] sm:$0xf] %v1102
      %1231 = vst [vmem:[%s145 + $0x4] sm:$0xf] %v1103
      %1232 = vst [vmem:[%s145 + $0x8] sm:$0xf] %v1104
      %1233 = vst [vmem:[%s145 + $0xc] sm:$0xf] %v1105
      %1234 = vst [vmem:[%s145 + $0x10] sm:$0xf] %v1106
      %1235 = vst [vmem:[%s145 + $0x14] sm:$0xf] %v1107
      %1236 = vst [vmem:[%s145 + $0x18] sm:$0xf] %v1108
      %1237 = vst [vmem:[%s145 + $0x1c] sm:$0xf] %v1109
      %1238 = vst [vmem:[%s145 + $0x20] sm:$0xf] %v1110
      %1239 = vst [vmem:[%s145 + $0x24] sm:$0xf] %v1111
      %1240 = vst [vmem:[%s145 + $0x28] sm:$0xf] %v1112
      %1241 = vst [vmem:[%s145 + $0x2c] sm:$0xf] %v1113
      %1242 = vst [vmem:[%s145 + $0x30] sm:$0xf] %v1114
      %1243 = vst [vmem:[%s145 + $0x34] sm:$0xf] %v1115
      %1244 = vst [vmem:[%s145 + $0x38] sm:$0xf] %v1116
      %1245 = vst [vmem:[%s145 + $0x3c] sm:$0xf] %v1117
      %1246 = vst [vmem:[%s145 + $0x40] sm:$0xf] %v1118
      %1247 = vst [vmem:[%s145 + $0x44] sm:$0xf] %v1119
      %1248 = vst [vmem:[%s145 + $0x48] sm:$0xf] %v1120
      %1249 = vst [vmem:[%s145 + $0x4c] sm:$0xf] %v1121
      %1250 = vst [vmem:[%s145 + $0x50] sm:$0xf] %v1122
      %1251 = vst [vmem:[%s145 + $0x54] sm:$0xf] %v1123
      %1252 = vst [vmem:[%s145 + $0x58] sm:$0xf] %v1124
      %1253 = vst [vmem:[%s145 + $0x5c] sm:$0xf] %v1125
      %1254 = vst [vmem:[%s145 + $0x60] sm:$0xf] %v1126
      %1255 = vst [vmem:[%s145 + $0x64] sm:$0xf] %v1127
      %1256 = vst [vmem:[%s145 + $0x68] sm:$0xf] %v1128
      %1257 = vst [vmem:[%s145 + $0x6c] sm:$0xf] %v1129
      %1258 = vst [vmem:[%s145 + $0x70] sm:$0xf] %v1130
      %1259 = vst [vmem:[%s145 + $0x74] sm:$0xf] %v1131
      %1260 = vst [vmem:[%s145 + $0x78] sm:$0xf] %v1132
      %1261 = vst [vmem:[%s145 + $0x7c] sm:$0xf] %v1133
      %1262 = vst [vmem:[%s145 + $0x80] sm:$0xf] %v1134
      %1263 = vst [vmem:[%s145 + $0x84] sm:$0xf] %v1135
      %1264 = vst [vmem:[%s145 + $0x88] sm:$0xf] %v1136
      %1265 = vst [vmem:[%s145 + $0x8c] sm:$0xf] %v1137
      %1266 = vst [vmem:[%s145 + $0x90] sm:$0xf] %v1138
      %1267 = vst [vmem:[%s145 + $0x94] sm:$0xf] %v1139
      %1268 = vst [vmem:[%s145 + $0x98] sm:$0xf] %v1140
      %1269 = vst [vmem:[%s145 + $0x9c] sm:$0xf] %v1141
      %1270 = vst [vmem:[%s145 + $0xa0] sm:$0xf] %v1142
      %1271 = vst [vmem:[%s145 + $0xa4] sm:$0xf] %v1143
      %1272 = vst [vmem:[%s145 + $0xa8] sm:$0xf] %v1144
      %1273 = vst [vmem:[%s145 + $0xac] sm:$0xf] %v1145
      %1274 = vst [vmem:[%s145 + $0xb0] sm:$0xf] %v1146
      %1275 = vst [vmem:[%s145 + $0xb4] sm:$0xf] %v1147
      %1276 = vst [vmem:[%s145 + $0xb8] sm:$0xf] %v1148
      %1277 = vst [vmem:[%s145 + $0xbc] sm:$0xf] %v1149
      %1278 = vst [vmem:[%s145 + $0xc0] sm:$0xf] %v1150
      %1279 = vst [vmem:[%s145 + $0xc4] sm:$0xf] %v1151
      %1280 = vst [vmem:[%s145 + $0xc8] sm:$0xf] %v1152
      %1281 = vst [vmem:[%s145 + $0xcc] sm:$0xf] %v1153
      %1282 = vst [vmem:[%s145 + $0xd0] sm:$0xf] %v1154
      %1283 = vst [vmem:[%s145 + $0xd4] sm:$0xf] %v1155
      %1284 = vst [vmem:[%s145 + $0xd8] sm:$0xf] %v1156
      %1285 = vst [vmem:[%s145 + $0xdc] sm:$0xf] %v1157
      %1286 = vst [vmem:[%s145 + $0xe0] sm:$0xf] %v1158
      %1287 = vst [vmem:[%s145 + $0xe4] sm:$0xf] %v1159
      %1288 = vst [vmem:[%s145 + $0xe8] sm:$0xf] %v1160
      %1289 = vst [vmem:[%s145 + $0xec] sm:$0xf] %v1161
      %1290 = vst [vmem:[%s145 + $0xf0] sm:$0xf] %v1162
      %1291 = vst [vmem:[%s145 + $0xf4] sm:$0xf] %v1163
      %1292 = vst [vmem:[%s145 + $0xf8] sm:$0xf] %v1164
      %1293 = vst [vmem:[%s145 + $0xfc] sm:$0xf] %v1165
      %s1294 = smul.u32 64, %s13
      %p1295 = scmp.lt.s32.totalorder %s1294, 255
      %s1296 = scalar_select %p1295, %s1294, 255
      %s1297 = smul.addr %s1296, 4
      %s1298 = scalar_lea.vmem %s2, %s1297
      // Predicated region
      $region29: #{discriminator_forward.5} parent=27 // pred_check
        %p1299 = pneg %p78
      $region30: #{discriminator_forward.5} parent=27 // pred_check_branch
        %1301 = sbr.rel (%p1299) target = $region32
      $region31: #{discriminator_forward.5} parent=27 // pred_region
        %s1302 = smul.u32 64, %s13
      $region32: #{discriminator_forward.5} parent=27 // pred_fallthru
        _
    $region28: #{discriminator_forward.5} parent=5 // pred_fallthru
      _
    %p1303 = scmp.le.s32.totalorder 2, %s8
    // Predicated region
    $region33: #{discriminator_forward.5} parent=5 // pred_check
      %p1304 = pneg %p1303
    $region34: #{discriminator_forward.5} parent=5 // pred_check_branch
      %1306 = sbr.rel (%p1304) target = $region36
    $region35: #{discriminator_forward.5} parent=5 // pred_region
      %s1307 = ssub.s32 %s8, 2
      // Predicated region
      $region37: #{discriminator_forward.5} parent=35 // pred_check
        %p1308 = pneg %p84
      $region38: #{discriminator_forward.5} parent=35 // pred_check_branch
        %1310 = sbr.rel (%p1308) target = $region40
      $region39: #{discriminator_forward.5} parent=35 // pred_region
        %s1311 = smul.u32 64, %s14
        %p1312 = scmp.lt.s32.totalorder %s1311, 255
        %s1313 = scalar_select %p1312, %s1311, 255
        %s1314 = smul.addr %s1313, 4
        %s1315 = scalar_lea.vmem %s2, %s1314
      $region40: #{discriminator_forward.5} parent=35 // pred_fallthru
        _
    $region36: #{discriminator_forward.5} parent=5 // pred_fallthru
      _
  $region6: #{discriminator_forward.5} parent=0 // loop_footer
    %s12 = sadd.s32 1, %s8
  $region7: #{discriminator_forward.5} parent=0 // loop_footer_branch
    %7 = sbr.rel target = $region3
  $region8: #{discriminator_forward.5} parent=0 // loop_exit
    _

// kernel: discriminator_forward.6
$region0: #{discriminator_forward.6}
  #allocation0 [shape = 'u32[]', space=smem, size = 0x4, offset = 0x4, fixed_abs, tag = 'smem constant byte address 0x4 - core index']
  #allocation1 [shape = 'u32[144,128]{1,0:T(1,128)}', space=vmem, size = 0x12000, scoped, tag = 'internal scratch']
  %s0 = inlined_call_operand.vmem [shape: bf16[2,272,128], index: 0, kind: input, shape index: {}]
  %s1 = inlined_call_operand.vmem [shape: bf16[2,128,128], index: 1, kind: input, shape index: {}]
  %s2 = inlined_call_operand.vmem [shape: bf16[2,256,128], index: 2, kind: output, shape index: {0}]
  %s3 = inlined_call_operand.vmem [shape: f32[2,1,128], index: 3, kind: output, shape index: {1}]
  %s4 = inlined_call_operand.vmem [shape: f32[2,1,128], index: 4, kind: output, shape index: {2}]
  %5 = xla_tuple %s2, %s3, %s4
  %s6 = sld [smem:[#allocation0]]
  $region61: #{discriminator_forward.6} parent=0
    _
  %s8 = ssub.s32 1, %s6
  %s9 = scalar_select 0, %s8, %s6
  loop: start=0, step=1, limit=6
  $region2: #{discriminator_forward.6} parent=0 // loop_pre_header
    _
  $region3: #{discriminator_forward.6} parent=0 // loop_header
    %s11 = sphi 0, %s15
    %p12 = scmp.ge.s32.totalorder %s11, 6
    %s18 = sphi 0, %s30
    %s19 = sphi 0, %s26
    %s20 = sphi 0, %s18
    %s21 = sphi 0, %s19
    %s22 = sphi 0, %s20
    %s23 = sphi 0, %s21
    %s33 = sphi 0, %s35
    %s36 = sphi 0, %s33
    %s37 = sphi 0, %s36
    %s53 = sphi 0, %s37
    %s57 = sphi 0, %s57
    %s59 = sphi 0, %s57
    %s60 = sphi 0, %s59
    %s74 = sphi 0, %s60
    %s82 = sphi 0, %s84
    %s85 = sphi 0, %s82
    %s86 = sphi 0, %s85
    %s102 = sphi 0, %s86
    %s108 = sphi 0, %s110
    %s111 = sphi 0, %s108
    %s112 = sphi 0, %s111
    %s128 = sphi 0, %s112
    %s134 = sphi 0, %s136
    %s137 = sphi 0, %s134
    %s138 = sphi 0, %s137
    %s154 = sphi 0, %s138
  $region4: #{discriminator_forward.6} parent=0 // loop_header_branch
    %14 = sbr.rel (%p12) target = $region8
  $region5: #{discriminator_forward.6} parent=0 // loop_body
    %s16 = ssub.s32 %s11, 1
    %s17 = ssub.s32 %s11, 2
    %s24 = sadd.s32 1, %s19
    %p25 = scmp.ge.s32.totalorder %s24, 2
    %s26 = scalar_select %p25, 0, %s24
    %s27 = sadd.s32 1, %s18
    %s28 = scalar_select %p25, %s27, %s18
    %p29 = scmp.ge.s32.totalorder %s28, 2
    %s30 = scalar_select %p29, 0, %s28
    %s31 = ssub.s32 %s18, %s30
    %p32 = scmp.eq.s32.totalorder %s31, 0
    %s34 = sadd.s32 %s33, 1
    %s35 = scalar_select %p32, %s33, %s34
    %p38 = pneg %p32
    %p39 = scmp.eq.s32.totalorder %s11, 3
    %p40 = por %p38, %p39
    %p41 = scmp.ne.s32.totalorder %s33, %s36
    %p42 = scmp.eq.s32.totalorder %s11, 0
    %p43 = por %p41, %p42
    %p44 = scmp.ne.s32.totalorder %s33, %s36
    %p45 = scmp.eq.s32.totalorder %s16, 3
    %p46 = por %p44, %p45
    %p47 = scmp.ne.s32.totalorder %s36, %s37
    %p48 = scmp.eq.s32.totalorder %s16, 0
    %p49 = por %p47, %p48
    %p50 = scmp.ne.s32.totalorder %s36, %s37
    %p51 = scmp.eq.s32.totalorder %s17, 3
    %p52 = por %p50, %p51
    %p54 = scmp.ne.s32.totalorder %s37, %s53
    %p55 = scmp.eq.s32.totalorder %s17, 0
    %p56 = por %p54, %p55
    %s58 = sadd.s32 %s57, 1
    %p61 = scmp.eq.s32.totalorder %s11, 3
    %p62 = scmp.ne.s32.totalorder %s57, %s59
    %p63 = scmp.eq.s32.totalorder %s11, 0
    %p64 = por %p62, %p63
    %p65 = scmp.ne.s32.totalorder %s57, %s59
    %p66 = scmp.eq.s32.totalorder %s16, 3
    %p67 = por %p65, %p66
    %p68 = scmp.ne.s32.totalorder %s59, %s60
    %p69 = scmp.eq.s32.totalorder %s16, 0
    %p70 = por %p68, %p69
    %p71 = scmp.ne.s32.totalorder %s59, %s60
    %p72 = scmp.eq.s32.totalorder %s17, 3
    %p73 = por %p71, %p72
    %p75 = scmp.ne.s32.totalorder %s60, %s74
    %p76 = scmp.eq.s32.totalorder %s17, 0
    %p77 = por %p75, %p76
    %s78 = ssub.s32 %s18, %s30
    %s79 = ssub.s32 %s19, %s26
    %s80 = sor.u32 %s78, %s79
    %p81 = scmp.eq.s32.totalorder %s80, 0
    %s83 = sadd.s32 %s82, 1
    %s84 = scalar_select %p81, %s82, %s83
    %p87 = pneg %p81
    %p88 = scmp.eq.s32.totalorder %s11, 3
    %p89 = por %p87, %p88
    %p90 = scmp.ne.s32.totalorder %s82, %s85
    %p91 = scmp.eq.s32.totalorder %s11, 0
    %p92 = por %p90, %p91
    %p93 = scmp.ne.s32.totalorder %s82, %s85
    %p94 = scmp.eq.s32.totalorder %s16, 3
    %p95 = por %p93, %p94
    %p96 = scmp.ne.s32.totalorder %s85, %s86
    %p97 = scmp.eq.s32.totalorder %s16, 0
    %p98 = por %p96, %p97
    %p99 = scmp.ne.s32.totalorder %s85, %s86
    %p100 = scmp.eq.s32.totalorder %s17, 3
    %p101 = por %p99, %p100
    %p103 = scmp.ne.s32.totalorder %s86, %s102
    %p104 = scmp.eq.s32.totalorder %s17, 0
    %p105 = por %p103, %p104
    %s106 = ssub.s32 %s18, %s30
    %p107 = scmp.eq.s32.totalorder %s106, 0
    %s109 = sadd.s32 %s108, 1
    %s110 = scalar_select %p107, %s108, %s109
    %p113 = pneg %p107
    %p114 = scmp.eq.s32.totalorder %s11, 3
    %p115 = por %p113, %p114
    %p116 = scmp.ne.s32.totalorder %s108, %s111
    %p117 = scmp.eq.s32.totalorder %s11, 0
    %p118 = por %p116, %p117
    %p119 = scmp.ne.s32.totalorder %s108, %s111
    %p120 = scmp.eq.s32.totalorder %s16, 3
    %p121 = por %p119, %p120
    %p122 = scmp.ne.s32.totalorder %s111, %s112
    %p123 = scmp.eq.s32.totalorder %s16, 0
    %p124 = por %p122, %p123
    %p125 = scmp.ne.s32.totalorder %s111, %s112
    %p126 = scmp.eq.s32.totalorder %s17, 3
    %p127 = por %p125, %p126
    %p129 = scmp.ne.s32.totalorder %s112, %s128
    %p130 = scmp.eq.s32.totalorder %s17, 0
    %p131 = por %p129, %p130
    %s132 = ssub.s32 %s18, %s30
    %p133 = scmp.eq.s32.totalorder %s132, 0
    %s135 = sadd.s32 %s134, 1
    %s136 = scalar_select %p133, %s134, %s135
    %p139 = pneg %p133
    %p140 = scmp.eq.s32.totalorder %s11, 3
    %p141 = por %p139, %p140
    %p142 = scmp.ne.s32.totalorder %s134, %s137
    %p143 = scmp.eq.s32.totalorder %s11, 0
    %p144 = por %p142, %p143
    %p145 = scmp.ne.s32.totalorder %s134, %s137
    %p146 = scmp.eq.s32.totalorder %s16, 3
    %p147 = por %p145, %p146
    %p148 = scmp.ne.s32.totalorder %s137, %s138
    %p149 = scmp.eq.s32.totalorder %s16, 0
    %p150 = por %p148, %p149
    %p151 = scmp.ne.s32.totalorder %s137, %s138
    %p152 = scmp.eq.s32.totalorder %s17, 3
    %p153 = por %p151, %p152
    %p155 = scmp.ne.s32.totalorder %s138, %s154
    %p156 = scmp.eq.s32.totalorder %s17, 0
    %p157 = por %p155, %p156
    %p158 = scmp.le.s32.totalorder 1, %s11
    %p159 = scmp.lt.s32.totalorder %s11, 5
    %p160 = pnand %p158, %p159
    %p161 = pneg %p160
    // Predicated region
    $region9: #{discriminator_forward.6} parent=5 // pred_check
      _
    $region10: #{discriminator_forward.6} parent=5 // pred_check_branch
      %163 = sbr.rel (%p160) target = $region12
    $region11: #{discriminator_forward.6} parent=5 // pred_region
      %s164 = ssub.s32 %s11, 1
      // Predicated region
      $region13: #{discriminator_forward.6} parent=11 // pred_check
        %p165 = pneg %p70
      $region14: #{discriminator_forward.6} parent=11 // pred_check_branch
        %167 = sbr.rel (%p165) target = $region16
      $region15: #{discriminator_forward.6} parent=11 // pred_region
        _
      $region16: #{discriminator_forward.6} parent=11 // pred_fallthru
        _
    $region12: #{discriminator_forward.6} parent=5 // pred_fallthru
      _
    %p168 = scmp.lt.s32.totalorder %s11, 4
    // Predicated region
    $region17: #{discriminator_forward.6} parent=5 // pred_check
      %p169 = pneg %p168
    $region18: #{discriminator_forward.6} parent=5 // pred_check_branch
      %171 = sbr.rel (%p169) target = $region20
    $region19: #{discriminator_forward.6} parent=5 // pred_region
      // Predicated region
      $region21: #{discriminator_forward.6} parent=19 // pred_check
        %p172 = pneg %p43
      $region22: #{discriminator_forward.6} parent=19 // pred_check_branch
        %174 = sbr.rel (%p172) target = $region24
      $region23: #{discriminator_forward.6} parent=19 // pred_region
        %p175 = scmp.lt.s32.totalorder %s18, 1
        %s176 = scalar_select %p175, %s18, 1
        %s177 = smul.addr %s176, 34
        %s178 = smul.addr %s177, 4
        %s179 = scalar_lea.vmem %s0, %s178
      $region24: #{discriminator_forward.6} parent=19 // pred_fallthru
        _
    $region20: #{discriminator_forward.6} parent=5 // pred_fallthru
      _
    %p180 = scmp.le.s32.totalorder 1, %s11
    %p181 = scmp.lt.s32.totalorder %s11, 5
    %p182 = pnand %p180, %p181
    %p183 = pneg %p182
    // Predicated region
    $region25: #{discriminator_forward.6} parent=5 // pred_check
      _
    $region26: #{discriminator_forward.6} parent=5 // pred_check_branch
      %185 = sbr.rel (%p182) target = $region28
    $region27: #{discriminator_forward.6} parent=5 // pred_region
      %s186 = ssub.s32 %s11, 1
      %p187 = scmp.lt.s32.totalorder %s20, 1
      %s188 = scalar_select %p187, %s20, 1
      %s189 = smul.addr %s188, 34
      %s190 = smul.addr %s189, 4
      %s191 = scalar_lea.vmem %s0, %s190
      %p192 = pneg %p49
      %p193 = pneg %p46
      %p194 = pneg %p70
      %p195 = pneg %p67
      %p196 = pneg %p98
      %p197 = pneg %p95
      %s198 = smul.u32 16, %s21
      %p199 = scmp.lt.s32.totalorder %s20, 1
      %s200 = scalar_select %p199, %s20, 1
      %p201 = scmp.lt.s32.totalorder %s198, 31
      %s202 = scalar_select %p201, %s198, 31
      %s203 = smul.addr %s200, 32
      %s204 = sadd.s32 %s202, %s203
      %s205 = smul.addr %s204, 4
      %s206 = scalar_lea.vmem %s2, %s205
      %p207 = pneg %p124
      %p208 = pneg %p121
      %p209 = scmp.lt.s32.totalorder %s20, 1
      %s210 = scalar_select %p209, %s20, 1
      %s211 = scalar_lea.vmem %s3, %s210
      %p212 = pneg %p150
      %p213 = pneg %p147
      %p214 = scmp.lt.s32.totalorder %s20, 1
      %s215 = scalar_select %p214, %s20, 1
      %s216 = scalar_lea.vmem %s4, %s215
      %p217 = scmp.lt.s32.totalorder %s20, 1
      %s218 = scalar_select %p217, %s20, 1
      %s219 = smul.addr %s218, 34
      %s220 = smul.addr %s219, 4
      %s221 = scalar_lea.vmem %s0, %s220
      %s222 = smul.u32 16, %s21
      %p223 = scmp.lt.s32.totalorder %s20, 1
      %s224 = scalar_select %p223, %s20, 1
      %p225 = scmp.lt.s32.totalorder %s222, 31
      %s226 = scalar_select %p225, %s222, 31
      %s227 = smul.addr %s224, 32
      %s228 = sadd.s32 %s226, %s227
      %s229 = smul.addr %s228, 4
      %s230 = scalar_lea.vmem %s2, %s229
      %s231 = smul.u32 16, %s21
      %p232 = scmp.lt.s32.totalorder %s20, 1
      %s233 = scalar_select %p232, %s20, 1
      %s234 = scalar_lea.vmem %s3, %s233
      %p235 = scmp.lt.s32.totalorder %s20, 1
      %s236 = scalar_select %p235, %s20, 1
      %s237 = scalar_lea.vmem %s4, %s236
      %s239 = smul.u32 %s21, 128
      %s240 = sadd.s32 %s239, 16
      %s241 = sshra.s32 %s239, 3
      %s242 = sand.u32 %s239, 7
      %s243 = smul.addr %s241, 4
      %s244 = scalar_lea.vmem %s221, %s243
      %v245 = vld [vmem:[%s244] sm:$0xf]
      %v246 = vld [vmem:[%s244 + $0x4] sm:$0xf]
      %v247 = vld [vmem:[%s244 + $0x8] sm:$0xf]
      %v248 = vld [vmem:[%s244 + $0xc] sm:$0xf]
      %v249 = vld [vmem:[%s244 + $0x10] sm:$0xf]
      %v250 = vld [vmem:[%s244 + $0x14] sm:$0xf]
      %v251 = vld [vmem:[%s244 + $0x18] sm:$0xf]
      %v252 = vld [vmem:[%s244 + $0x1c] sm:$0xf]
      %v253 = vld [vmem:[%s244 + $0x20] sm:$0xf]
      %v254 = vld [vmem:[%s244 + $0x24] sm:$0xf]
      %v255 = vld [vmem:[%s244 + $0x28] sm:$0xf]
      %v256 = vld [vmem:[%s244 + $0x2c] sm:$0xf]
      %v257 = vld [vmem:[%s244 + $0x30] sm:$0xf]
      %v258 = vld [vmem:[%s244 + $0x34] sm:$0xf]
      %v259 = vld [vmem:[%s244 + $0x38] sm:$0xf]
      %v260 = vld [vmem:[%s244 + $0x3c] sm:$0xf]
      %v261 = vld [vmem:[%s1] sm:$0xf]
      %v262 = vld [vmem:[%s1 + $0x4] sm:$0xf]
      %v263 = vld [vmem:[%s1 + $0x8] sm:$0xf]
      %v264 = vld [vmem:[%s1 + $0xc] sm:$0xf]
      %v265 = vld [vmem:[%s1 + $0x10] sm:$0xf]
      %v266 = vld [vmem:[%s1 + $0x14] sm:$0xf]
      %v267 = vld [vmem:[%s1 + $0x18] sm:$0xf]
      %v268 = vld [vmem:[%s1 + $0x1c] sm:$0xf]
      %v269 = vld [vmem:[%s1 + $0x20] sm:$0xf]
      %v270 = vld [vmem:[%s1 + $0x24] sm:$0xf]
      %v271 = vld [vmem:[%s1 + $0x28] sm:$0xf]
      %v272 = vld [vmem:[%s1 + $0x2c] sm:$0xf]
      %v273 = vld [vmem:[%s1 + $0x30] sm:$0xf]
      %v274 = vld [vmem:[%s1 + $0x34] sm:$0xf]
      %v275 = vld [vmem:[%s1 + $0x38] sm:$0xf]
      %v276 = vld [vmem:[%s1 + $0x3c] sm:$0xf]
      %s277 = sshra.s32 %s240, 3
      %s278 = sand.u32 %s240, 7
      %s279 = smul.addr %s277, 4
      %s280 = scalar_lea.vmem %s221, %s279
      %v281 = vld [vmem:[%s280] sm:$0xf]
      %v282 = vld [vmem:[%s280 + $0x4] sm:$0xf]
      %v283 = vld [vmem:[%s280 + $0x8] sm:$0xf]
      %v284 = vld [vmem:[%s280 + $0xc] sm:$0xf]
      %v285 = vld [vmem:[%s280 + $0x10] sm:$0xf]
      %v286 = vld [vmem:[%s280 + $0x14] sm:$0xf]
      %v287 = vld [vmem:[%s280 + $0x18] sm:$0xf]
      %v288 = vld [vmem:[%s280 + $0x1c] sm:$0xf]
      %v289 = vld [vmem:[%s280 + $0x20] sm:$0xf]
      %v290 = vld [vmem:[%s280 + $0x24] sm:$0xf]
      %v291 = vld [vmem:[%s280 + $0x28] sm:$0xf]
      %v292 = vld [vmem:[%s280 + $0x2c] sm:$0xf]
      %v293 = vld [vmem:[%s280 + $0x30] sm:$0xf]
      %v294 = vld [vmem:[%s280 + $0x34] sm:$0xf]
      %v295 = vld [vmem:[%s280 + $0x38] sm:$0xf]
      %v296 = vld [vmem:[%s280 + $0x3c] sm:$0xf]
      %s297 = scalar_lea.vmem %s1, 64
      %v298 = vld [vmem:[%s297] sm:$0xf]
      %v299 = vld [vmem:[%s297 + $0x4] sm:$0xf]
      %v300 = vld [vmem:[%s297 + $0x8] sm:$0xf]
      %v301 = vld [vmem:[%s297 + $0xc] sm:$0xf]
      %v302 = vld [vmem:[%s297 + $0x10] sm:$0xf]
      %v303 = vld [vmem:[%s297 + $0x14] sm:$0xf]
      %v304 = vld [vmem:[%s297 + $0x18] sm:$0xf]
      %v305 = vld [vmem:[%s297 + $0x1c] sm:$0xf]
      %v306 = vld [vmem:[%s297 + $0x20] sm:$0xf]
      %v307 = vld [vmem:[%s297 + $0x24] sm:$0xf]
      %v308 = vld [vmem:[%s297 + $0x28] sm:$0xf]
      %v309 = vld [vmem:[%s297 + $0x2c] sm:$0xf]
      %v310 = vld [vmem:[%s297 + $0x30] sm:$0xf]
      %v311 = vld [vmem:[%s297 + $0x34] sm:$0xf]
      %v312 = vld [vmem:[%s297 + $0x38] sm:$0xf]
      %v313 = vld [vmem:[%s297 + $0x3c] sm:$0xf]
      %v330 = vunpack.c.l.b16 %v281
      %v331 = vunpack.c.l.b16 %v282
      %v332 = vunpack.c.l.b16 %v283
      %v333 = vunpack.c.l.b16 %v284
      %v334 = vunpack.c.l.b16 %v285
      %v335 = vunpack.c.l.b16 %v286
      %v336 = vunpack.c.l.b16 %v287
      %v337 = vunpack.c.l.b16 %v288
      %v338 = vunpack.c.l.b16 %v289
      %v339 = vunpack.c.l.b16 %v290
      %v340 = vunpack.c.l.b16 %v291
      %v341 = vunpack.c.l.b16 %v292
      %v342 = vunpack.c.l.b16 %v293
      %v343 = vunpack.c.l.b16 %v294
      %v344 = vunpack.c.l.b16 %v295
      %v345 = vunpack.c.l.b16 %v296
      %v346 = vpack.c.b16 %v331, %v330
      %v347 = vpack.c.b16 %v333, %v332
      %v348 = vpack.c.b16 %v335, %v334
      %v349 = vpack.c.b16 %v337, %v336
      %v350 = vpack.c.b16 %v339, %v338
      %v351 = vpack.c.b16 %v341, %v340
      %v352 = vpack.c.b16 %v343, %v342
      %v353 = vpack.c.b16 %v345, %v344
      %v378 = vunpack.c.l.b16 %v298
      %v379 = vunpack.c.l.b16 %v299
      %v380 = vunpack.c.l.b16 %v300
      %v381 = vunpack.c.l.b16 %v301
      %v382 = vunpack.c.l.b16 %v302
      %v383 = vunpack.c.l.b16 %v303
      %v384 = vunpack.c.l.b16 %v304
      %v385 = vunpack.c.l.b16 %v305
      %v386 = vunpack.c.l.b16 %v306
      %v387 = vunpack.c.l.b16 %v307
      %v388 = vunpack.c.l.b16 %v308
      %v389 = vunpack.c.l.b16 %v309
      %v390 = vunpack.c.l.b16 %v310
      %v391 = vunpack.c.l.b16 %v311
      %v392 = vunpack.c.l.b16 %v312
      %v393 = vunpack.c.l.b16 %v313
      %v394 = vpack.c.b16 %v379, %v378
      %v395 = vpack.c.b16 %v381, %v380
      %v396 = vpack.c.b16 %v383, %v382
      %v397 = vpack.c.b16 %v385, %v384
      %v398 = vpack.c.b16 %v387, %v386
      %v399 = vpack.c.b16 %v389, %v388
      %v400 = vpack.c.b16 %v391, %v390
      %v401 = vpack.c.b16 %v393, %v392
      %410 = vmatprep.subr.bf16.mxu0 0
      %411 = vmatpush1.bf16.msra.mxu0 %v394
      %412 = vmatprep.subr.bf16.mxu0 0
      %413 = vmatpush1.bf16.msra.mxu0 %v395
      %414 = vmatprep.subr.bf16.mxu0 0
      %415 = vmatpush1.bf16.msra.mxu0 %v396
      %416 = vmatprep.subr.bf16.mxu0 0
      %417 = vmatpush1.bf16.msra.mxu0 %v397
      %418 = vmatprep.subr.bf16.mxu0 0
      %419 = vmatpush1.bf16.msra.mxu0 %v398
      %420 = vmatprep.subr.bf16.mxu0 0
      %421 = vmatpush1.bf16.msra.mxu0 %v399
      %422 = vmatprep.subr.bf16.mxu0 0
      %423 = vmatpush1.bf16.msra.mxu0 %v400
      %424 = vmatprep.subr.bf16.mxu0 0
      %425 = vmatpush1.bf16.msra.mxu0 %v401
      %426 = vmatprep.subr.bf16.mxu0 0
      %427 = vmatpush1.bf16.msra.mxu0 0
      %428 = vmatprep.subr.bf16.mxu0 0
      %429 = vmatpush1.bf16.msra.mxu0 0
      %430 = vmatprep.subr.bf16.mxu0 0
      %431 = vmatpush1.bf16.msra.mxu0 0
      %432 = vmatprep.subr.bf16.mxu0 0
      %433 = vmatpush1.bf16.msra.mxu0 0
      %434 = vmatprep.subr.bf16.mxu0 0
      %435 = vmatpush1.bf16.msra.mxu0 0
      %436 = vmatprep.subr.bf16.mxu0 0
      %437 = vmatpush1.bf16.msra.mxu0 0
      %438 = vmatprep.subr.bf16.mxu0 0
      %439 = vmatpush1.bf16.msra.mxu0 0
      %440 = vmatprep.subr.bf16.mxu0 0
      %441 = vmatpush1.bf16.msra.mxu0 0
      %442 = vmatprep.mubr.bf16.mxu0 0
      %443 = vmatmul.mubr.bf16.gmra.mrb[0].mxu0 %v346
      %v444 = vpop.f32.mrb[0].mxu0
      %v445 = vadd.f32 0.0, %v444
      %v446 = vpop.f32.mrb[0].mxu0
      %v447 = vpop.f32.mrb[0].mxu0
      %v448 = vadd.f32 0.0, %v447
      %v449 = vpop.f32.mrb[0].mxu0
      %450 = vmatprep.mubr.bf16.mxu0 0
      %451 = vmatmul.mubr.bf16.gmra.mrb[0].mxu0 %v347
      %v452 = vpop.f32.mrb[0].mxu0
      %v453 = vadd.f32 0.0, %v452
      %v454 = vpop.f32.mrb[0].mxu0
      %v455 = vpop.f32.mrb[0].mxu0
      %v456 = vadd.f32 0.0, %v455
      %v457 = vpop.f32.mrb[0].mxu0
      %458 = vmatprep.mubr.bf16.mxu0 0
      %459 = vmatmul.mubr.bf16.gmra.mrb[0].mxu0 %v348
      %v460 = vpop.f32.mrb[0].mxu0
      %v461 = vadd.f32 0.0, %v460
      %v462 = vpop.f32.mrb[0].mxu0
      %v463 = vpop.f32.mrb[0].mxu0
      %v464 = vadd.f32 0.0, %v463
      %v465 = vpop.f32.mrb[0].mxu0
      %466 = vmatprep.mubr.bf16.mxu0 0
      %467 = vmatmul.mubr.bf16.gmra.mrb[0].mxu0 %v349
      %v468 = vpop.f32.mrb[0].mxu0
      %v469 = vadd.f32 0.0, %v468
      %v470 = vpop.f32.mrb[0].mxu0
      %v471 = vpop.f32.mrb[0].mxu0
      %v472 = vadd.f32 0.0, %v471
      %v473 = vpop.f32.mrb[0].mxu0
      %474 = vmatprep.mubr.bf16.mxu0 0
      %475 = vmatmul.mubr.bf16.gmra.mrb[0].mxu0 %v350
      %v476 = vpop.f32.mrb[0].mxu0
      %v477 = vadd.f32 0.0, %v476
      %v478 = vpop.f32.mrb[0].mxu0
      %v479 = vpop.f32.mrb[0].mxu0
      %v480 = vadd.f32 0.0, %v479
      %v481 = vpop.f32.mrb[0].mxu0
      %482 = vmatprep.mubr.bf16.mxu0 0
      %483 = vmatmul.mubr.bf16.gmra.mrb[0].mxu0 %v351
      %v484 = vpop.f32.mrb[0].mxu0
      %v485 = vadd.f32 0.0, %v484
      %v486 = vpop.f32.mrb[0].mxu0
      %v487 = vpop.f32.mrb[0].mxu0
      %v488 = vadd.f32 0.0, %v487
      %v489 = vpop.f32.mrb[0].mxu0
      %490 = vmatprep.mubr.bf16.mxu0 0
      %491 = vmatmul.mubr.bf16.gmra.mrb[0].mxu0 %v352
      %v492 = vpop.f32.mrb[0].mxu0
      %v493 = vadd.f32 0.0, %v492
      %v494 = vpop.f32.mrb[0].mxu0
      %v495 = vpop.f32.mrb[0].mxu0
      %v496 = vadd.f32 0.0, %v495
      %v497 = vpop.f32.mrb[0].mxu0
      %498 = vmatprep.mubr.bf16.mxu0 0
      %499 = vmatmul.mubr.bf16.gmra.mrb[0].mxu0 %v353
      %v500 = vpop.f32.mrb[0].mxu0
      %v501 = vadd.f32 0.0, %v500
      %v502 = vpop.f32.mrb[0].mxu0
      %v503 = vpop.f32.mrb[0].mxu0
      %v504 = vadd.f32 0.0, %v503
      %v505 = vpop.f32.mrb[0].mxu0
      %506 = vdwg.mxu0
      %v523 = vunpack.c.l.b16 %v245
      %v524 = vunpack.c.l.b16 %v246
      %v525 = vunpack.c.l.b16 %v247
      %v526 = vunpack.c.l.b16 %v248
      %v527 = vunpack.c.l.b16 %v249
      %v528 = vunpack.c.l.b16 %v250
      %v529 = vunpack.c.l.b16 %v251
      %v530 = vunpack.c.l.b16 %v252
      %v531 = vunpack.c.l.b16 %v253
      %v532 = vunpack.c.l.b16 %v254
      %v533 = vunpack.c.l.b16 %v255
      %v534 = vunpack.c.l.b16 %v256
      %v535 = vunpack.c.l.b16 %v257
      %v536 = vunpack.c.l.b16 %v258
      %v537 = vunpack.c.l.b16 %v259
      %v538 = vunpack.c.l.b16 %v260
      %v539 = vpack.c.b16 %v524, %v523
      %v540 = vpack.c.b16 %v526, %v525
      %v541 = vpack.c.b16 %v528, %v527
      %v542 = vpack.c.b16 %v530, %v529
      %v543 = vpack.c.b16 %v532, %v531
      %v544 = vpack.c.b16 %v534, %v533
      %v545 = vpack.c.b16 %v536, %v535
      %v546 = vpack.c.b16 %v538, %v537
      %v571 = vunpack.c.l.b16 %v261
      %v572 = vunpack.c.l.b16 %v262
      %v573 = vunpack.c.l.b16 %v263
      %v574 = vunpack.c.l.b16 %v264
      %v575 = vunpack.c.l.b16 %v265
      %v576 = vunpack.c.l.b16 %v266
      %v577 = vunpack.c.l.b16 %v267
      %v578 = vunpack.c.l.b16 %v268
      %v579 = vunpack.c.l.b16 %v269
      %v580 = vunpack.c.l.b16 %v270
      %v581 = vunpack.c.l.b16 %v271
      %v582 = vunpack.c.l.b16 %v272
      %v583 = vunpack.c.l.b16 %v273
      %v584 = vunpack.c.l.b16 %v274
      %v585 = vunpack.c.l.b16 %v275
      %v586 = vunpack.c.l.b16 %v276
      %v587 = vpack.c.b16 %v572, %v571
      %v588 = vpack.c.b16 %v574, %v573
      %v589 = vpack.c.b16 %v576, %v575
      %v590 = vpack.c.b16 %v578, %v577
      %v591 = vpack.c.b16 %v580, %v579
      %v592 = vpack.c.b16 %v582, %v581
      %v593 = vpack.c.b16 %v584, %v583
      %v594 = vpack.c.b16 %v586, %v585
      %603 = vmatprep.subr.bf16.mxu0 0
      %604 = vmatpush1.bf16.msra.mxu0 %v587
      %605 = vmatprep.subr.bf16.mxu0 0
      %606 = vmatpush1.bf16.msra.mxu0 %v588
      %607 = vmatprep.subr.bf16.mxu0 0
      %608 = vmatpush1.bf16.msra.mxu0 %v589
      %609 = vmatprep.subr.bf16.mxu0 0
      %610 = vmatpush1.bf16.msra.mxu0 %v590
      %611 = vmatprep.subr.bf16.mxu0 0
      %612 = vmatpush1.bf16.msra.mxu0 %v591
      %613 = vmatprep.subr.bf16.mxu0 0
      %614 = vmatpush1.bf16.msra.mxu0 %v592
      %615 = vmatprep.subr.bf16.mxu0 0
      %616 = vmatpush1.bf16.msra.mxu0 %v593
      %617 = vmatprep.subr.bf16.mxu0 0
      %618 = vmatpush1.bf16.msra.mxu0 %v594
      %619 = vmatprep.subr.bf16.mxu0 0
      %620 = vmatpush1.bf16.msra.mxu0 0
      %621 = vmatprep.subr.bf16.mxu0 0
      %622 = vmatpush1.bf16.msra.mxu0 0
      %623 = vmatprep.subr.bf16.mxu0 0
      %624 = vmatpush1.bf16.msra.mxu0 0
      %625 = vmatprep.subr.bf16.mxu0 0
      %626 = vmatpush1.bf16.msra.mxu0 0
      %627 = vmatprep.subr.bf16.mxu0 0
      %628 = vmatpush1.bf16.msra.mxu0 0
      %629 = vmatprep.subr.bf16.mxu0 0
      %630 = vmatpush1.bf16.msra.mxu0 0
      %631 = vmatprep.subr.bf16.mxu0 0
      %632 = vmatpush1.bf16.msra.mxu0 0
      %633 = vmatprep.subr.bf16.mxu0 0
      %634 = vmatpush1.bf16.msra.mxu0 0
      %635 = vmatprep.mubr.bf16.mxu0 0
      %636 = vmatmul.mubr.bf16.gmra.mrb[0].mxu0 %v539
      %v637 = vpop.f32.mrb[0].mxu0
      %v638 = vadd.f32 %v445, %v637
      %v639 = vpop.f32.mrb[0].mxu0
      %v640 = vpop.f32.mrb[0].mxu0
      %v641 = vadd.f32 %v448, %v640
      %v642 = vpop.f32.mrb[0].mxu0
      %643 = vmatprep.mubr.bf16.mxu0 0
      %644 = vmatmul.mubr.bf16.gmra.mrb[0].mxu0 %v540
      %v645 = vpop.f32.mrb[0].mxu0
      %v646 = vadd.f32 %v453, %v645
      %v647 = vpop.f32.mrb[0].mxu0
      %v648 = vpop.f32.mrb[0].mxu0
      %v649 = vadd.f32 %v456, %v648
      %v650 = vpop.f32.mrb[0].mxu0
      %651 = vmatprep.mubr.bf16.mxu0 0
      %652 = vmatmul.mubr.bf16.gmra.mrb[0].mxu0 %v541
      %v653 = vpop.f32.mrb[0].mxu0
      %v654 = vadd.f32 %v461, %v653
      %v655 = vpop.f32.mrb[0].mxu0
      %v656 = vpop.f32.mrb[0].mxu0
      %v657 = vadd.f32 %v464, %v656
      %v658 = vpop.f32.mrb[0].mxu0
      %659 = vmatprep.mubr.bf16.mxu0 0
      %660 = vmatmul.mubr.bf16.gmra.mrb[0].mxu0 %v542
      %v661 = vpop.f32.mrb[0].mxu0
      %v662 = vadd.f32 %v469, %v661
      %v663 = vpop.f32.mrb[0].mxu0
      %v664 = vpop.f32.mrb[0].mxu0
      %v665 = vadd.f32 %v472, %v664
      %v666 = vpop.f32.mrb[0].mxu0
      %667 = vmatprep.mubr.bf16.mxu0 0
      %668 = vmatmul.mubr.bf16.gmra.mrb[0].mxu0 %v543
      %v669 = vpop.f32.mrb[0].mxu0
      %v670 = vadd.f32 %v477, %v669
      %v671 = vpop.f32.mrb[0].mxu0
      %v672 = vpop.f32.mrb[0].mxu0
      %v673 = vadd.f32 %v480, %v672
      %v674 = vpop.f32.mrb[0].mxu0
      %675 = vmatprep.mubr.bf16.mxu0 0
      %676 = vmatmul.mubr.bf16.gmra.mrb[0].mxu0 %v544
      %v677 = vpop.f32.mrb[0].mxu0
      %v678 = vadd.f32 %v485, %v677
      %v679 = vpop.f32.mrb[0].mxu0
      %v680 = vpop.f32.mrb[0].mxu0
      %v681 = vadd.f32 %v488, %v680
      %v682 = vpop.f32.mrb[0].mxu0
      %683 = vmatprep.mubr.bf16.mxu0 0
      %684 = vmatmul.mubr.bf16.gmra.mrb[0].mxu0 %v545
      %v685 = vpop.f32.mrb[0].mxu0
      %v686 = vadd.f32 %v493, %v685
      %v687 = vpop.f32.mrb[0].mxu0
      %v688 = vpop.f32.mrb[0].mxu0
      %v689 = vadd.f32 %v496, %v688
      %v690 = vpop.f32.mrb[0].mxu0
      %691 = vmatprep.mubr.bf16.mxu0 0
      %692 = vmatmul.mubr.bf16.gmra.mrb[0].mxu0 %v546
      %v693 = vpop.f32.mrb[0].mxu0
      %v694 = vadd.f32 %v501, %v693
      %v695 = vpop.f32.mrb[0].mxu0
      %v696 = vpop.f32.mrb[0].mxu0
      %v697 = vadd.f32 %v504, %v696
      %v698 = vpop.f32.mrb[0].mxu0
      %699 = vdwg.mxu0
      %v700 = vpack.c.bf16 %v641, %v638
      %v701 = vpack.c.bf16 %v649, %v646
      %v702 = vpack.c.bf16 %v657, %v654
      %v703 = vpack.c.bf16 %v665, %v662
      %v704 = vpack.c.bf16 %v673, %v670
      %v705 = vpack.c.bf16 %v681, %v678
      %v706 = vpack.c.bf16 %v689, %v686
      %v707 = vpack.c.bf16 %v697, %v694
      %v716 = vunpack.c.l.b16 %v700
      %v717 = vunpack.c.h.b16 %v700
      %v718 = vunpack.c.l.b16 %v701
      %v719 = vunpack.c.h.b16 %v701
      %v720 = vunpack.c.l.b16 %v702
      %v721 = vunpack.c.h.b16 %v702
      %v722 = vunpack.c.l.b16 %v703
      %v723 = vunpack.c.h.b16 %v703
      %v724 = vunpack.c.l.b16 %v704
      %v725 = vunpack.c.h.b16 %v704
      %v726 = vunpack.c.l.b16 %v705
      %v727 = vunpack.c.h.b16 %v705
      %v728 = vunpack.c.l.b16 %v706
      %v729 = vunpack.c.h.b16 %v706
      %v730 = vunpack.c.l.b16 %v707
      %v731 = vunpack.c.h.b16 %v707
      %v732 = vpack.c.b16 %v716, %v716
      %v733 = vpack.c.b16 %v717, %v717
      %v734 = vpack.c.b16 %v718, %v718
      %v735 = vpack.c.b16 %v719, %v719
      %v736 = vpack.c.b16 %v720, %v720
      %v737 = vpack.c.b16 %v721, %v721
      %v738 = vpack.c.b16 %v722, %v722
      %v739 = vpack.c.b16 %v723, %v723
      %v740 = vpack.c.b16 %v724, %v724
      %v741 = vpack.c.b16 %v725, %v725
      %v742 = vpack.c.b16 %v726, %v726
      %v743 = vpack.c.b16 %v727, %v727
      %v744 = vpack.c.b16 %v728, %v728
      %v745 = vpack.c.b16 %v729, %v729
      %v746 = vpack.c.b16 %v730, %v730
      %v747 = vpack.c.b16 %v731, %v731
      %764 = vst [vmem:[%s230] sm:$0xf] %v732
      %765 = vst [vmem:[%s230 + $0x4] sm:$0xf] %v733
      %766 = vst [vmem:[%s230 + $0x8] sm:$0xf] %v734
      %767 = vst [vmem:[%s230 + $0xc] sm:$0xf] %v735
      %768 = vst [vmem:[%s230 + $0x10] sm:$0xf] %v736
      %769 = vst [vmem:[%s230 + $0x14] sm:$0xf] %v737
      %770 = vst [vmem:[%s230 + $0x18] sm:$0xf] %v738
      %771 = vst [vmem:[%s230 + $0x1c] sm:$0xf] %v739
      %772 = vst [vmem:[%s230 + $0x20] sm:$0xf] %v740
      %773 = vst [vmem:[%s230 + $0x24] sm:$0xf] %v741
      %774 = vst [vmem:[%s230 + $0x28] sm:$0xf] %v742
      %775 = vst [vmem:[%s230 + $0x2c] sm:$0xf] %v743
      %776 = vst [vmem:[%s230 + $0x30] sm:$0xf] %v744
      %777 = vst [vmem:[%s230 + $0x34] sm:$0xf] %v745
      %778 = vst [vmem:[%s230 + $0x38] sm:$0xf] %v746
      %779 = vst [vmem:[%s230 + $0x3c] sm:$0xf] %v747
      %p780 = scmp.eq.s32.totalorder %s21, 0
      // Predicated region
      $region29: #{discriminator_forward.6} parent=27 // pred_check
        %p781 = pneg %p780
      $region30: #{discriminator_forward.6} parent=27 // pred_check_branch
        %783 = sbr.rel (%p781) target = $region32
      $region31: #{discriminator_forward.6} parent=27 // pred_region
        %784 = vst [vmem:[%s234] sm:$0x1] 0.0
        %785 = vst [vmem:[%s237] sm:$0x1] 0.0
      $region32: #{discriminator_forward.6} parent=27 // pred_fallthru
        _
      %v786 = vld [vmem:[%s234] sm:$0x1]
      %v787 = vadd.f32 %v638, %v641
      %v788 = vadd.f32 %v787, %v646
      %v789 = vadd.f32 %v788, %v649
      %v790 = vadd.f32 %v789, %v654
      %v791 = vadd.f32 %v790, %v657
      %v792 = vadd.f32 %v791, %v662
      %v793 = vadd.f32 %v792, %v665
      %v794 = vadd.f32 %v793, %v670
      %v795 = vadd.f32 %v794, %v673
      %v796 = vadd.f32 %v795, %v678
      %v797 = vadd.f32 %v796, %v681
      %v798 = vadd.f32 %v797, %v686
      %v799 = vadd.f32 %v798, %v689
      %v800 = vadd.f32 %v799, %v694
      %v801 = vadd.f32 %v800, %v697
      %v802 = vrot.slane %v801, 4
      %v803 = vadd.f32 %v801, %v802
      %v804 = vrot.slane %v803, 2
      %v805 = vadd.f32 %v803, %v804
      %v806 = vrot.slane %v805, 1
      %v807 = vadd.f32 %v805, %v806
      %v808 = vadd.f32 %v786, %v807
      %809 = vst [vmem:[%s234] sm:$0x1] %v808
      %v810 = vld [vmem:[%s237] sm:$0x1]
      %v811 = vmul.f32 %v638, %v638
      %v812 = vmul.f32 %v641, %v641
      %v813 = vmul.f32 %v646, %v646
      %v814 = vmul.f32 %v649, %v649
      %v815 = vmul.f32 %v654, %v654
      %v816 = vmul.f32 %v657, %v657
      %v817 = vmul.f32 %v662, %v662
      %v818 = vmul.f32 %v665, %v665
      %v819 = vmul.f32 %v670, %v670
      %v820 = vmul.f32 %v673, %v673
      %v821 = vmul.f32 %v678, %v678
      %v822 = vmul.f32 %v681, %v681
      %v823 = vmul.f32 %v686, %v686
      %v824 = vmul.f32 %v689, %v689
      %v825 = vmul.f32 %v694, %v694
      %v826 = vmul.f32 %v697, %v697
      %v827 = vadd.f32 %v811, %v812
      %v828 = vadd.f32 %v827, %v813
      %v829 = vadd.f32 %v828, %v814
      %v830 = vadd.f32 %v829, %v815
      %v831 = vadd.f32 %v830, %v816
      %v832 = vadd.f32 %v831, %v817
      %v833 = vadd.f32 %v832, %v818
      %v834 = vadd.f32 %v833, %v819
      %v835 = vadd.f32 %v834, %v820
      %v836 = vadd.f32 %v835, %v821
      %v837 = vadd.f32 %v836, %v822
      %v838 = vadd.f32 %v837, %v823
      %v839 = vadd.f32 %v838, %v824
      %v840 = vadd.f32 %v839, %v825
      %v841 = vadd.f32 %v840, %v826
      %v842 = vrot.slane %v841, 4
      %v843 = vadd.f32 %v841, %v842
      %v844 = vrot.slane %v843, 2
      %v845 = vadd.f32 %v843, %v844
      %v846 = vrot.slane %v845, 1
      %v847 = vadd.f32 %v845, %v846
      %v848 = vadd.f32 %v810, %v847
      %849 = vst [vmem:[%s237] sm:$0x1] %v848
      %s850 = smul.u32 16, %s21
      %p851 = scmp.lt.s32.totalorder %s20, 1
      %s852 = scalar_select %p851, %s20, 1
      %p853 = scmp.lt.s32.totalorder %s850, 31
      %s854 = scalar_select %p853, %s850, 31
      %s855 = smul.addr %s852, 32
      %s856 = sadd.s32 %s854, %s855
      %s857 = smul.addr %s856, 4
      %s858 = scalar_lea.vmem %s2, %s857
      %p859 = scmp.lt.s32.totalorder %s20, 1
      %s860 = scalar_select %p859, %s20, 1
      %s861 = scalar_lea.vmem %s3, %s860
      %p862 = scmp.lt.s32.totalorder %s20, 1
      %s863 = scalar_select %p862, %s20, 1
      %s864 = scalar_lea.vmem %s4, %s863
      // Predicated region
      $region33: #{discriminator_forward.6} parent=27 // pred_check
        %p865 = pneg %p95
      $region34: #{discriminator_forward.6} parent=27 // pred_check_branch
        %867 = sbr.rel (%p865) target = $region36
      $region35: #{discriminator_forward.6} parent=27 // pred_region
        %s868 = smul.u32 16, %s21
      $region36: #{discriminator_forward.6} parent=27 // pred_fallthru
        _
      // Predicated region
      $region37: #{discriminator_forward.6} parent=27 // pred_check
        %p869 = pneg %p121
      $region38: #{discriminator_forward.6} parent=27 // pred_check_branch
        %871 = sbr.rel (%p869) target = $region40
      $region39: #{discriminator_forward.6} parent=27 // pred_region
        _
      $region40: #{discriminator_forward.6} parent=27 // pred_fallthru
        _
      // Predicated region
      $region41: #{discriminator_forward.6} parent=27 // pred_check
        %p872 = pneg %p147
      $region42: #{discriminator_forward.6} parent=27 // pred_check_branch
        %874 = sbr.rel (%p872) target = $region44
      $region43: #{discriminator_forward.6} parent=27 // pred_region
        _
      $region44: #{discriminator_forward.6} parent=27 // pred_fallthru
        _
    $region28: #{discriminator_forward.6} parent=5 // pred_fallthru
      _
    %p875 = scmp.le.s32.totalorder 2, %s11
    // Predicated region
    $region45: #{discriminator_forward.6} parent=5 // pred_check
      %p876 = pneg %p875
    $region46: #{discriminator_forward.6} parent=5 // pred_check_branch
      %878 = sbr.rel (%p876) target = $region48
    $region47: #{discriminator_forward.6} parent=5 // pred_region
      %s879 = ssub.s32 %s11, 2
      // Predicated region
      $region49: #{discriminator_forward.6} parent=47 // pred_check
        %p880 = pneg %p101
      $region50: #{discriminator_forward.6} parent=47 // pred_check_branch
        %882 = sbr.rel (%p880) target = $region52
      $region51: #{discriminator_forward.6} parent=47 // pred_region
        %s883 = smul.u32 16, %s23
        %p884 = scmp.lt.s32.totalorder %s22, 1
        %s885 = scalar_select %p884, %s22, 1
        %p886 = scmp.lt.s32.totalorder %s883, 31
        %s887 = scalar_select %p886, %s883, 31
        %s888 = smul.addr %s885, 32
        %s889 = sadd.s32 %s887, %s888
        %s890 = smul.addr %s889, 4
        %s891 = scalar_lea.vmem %s2, %s890
      $region52: #{discriminator_forward.6} parent=47 // pred_fallthru
        _
      // Predicated region
      $region53: #{discriminator_forward.6} parent=47 // pred_check
        %p892 = pneg %p127
      $region54: #{discriminator_forward.6} parent=47 // pred_check_branch
        %894 = sbr.rel (%p892) target = $region56
      $region55: #{discriminator_forward.6} parent=47 // pred_region
        %p895 = scmp.lt.s32.totalorder %s22, 1
        %s896 = scalar_select %p895, %s22, 1
        %s897 = scalar_lea.vmem %s3, %s896
      $region56: #{discriminator_forward.6} parent=47 // pred_fallthru
        _
      // Predicated region
      $region57: #{discriminator_forward.6} parent=47 // pred_check
        %p898 = pneg %p153
      $region58: #{discriminator_forward.6} parent=47 // pred_check_branch
        %900 = sbr.rel (%p898) target = $region60
      $region59: #{discriminator_forward.6} parent=47 // pred_region
        %p901 = scmp.lt.s32.totalorder %s22, 1
        %s902 = scalar_select %p901, %s22, 1
        %s903 = scalar_lea.vmem %s4, %s902
      $region60: #{discriminator_forward.6} parent=47 // pred_fallthru
        _
    $region48: #{discriminator_forward.6} parent=5 // pred_fallthru
      _
  $region6: #{discriminator_forward.6} parent=0 // loop_footer
    %s15 = sadd.s32 1, %s11
  $region7: #{discriminator_forward.6} parent=0 // loop_footer_branch
    %10 = sbr.rel target = $region3
  $region8: #{discriminator_forward.6} parent=0 // loop_exit
    _

// kernel: discriminator_forward.7
$region0: #{discriminator_forward.7}
  #allocation0 [shape = 'u32[]', space=smem, size = 0x4, offset = 0x4, fixed_abs, tag = 'smem constant byte address 0x4 - core index']
  #allocation1 [shape = 'u32[144,128]{1,0:T(1,128)}', space=vmem, size = 0x12000, scoped, tag = 'internal scratch']
  %s0 = inlined_call_operand.vmem [shape: bf16[128,256], index: 0, kind: input, shape index: {}]
  %s1 = inlined_call_operand.vmem [shape: bf16[256,128], index: 1, kind: input, shape index: {}]
  %s2 = inlined_call_operand.vmem [shape: bf16[128,128], index: 2, kind: output, shape index: {0}]
  %s3 = inlined_call_operand.vmem [shape: f32[1,128], index: 3, kind: output, shape index: {1}]
  %s4 = inlined_call_operand.vmem [shape: f32[1,128], index: 4, kind: output, shape index: {2}]
  %5 = xla_tuple %s2, %s3, %s4
  %s6 = sld [smem:[#allocation0]]
  $region38: #{discriminator_forward.7} parent=0
    _
  %s8 = ssub.s32 1, %s6
  %s9 = scalar_select 0, %s8, %s6
  // Predicated region
  $region2: #{discriminator_forward.7} parent=0 // pred_check
    _
  $region3: #{discriminator_forward.7} parent=0 // pred_check_branch
    %11 = sbr.rel (0) target = $region5
  $region4: #{discriminator_forward.7} parent=0 // pred_region
    _
  $region5: #{discriminator_forward.7} parent=0 // pred_fallthru
    _
  // Predicated region
  $region6: #{discriminator_forward.7} parent=0 // pred_check
    _
  $region7: #{discriminator_forward.7} parent=0 // pred_check_branch
    %13 = sbr.rel (0) target = $region9
  $region8: #{discriminator_forward.7} parent=0 // pred_region
    _
  $region9: #{discriminator_forward.7} parent=0 // pred_fallthru
    _
  %v15 = vld [vmem:[%s0] sm:$0xff]
  %v16 = vld [vmem:[%s0 + $0x8] sm:$0xff]
  %v17 = vld [vmem:[%s0 + $0x10] sm:$0xff]
  %v18 = vld [vmem:[%s0 + $0x18] sm:$0xff]
  %v19 = vld [vmem:[%s0 + $0x20] sm:$0xff]
  %v20 = vld [vmem:[%s0 + $0x28] sm:$0xff]
  %v21 = vld [vmem:[%s0 + $0x30] sm:$0xff]
  %v22 = vld [vmem:[%s0 + $0x38] sm:$0xff]
  %v23 = vld [vmem:[%s0 + $0x40] sm:$0xff]
  %v24 = vld [vmem:[%s0 + $0x48] sm:$0xff]
  %v25 = vld [vmem:[%s0 + $0x50] sm:$0xff]
  %v26 = vld [vmem:[%s0 + $0x58] sm:$0xff]
  %v27 = vld [vmem:[%s0 + $0x60] sm:$0xff]
  %v28 = vld [vmem:[%s0 + $0x68] sm:$0xff]
  %v29 = vld [vmem:[%s0 + $0x70] sm:$0xff]
  %v30 = vld [vmem:[%s0 + $0x78] sm:$0xff]
  %v31 = vld [vmem:[%s1] sm:$0xf]
  %v32 = vld [vmem:[%s1 + $0x4] sm:$0xf]
  %v33 = vld [vmem:[%s1 + $0x8] sm:$0xf]
  %v34 = vld [vmem:[%s1 + $0xc] sm:$0xf]
  %v35 = vld [vmem:[%s1 + $0x10] sm:$0xf]
  %v36 = vld [vmem:[%s1 + $0x14] sm:$0xf]
  %v37 = vld [vmem:[%s1 + $0x18] sm:$0xf]
  %v38 = vld [vmem:[%s1 + $0x1c] sm:$0xf]
  %v39 = vld [vmem:[%s1 + $0x20] sm:$0xf]
  %v40 = vld [vmem:[%s1 + $0x24] sm:$0xf]
  %v41 = vld [vmem:[%s1 + $0x28] sm:$0xf]
  %v42 = vld [vmem:[%s1 + $0x2c] sm:$0xf]
  %v43 = vld [vmem:[%s1 + $0x30] sm:$0xf]
  %v44 = vld [vmem:[%s1 + $0x34] sm:$0xf]
  %v45 = vld [vmem:[%s1 + $0x38] sm:$0xf]
  %v46 = vld [vmem:[%s1 + $0x3c] sm:$0xf]
  %v47 = vld [vmem:[%s1 + $0x40] sm:$0xf]
  %v48 = vld [vmem:[%s1 + $0x44] sm:$0xf]
  %v49 = vld [vmem:[%s1 + $0x48] sm:$0xf]
  %v50 = vld [vmem:[%s1 + $0x4c] sm:$0xf]
  %v51 = vld [vmem:[%s1 + $0x50] sm:$0xf]
  %v52 = vld [vmem:[%s1 + $0x54] sm:$0xf]
  %v53 = vld [vmem:[%s1 + $0x58] sm:$0xf]
  %v54 = vld [vmem:[%s1 + $0x5c] sm:$0xf]
  %v55 = vld [vmem:[%s1 + $0x60] sm:$0xf]
  %v56 = vld [vmem:[%s1 + $0x64] sm:$0xf]
  %v57 = vld [vmem:[%s1 + $0x68] sm:$0xf]
  %v58 = vld [vmem:[%s1 + $0x6c] sm:$0xf]
  %v59 = vld [vmem:[%s1 + $0x70] sm:$0xf]
  %v60 = vld [vmem:[%s1 + $0x74] sm:$0xf]
  %v61 = vld [vmem:[%s1 + $0x78] sm:$0xf]
  %v62 = vld [vmem:[%s1 + $0x7c] sm:$0xf]
  %v79 = vunpack.c.l.b16 %v15
  %v80 = vunpack.c.h.b16 %v15
  %v81 = vunpack.c.l.b16 %v16
  %v82 = vunpack.c.h.b16 %v16
  %v83 = vunpack.c.l.b16 %v17
  %v84 = vunpack.c.h.b16 %v17
  %v85 = vunpack.c.l.b16 %v18
  %v86 = vunpack.c.h.b16 %v18
  %v87 = vunpack.c.l.b16 %v19
  %v88 = vunpack.c.h.b16 %v19
  %v89 = vunpack.c.l.b16 %v20
  %v90 = vunpack.c.h.b16 %v20
  %v91 = vunpack.c.l.b16 %v21
  %v92 = vunpack.c.h.b16 %v21
  %v93 = vunpack.c.l.b16 %v22
  %v94 = vunpack.c.h.b16 %v22
  %v95 = vunpack.c.l.b16 %v23
  %v96 = vunpack.c.h.b16 %v23
  %v97 = vunpack.c.l.b16 %v24
  %v98 = vunpack.c.h.b16 %v24
  %v99 = vunpack.c.l.b16 %v25
  %v100 = vunpack.c.h.b16 %v25
  %v101 = vunpack.c.l.b16 %v26
  %v102 = vunpack.c.h.b16 %v26
  %v103 = vunpack.c.l.b16 %v27
  %v104 = vunpack.c.h.b16 %v27
  %v105 = vunpack.c.l.b16 %v28
  %v106 = vunpack.c.h.b16 %v28
  %v107 = vunpack.c.l.b16 %v29
  %v108 = vunpack.c.h.b16 %v29
  %v109 = vunpack.c.l.b16 %v30
  %v110 = vunpack.c.h.b16 %v30
  %v111 = vpack.c.b16 %v81, %v79
  %v112 = vpack.c.b16 %v82, %v80
  %v113 = vpack.c.b16 %v85, %v83
  %v114 = vpack.c.b16 %v86, %v84
  %v115 = vpack.c.b16 %v89, %v87
  %v116 = vpack.c.b16 %v90, %v88
  %v117 = vpack.c.b16 %v93, %v91
  %v118 = vpack.c.b16 %v94, %v92
  %v119 = vpack.c.b16 %v97, %v95
  %v120 = vpack.c.b16 %v98, %v96
  %v121 = vpack.c.b16 %v101, %v99
  %v122 = vpack.c.b16 %v102, %v100
  %v123 = vpack.c.b16 %v105, %v103
  %v124 = vpack.c.b16 %v106, %v104
  %v125 = vpack.c.b16 %v109, %v107
  %v126 = vpack.c.b16 %v110, %v108
  %v175 = vunpack.c.l.b16 %v31
  %v176 = vunpack.c.l.b16 %v32
  %v177 = vunpack.c.l.b16 %v33
  %v178 = vunpack.c.l.b16 %v34
  %v179 = vunpack.c.l.b16 %v35
  %v180 = vunpack.c.l.b16 %v36
  %v181 = vunpack.c.l.b16 %v37
  %v182 = vunpack.c.l.b16 %v38
  %v183 = vunpack.c.l.b16 %v39
  %v184 = vunpack.c.l.b16 %v40
  %v185 = vunpack.c.l.b16 %v41
  %v186 = vunpack.c.l.b16 %v42
  %v187 = vunpack.c.l.b16 %v43
  %v188 = vunpack.c.l.b16 %v44
  %v189 = vunpack.c.l.b16 %v45
  %v190 = vunpack.c.l.b16 %v46
  %v191 = vunpack.c.l.b16 %v47
  %v192 = vunpack.c.l.b16 %v48
  %v193 = vunpack.c.l.b16 %v49
  %v194 = vunpack.c.l.b16 %v50
  %v195 = vunpack.c.l.b16 %v51
  %v196 = vunpack.c.l.b16 %v52
  %v197 = vunpack.c.l.b16 %v53
  %v198 = vunpack.c.l.b16 %v54
  %v199 = vunpack.c.l.b16 %v55
  %v200 = vunpack.c.l.b16 %v56
  %v201 = vunpack.c.l.b16 %v57
  %v202 = vunpack.c.l.b16 %v58
  %v203 = vunpack.c.l.b16 %v59
  %v204 = vunpack.c.l.b16 %v60
  %v205 = vunpack.c.l.b16 %v61
  %v206 = vunpack.c.l.b16 %v62
  %v207 = vpack.c.b16 %v176, %v175
  %v208 = vpack.c.b16 %v178, %v177
  %v209 = vpack.c.b16 %v180, %v179
  %v210 = vpack.c.b16 %v182, %v181
  %v211 = vpack.c.b16 %v184, %v183
  %v212 = vpack.c.b16 %v186, %v185
  %v213 = vpack.c.b16 %v188, %v187
  %v214 = vpack.c.b16 %v190, %v189
  %v215 = vpack.c.b16 %v192, %v191
  %v216 = vpack.c.b16 %v194, %v193
  %v217 = vpack.c.b16 %v196, %v195
  %v218 = vpack.c.b16 %v198, %v197
  %v219 = vpack.c.b16 %v200, %v199
  %v220 = vpack.c.b16 %v202, %v201
  %v221 = vpack.c.b16 %v204, %v203
  %v222 = vpack.c.b16 %v206, %v205
  %239 = vmatprep.subr.bf16.mxu0 0
  %240 = vmatpush1.bf16.msra.mxu0 %v207
  %241 = vmatprep.subr.bf16.mxu0 0
  %242 = vmatpush1.bf16.msra.mxu0 %v208
  %243 = vmatprep.subr.bf16.mxu0 0
  %244 = vmatpush1.bf16.msra.mxu0 %v209
  %245 = vmatprep.subr.bf16.mxu0 0
  %246 = vmatpush1.bf16.msra.mxu0 %v210
  %247 = vmatprep.subr.bf16.mxu0 0
  %248 = vmatpush1.bf16.msra.mxu0 %v211
  %249 = vmatprep.subr.bf16.mxu0 0
  %250 = vmatpush1.bf16.msra.mxu0 %v212
  %251 = vmatprep.subr.bf16.mxu0 0
  %252 = vmatpush1.bf16.msra.mxu0 %v213
  %253 = vmatprep.subr.bf16.mxu0 0
  %254 = vmatpush1.bf16.msra.mxu0 %v214
  %255 = vmatprep.subr.bf16.mxu0 0
  %256 = vmatpush1.bf16.msra.mxu0 %v215
  %257 = vmatprep.subr.bf16.mxu0 0
  %258 = vmatpush1.bf16.msra.mxu0 %v216
  %259 = vmatprep.subr.bf16.mxu0 0
  %260 = vmatpush1.bf16.msra.mxu0 %v217
  %261 = vmatprep.subr.bf16.mxu0 0
  %262 = vmatpush1.bf16.msra.mxu0 %v218
  %263 = vmatprep.subr.bf16.mxu0 0
  %264 = vmatpush1.bf16.msra.mxu0 %v219
  %265 = vmatprep.subr.bf16.mxu0 0
  %266 = vmatpush1.bf16.msra.mxu0 %v220
  %267 = vmatprep.subr.bf16.mxu0 0
  %268 = vmatpush1.bf16.msra.mxu0 %v221
  %269 = vmatprep.subr.bf16.mxu0 0
  %270 = vmatpush1.bf16.msra.mxu0 %v222
  %271 = vmatprep.mubr.bf16.mxu0 %v112
  %272 = vmatmul.mubr.bf16.gmra.mrb[0].mxu0 %v111
  %v273 = vpop.f32.mrb[0].mxu0
  %v274 = vadd.f32 0.0, %v273
  %v275 = vpop.f32.mrb[0].mxu0
  %v276 = vpop.f32.mrb[0].mxu0
  %v277 = vadd.f32 0.0, %v276
  %v278 = vpop.f32.mrb[0].mxu0
  %279 = vmatprep.mubr.bf16.mxu0 %v114
  %280 = vmatmul.mubr.bf16.gmra.mrb[0].mxu0 %v113
  %v281 = vpop.f32.mrb[0].mxu0
  %v282 = vadd.f32 0.0, %v281
  %v283 = vpop.f32.mrb[0].mxu0
  %v284 = vpop.f32.mrb[0].mxu0
  %v285 = vadd.f32 0.0, %v284
  %v286 = vpop.f32.mrb[0].mxu0
  %287 = vmatprep.mubr.bf16.mxu0 %v116
  %288 = vmatmul.mubr.bf16.gmra.mrb[0].mxu0 %v115
  %v289 = vpop.f32.mrb[0].mxu0
  %v290 = vadd.f32 0.0, %v289
  %v291 = vpop.f32.mrb[0].mxu0
  %v292 = vpop.f32.mrb[0].mxu0
  %v293 = vadd.f32 0.0, %v292
  %v294 = vpop.f32.mrb[0].mxu0
  %295 = vmatprep.mubr.bf16.mxu0 %v118
  %296 = vmatmul.mubr.bf16.gmra.mrb[0].mxu0 %v117
  %v297 = vpop.f32.mrb[0].mxu0
  %v298 = vadd.f32 0.0, %v297
  %v299 = vpop.f32.mrb[0].mxu0
  %v300 = vpop.f32.mrb[0].mxu0
  %v301 = vadd.f32 0.0, %v300
  %v302 = vpop.f32.mrb[0].mxu0
  %303 = vmatprep.mubr.bf16.mxu0 %v120
  %304 = vmatmul.mubr.bf16.gmra.mrb[0].mxu0 %v119
  %v305 = vpop.f32.mrb[0].mxu0
  %v306 = vadd.f32 0.0, %v305
  %v307 = vpop.f32.mrb[0].mxu0
  %v308 = vpop.f32.mrb[0].mxu0
  %v309 = vadd.f32 0.0, %v308
  %v310 = vpop.f32.mrb[0].mxu0
  %311 = vmatprep.mubr.bf16.mxu0 %v122
  %312 = vmatmul.mubr.bf16.gmra.mrb[0].mxu0 %v121
  %v313 = vpop.f32.mrb[0].mxu0
  %v314 = vadd.f32 0.0, %v313
  %v315 = vpop.f32.mrb[0].mxu0
  %v316 = vpop.f32.mrb[0].mxu0
  %v317 = vadd.f32 0.0, %v316
  %v318 = vpop.f32.mrb[0].mxu0
  %319 = vmatprep.mubr.bf16.mxu0 %v124
  %320 = vmatmul.mubr.bf16.gmra.mrb[0].mxu0 %v123
  %v321 = vpop.f32.mrb[0].mxu0
  %v322 = vadd.f32 0.0, %v321
  %v323 = vpop.f32.mrb[0].mxu0
  %v324 = vpop.f32.mrb[0].mxu0
  %v325 = vadd.f32 0.0, %v324
  %v326 = vpop.f32.mrb[0].mxu0
  %327 = vmatprep.mubr.bf16.mxu0 %v126
  %328 = vmatmul.mubr.bf16.gmra.mrb[0].mxu0 %v125
  %v329 = vpop.f32.mrb[0].mxu0
  %v330 = vadd.f32 0.0, %v329
  %v331 = vpop.f32.mrb[0].mxu0
  %v332 = vpop.f32.mrb[0].mxu0
  %v333 = vadd.f32 0.0, %v332
  %v334 = vpop.f32.mrb[0].mxu0
  %335 = vdwg.mxu0
  %v336 = vpack.c.bf16 %v277, %v274
  %v337 = vpack.c.bf16 %v285, %v282
  %v338 = vpack.c.bf16 %v293, %v290
  %v339 = vpack.c.bf16 %v301, %v298
  %v340 = vpack.c.bf16 %v309, %v306
  %v341 = vpack.c.bf16 %v317, %v314
  %v342 = vpack.c.bf16 %v325, %v322
  %v343 = vpack.c.bf16 %v333, %v330
  %v352 = vunpack.c.l.b16 %v336
  %v353 = vunpack.c.h.b16 %v336
  %v354 = vunpack.c.l.b16 %v337
  %v355 = vunpack.c.h.b16 %v337
  %v356 = vunpack.c.l.b16 %v338
  %v357 = vunpack.c.h.b16 %v338
  %v358 = vunpack.c.l.b16 %v339
  %v359 = vunpack.c.h.b16 %v339
  %v360 = vunpack.c.l.b16 %v340
  %v361 = vunpack.c.h.b16 %v340
  %v362 = vunpack.c.l.b16 %v341
  %v363 = vunpack.c.h.b16 %v341
  %v364 = vunpack.c.l.b16 %v342
  %v365 = vunpack.c.h.b16 %v342
  %v366 = vunpack.c.l.b16 %v343
  %v367 = vunpack.c.h.b16 %v343
  %v368 = vpack.c.b16 %v352, %v352
  %v369 = vpack.c.b16 %v353, %v353
  %v370 = vpack.c.b16 %v354, %v354
  %v371 = vpack.c.b16 %v355, %v355
  %v372 = vpack.c.b16 %v356, %v356
  %v373 = vpack.c.b16 %v357, %v357
  %v374 = vpack.c.b16 %v358, %v358
  %v375 = vpack.c.b16 %v359, %v359
  %v376 = vpack.c.b16 %v360, %v360
  %v377 = vpack.c.b16 %v361, %v361
  %v378 = vpack.c.b16 %v362, %v362
  %v379 = vpack.c.b16 %v363, %v363
  %v380 = vpack.c.b16 %v364, %v364
  %v381 = vpack.c.b16 %v365, %v365
  %v382 = vpack.c.b16 %v366, %v366
  %v383 = vpack.c.b16 %v367, %v367
  %400 = vst [vmem:[%s2] sm:$0xf] %v368
  %401 = vst [vmem:[%s2 + $0x4] sm:$0xf] %v369
  %402 = vst [vmem:[%s2 + $0x8] sm:$0xf] %v370
  %403 = vst [vmem:[%s2 + $0xc] sm:$0xf] %v371
  %404 = vst [vmem:[%s2 + $0x10] sm:$0xf] %v372
  %405 = vst [vmem:[%s2 + $0x14] sm:$0xf] %v373
  %406 = vst [vmem:[%s2 + $0x18] sm:$0xf] %v374
  %407 = vst [vmem:[%s2 + $0x1c] sm:$0xf] %v375
  %408 = vst [vmem:[%s2 + $0x20] sm:$0xf] %v376
  %409 = vst [vmem:[%s2 + $0x24] sm:$0xf] %v377
  %410 = vst [vmem:[%s2 + $0x28] sm:$0xf] %v378
  %411 = vst [vmem:[%s2 + $0x2c] sm:$0xf] %v379
  %412 = vst [vmem:[%s2 + $0x30] sm:$0xf] %v380
  %413 = vst [vmem:[%s2 + $0x34] sm:$0xf] %v381
  %414 = vst [vmem:[%s2 + $0x38] sm:$0xf] %v382
  %415 = vst [vmem:[%s2 + $0x3c] sm:$0xf] %v383
  %p416 = scmp.eq.s32.totalorder 0, 0
  // Predicated region
  $region10: #{discriminator_forward.7} parent=0 // pred_check
    %p417 = pneg %p416
  $region11: #{discriminator_forward.7} parent=0 // pred_check_branch
    %419 = sbr.rel (%p417) target = $region13
  $region12: #{discriminator_forward.7} parent=0 // pred_region
    %420 = vst [vmem:[%s3] sm:$0x1] 0.0
    %421 = vst [vmem:[%s4] sm:$0x1] 0.0
  $region13: #{discriminator_forward.7} parent=0 // pred_fallthru
    _
  %v422 = vld [vmem:[%s3] sm:$0x1]
  %v423 = vadd.f32 %v274, %v277
  %v424 = vadd.f32 %v423, %v282
  %v425 = vadd.f32 %v424, %v285
  %v426 = vadd.f32 %v425, %v290
  %v427 = vadd.f32 %v426, %v293
  %v428 = vadd.f32 %v427, %v298
  %v429 = vadd.f32 %v428, %v301
  %v430 = vadd.f32 %v429, %v306
  %v431 = vadd.f32 %v430, %v309
  %v432 = vadd.f32 %v431, %v314
  %v433 = vadd.f32 %v432, %v317
  %v434 = vadd.f32 %v433, %v322
  %v435 = vadd.f32 %v434, %v325
  %v436 = vadd.f32 %v435, %v330
  %v437 = vadd.f32 %v436, %v333
  %v438 = vrot.slane %v437, 4
  %v439 = vadd.f32 %v437, %v438
  %v440 = vrot.slane %v439, 2
  %v441 = vadd.f32 %v439, %v440
  %v442 = vrot.slane %v441, 1
  %v443 = vadd.f32 %v441, %v442
  %v444 = vadd.f32 %v422, %v443
  %445 = vst [vmem:[%s3] sm:$0x1] %v444
  %v446 = vld [vmem:[%s4] sm:$0x1]
  %v447 = vmul.f32 %v274, %v274
  %v448 = vmul.f32 %v277, %v277
  %v449 = vmul.f32 %v282, %v282
  %v450 = vmul.f32 %v285, %v285
  %v451 = vmul.f32 %v290, %v290
  %v452 = vmul.f32 %v293, %v293
  %v453 = vmul.f32 %v298, %v298
  %v454 = vmul.f32 %v301, %v301
  %v455 = vmul.f32 %v306, %v306
  %v456 = vmul.f32 %v309, %v309
  %v457 = vmul.f32 %v314, %v314
  %v458 = vmul.f32 %v317, %v317
  %v459 = vmul.f32 %v322, %v322
  %v460 = vmul.f32 %v325, %v325
  %v461 = vmul.f32 %v330, %v330
  %v462 = vmul.f32 %v333, %v333
  %v463 = vadd.f32 %v447, %v448
  %v464 = vadd.f32 %v463, %v449
  %v465 = vadd.f32 %v464, %v450
  %v466 = vadd.f32 %v465, %v451
  %v467 = vadd.f32 %v466, %v452
  %v468 = vadd.f32 %v467, %v453
  %v469 = vadd.f32 %v468, %v454
  %v470 = vadd.f32 %v469, %v455
  %v471 = vadd.f32 %v470, %v456
  %v472 = vadd.f32 %v471, %v457
  %v473 = vadd.f32 %v472, %v458
  %v474 = vadd.f32 %v473, %v459
  %v475 = vadd.f32 %v474, %v460
  %v476 = vadd.f32 %v475, %v461
  %v477 = vadd.f32 %v476, %v462
  %v478 = vrot.slane %v477, 4
  %v479 = vadd.f32 %v477, %v478
  %v480 = vrot.slane %v479, 2
  %v481 = vadd.f32 %v479, %v480
  %v482 = vrot.slane %v481, 1
  %v483 = vadd.f32 %v481, %v482
  %v484 = vadd.f32 %v446, %v483
  %485 = vst [vmem:[%s4] sm:$0x1] %v484
  // Predicated region
  $region14: #{discriminator_forward.7} parent=0 // pred_check
    _
  $region15: #{discriminator_forward.7} parent=0 // pred_check_branch
    %487 = sbr.rel (0) target = $region17
  $region16: #{discriminator_forward.7} parent=0 // pred_region
    _
  $region17: #{discriminator_forward.7} parent=0 // pred_fallthru
    _
  // Predicated region
  $region18: #{discriminator_forward.7} parent=0 // pred_check
    _
  $region19: #{discriminator_forward.7} parent=0 // pred_check_branch
    %489 = sbr.rel (0) target = $region21
  $region20: #{discriminator_forward.7} parent=0 // pred_region
    _
  $region21: #{discriminator_forward.7} parent=0 // pred_fallthru
    _
  // Predicated region
  $region22: #{discriminator_forward.7} parent=0 // pred_check
    _
  $region23: #{discriminator_forward.7} parent=0 // pred_check_branch
    %491 = sbr.rel (0) target = $region25
  $region24: #{discriminator_forward.7} parent=0 // pred_region
    _
  $region25: #{discriminator_forward.7} parent=0 // pred_fallthru
    _
  // Predicated region
  $region26: #{discriminator_forward.7} parent=0 // pred_check
    _
  $region27: #{discriminator_forward.7} parent=0 // pred_check_branch
    %493 = sbr.rel (0) target = $region29
  $region28: #{discriminator_forward.7} parent=0 // pred_region
    _
  $region29: #{discriminator_forward.7} parent=0 // pred_fallthru
    _
  // Predicated region
  $region30: #{discriminator_forward.7} parent=0 // pred_check
    _
  $region31: #{discriminator_forward.7} parent=0 // pred_check_branch
    %495 = sbr.rel (0) target = $region33
  $region32: #{discriminator_forward.7} parent=0 // pred_region
    _
  $region33: #{discriminator_forward.7} parent=0 // pred_fallthru
    _
  // Predicated region
  $region34: #{discriminator_forward.7} parent=0 // pred_check
    _
  $region35: #{discriminator_forward.7} parent=0 // pred_check_branch
    %497 = sbr.rel (0) target = $region37
  $region36: #{discriminator_forward.7} parent=0 // pred_region
    _
  $region37: #{discriminator_forward.7} parent=0 // pred_fallthru
    _

// kernel: discriminator_forward.8
$region0: #{discriminator_forward.8}
  #allocation0 [shape = 'u32[]', space=smem, size = 0x4, offset = 0x4, fixed_abs, tag = 'smem constant byte address 0x4 - core index']
  #allocation1 [shape = 'u32[144,128]{1,0:T(1,128)}', space=vmem, size = 0x12000, scoped, tag = 'internal scratch']
  %s0 = inlined_call_operand.vmem [shape: bf16[32,512], index: 0, kind: input, shape index: {}]
  %s1 = inlined_call_operand.vmem [shape: bf16[512,128], index: 1, kind: input, shape index: {}]
  %s2 = inlined_call_operand.vmem [shape: bf16[32,128], index: 2, kind: output, shape index: {0}]
  %s3 = inlined_call_operand.vmem [shape: f32[1,128], index: 3, kind: output, shape index: {1}]
  %s4 = inlined_call_operand.vmem [shape: f32[1,128], index: 4, kind: output, shape index: {2}]
  %5 = xla_tuple %s2, %s3, %s4
  %s6 = sld [smem:[#allocation0]]
  $region38: #{discriminator_forward.8} parent=0
    _
  %s8 = ssub.s32 1, %s6
  %s9 = scalar_select 0, %s8, %s6
  // Predicated region
  $region2: #{discriminator_forward.8} parent=0 // pred_check
    _
  $region3: #{discriminator_forward.8} parent=0 // pred_check_branch
    %11 = sbr.rel (0) target = $region5
  $region4: #{discriminator_forward.8} parent=0 // pred_region
    _
  $region5: #{discriminator_forward.8} parent=0 // pred_fallthru
    _
  // Predicated region
  $region6: #{discriminator_forward.8} parent=0 // pred_check
    _
  $region7: #{discriminator_forward.8} parent=0 // pred_check_branch
    %13 = sbr.rel (0) target = $region9
  $region8: #{discriminator_forward.8} parent=0 // pred_region
    _
  $region9: #{discriminator_forward.8} parent=0 // pred_fallthru
    _
  %v15 = vld [vmem:[%s0] sm:$0xff]
  %v16 = vld [vmem:[%s0 + $0x8] sm:$0xff]
  %v17 = vld [vmem:[%s0 + $0x10] sm:$0xff]
  %v18 = vld [vmem:[%s0 + $0x18] sm:$0xff]
  %v19 = vld [vmem:[%s0 + $0x20] sm:$0xff]
  %v20 = vld [vmem:[%s0 + $0x28] sm:$0xff]
  %v21 = vld [vmem:[%s0 + $0x30] sm:$0xff]
  %v22 = vld [vmem:[%s0 + $0x38] sm:$0xff]
  %v23 = vld [vmem:[%s1] sm:$0xf]
  %v24 = vld [vmem:[%s1 + $0x4] sm:$0xf]
  %v25 = vld [vmem:[%s1 + $0x8] sm:$0xf]
  %v26 = vld [vmem:[%s1 + $0xc] sm:$0xf]
  %v27 = vld [vmem:[%s1 + $0x10] sm:$0xf]
  %v28 = vld [vmem:[%s1 + $0x14] sm:$0xf]
  %v29 = vld [vmem:[%s1 + $0x18] sm:$0xf]
  %v30 = vld [vmem:[%s1 + $0x1c] sm:$0xf]
  %v31 = vld [vmem:[%s1 + $0x20] sm:$0xf]
  %v32 = vld [vmem:[%s1 + $0x24] sm:$0xf]
  %v33 = vld [vmem:[%s1 + $0x28] sm:$0xf]
  %v34 = vld [vmem:[%s1 + $0x2c] sm:$0xf]
  %v35 = vld [vmem:[%s1 + $0x30] sm:$0xf]
  %v36 = vld [vmem:[%s1 + $0x34] sm:$0xf]
  %v37 = vld [vmem:[%s1 + $0x38] sm:$0xf]
  %v38 = vld [vmem:[%s1 + $0x3c] sm:$0xf]
  %v39 = vld [vmem:[%s1 + $0x40] sm:$0xf]
  %v40 = vld [vmem:[%s1 + $0x44] sm:$0xf]
  %v41 = vld [vmem:[%s1 + $0x48] sm:$0xf]
  %v42 = vld [vmem:[%s1 + $0x4c] sm:$0xf]
  %v43 = vld [vmem:[%s1 + $0x50] sm:$0xf]
  %v44 = vld [vmem:[%s1 + $0x54] sm:$0xf]
  %v45 = vld [vmem:[%s1 + $0x58] sm:$0xf]
  %v46 = vld [vmem:[%s1 + $0x5c] sm:$0xf]
  %v47 = vld [vmem:[%s1 + $0x60] sm:$0xf]
  %v48 = vld [vmem:[%s1 + $0x64] sm:$0xf]
  %v49 = vld [vmem:[%s1 + $0x68] sm:$0xf]
  %v50 = vld [vmem:[%s1 + $0x6c] sm:$0xf]
  %v51 = vld [vmem:[%s1 + $0x70] sm:$0xf]
  %v52 = vld [vmem:[%s1 + $0x74] sm:$0xf]
  %v53 = vld [vmem:[%s1 + $0x78] sm:$0xf]
  %v54 = vld [vmem:[%s1 + $0x7c] sm:$0xf]
  %v55 = vld [vmem:[%s1 + $0x80] sm:$0xf]
  %v56 = vld [vmem:[%s1 + $0x84] sm:$0xf]
  %v57 = vld [vmem:[%s1 + $0x88] sm:$0xf]
  %v58 = vld [vmem:[%s1 + $0x8c] sm:$0xf]
  %v59 = vld [vmem:[%s1 + $0x90] sm:$0xf]
  %v60 = vld [vmem:[%s1 + $0x94] sm:$0xf]
  %v61 = vld [vmem:[%s1 + $0x98] sm:$0xf]
  %v62 = vld [vmem:[%s1 + $0x9c] sm:$0xf]
  %v63 = vld [vmem:[%s1 + $0xa0] sm:$0xf]
  %v64 = vld [vmem:[%s1 + $0xa4] sm:$0xf]
  %v65 = vld [vmem:[%s1 + $0xa8] sm:$0xf]
  %v66 = vld [vmem:[%s1 + $0xac] sm:$0xf]
  %v67 = vld [vmem:[%s1 + $0xb0] sm:$0xf]
  %v68 = vld [vmem:[%s1 + $0xb4] sm:$0xf]
  %v69 = vld [vmem:[%s1 + $0xb8] sm:$0xf]
  %v70 = vld [vmem:[%s1 + $0xbc] sm:$0xf]
  %v71 = vld [vmem:[%s1 + $0xc0] sm:$0xf]
  %v72 = vld [vmem:[%s1 + $0xc4] sm:$0xf]
  %v73 = vld [vmem:[%s1 + $0xc8] sm:$0xf]
  %v74 = vld [vmem:[%s1 + $0xcc] sm:$0xf]
  %v75 = vld [vmem:[%s1 + $0xd0] sm:$0xf]
  %v76 = vld [vmem:[%s1 + $0xd4] sm:$0xf]
  %v77 = vld [vmem:[%s1 + $0xd8] sm:$0xf]
  %v78 = vld [vmem:[%s1 + $0xdc] sm:$0xf]
  %v79 = vld [vmem:[%s1 + $0xe0] sm:$0xf]
  %v80 = vld [vmem:[%s1 + $0xe4] sm:$0xf]
  %v81 = vld [vmem:[%s1 + $0xe8] sm:$0xf]
  %v82 = vld [vmem:[%s1 + $0xec] sm:$0xf]
  %v83 = vld [vmem:[%s1 + $0xf0] sm:$0xf]
  %v84 = vld [vmem:[%s1 + $0xf4] sm:$0xf]
  %v85 = vld [vmem:[%s1 + $0xf8] sm:$0xf]
  %v86 = vld [vmem:[%s1 + $0xfc] sm:$0xf]
  %v95 = vunpack.c.l.b16 %v15
  %v96 = vunpack.c.h.b16 %v15
  %v97 = vunpack.c.l.b16 %v16
  %v98 = vunpack.c.h.b16 %v16
  %v99 = vunpack.c.l.b16 %v17
  %v100 = vunpack.c.h.b16 %v17
  %v101 = vunpack.c.l.b16 %v18
  %v102 = vunpack.c.h.b16 %v18
  %v103 = vunpack.c.l.b16 %v19
  %v104 = vunpack.c.h.b16 %v19
  %v105 = vunpack.c.l.b16 %v20
  %v106 = vunpack.c.h.b16 %v20
  %v107 = vunpack.c.l.b16 %v21
  %v108 = vunpack.c.h.b16 %v21
  %v109 = vunpack.c.l.b16 %v22
  %v110 = vunpack.c.h.b16 %v22
  %v111 = vpack.c.b16 %v99, %v95
  %v112 = vpack.c.b16 %v100, %v96
  %v113 = vpack.c.b16 %v101, %v97
  %v114 = vpack.c.b16 %v102, %v98
  %v115 = vpack.c.b16 %v107, %v103
  %v116 = vpack.c.b16 %v108, %v104
  %v117 = vpack.c.b16 %v109, %v105
  %v118 = vpack.c.b16 %v110, %v106
  %v191 = vunpack.c.l.b16 %v23
  %v192 = vunpack.c.l.b16 %v24
  %v193 = vunpack.c.l.b16 %v25
  %v194 = vunpack.c.l.b16 %v26
  %v195 = vunpack.c.l.b16 %v27
  %v196 = vunpack.c.l.b16 %v28
  %v197 = vunpack.c.l.b16 %v29
  %v198 = vunpack.c.l.b16 %v30
  %v199 = vunpack.c.l.b16 %v31
  %v200 = vunpack.c.l.b16 %v32
  %v201 = vunpack.c.l.b16 %v33
  %v202 = vunpack.c.l.b16 %v34
  %v203 = vunpack.c.l.b16 %v35
  %v204 = vunpack.c.l.b16 %v36
  %v205 = vunpack.c.l.b16 %v37
  %v206 = vunpack.c.l.b16 %v38
  %v207 = vunpack.c.l.b16 %v39
  %v208 = vunpack.c.l.b16 %v40
  %v209 = vunpack.c.l.b16 %v41
  %v210 = vunpack.c.l.b16 %v42
  %v211 = vunpack.c.l.b16 %v43
  %v212 = vunpack.c.l.b16 %v44
  %v213 = vunpack.c.l.b16 %v45
  %v214 = vunpack.c.l.b16 %v46
  %v215 = vunpack.c.l.b16 %v47
  %v216 = vunpack.c.l.b16 %v48
  %v217 = vunpack.c.l.b16 %v49
  %v218 = vunpack.c.l.b16 %v50
  %v219 = vunpack.c.l.b16 %v51
  %v220 = vunpack.c.l.b16 %v52
  %v221 = vunpack.c.l.b16 %v53
  %v222 = vunpack.c.l.b16 %v54
  %v223 = vunpack.c.l.b16 %v55
  %v224 = vunpack.c.l.b16 %v56
  %v225 = vunpack.c.l.b16 %v57
  %v226 = vunpack.c.l.b16 %v58
  %v227 = vunpack.c.l.b16 %v59
  %v228 = vunpack.c.l.b16 %v60
  %v229 = vunpack.c.l.b16 %v61
  %v230 = vunpack.c.l.b16 %v62
  %v231 = vunpack.c.l.b16 %v63
  %v232 = vunpack.c.l.b16 %v64
  %v233 = vunpack.c.l.b16 %v65
  %v234 = vunpack.c.l.b16 %v66
  %v235 = vunpack.c.l.b16 %v67
  %v236 = vunpack.c.l.b16 %v68
  %v237 = vunpack.c.l.b16 %v69
  %v238 = vunpack.c.l.b16 %v70
  %v239 = vunpack.c.l.b16 %v71
  %v240 = vunpack.c.l.b16 %v72
  %v241 = vunpack.c.l.b16 %v73
  %v242 = vunpack.c.l.b16 %v74
  %v243 = vunpack.c.l.b16 %v75
  %v244 = vunpack.c.l.b16 %v76
  %v245 = vunpack.c.l.b16 %v77
  %v246 = vunpack.c.l.b16 %v78
  %v247 = vunpack.c.l.b16 %v79
  %v248 = vunpack.c.l.b16 %v80
  %v249 = vunpack.c.l.b16 %v81
  %v250 = vunpack.c.l.b16 %v82
  %v251 = vunpack.c.l.b16 %v83
  %v252 = vunpack.c.l.b16 %v84
  %v253 = vunpack.c.l.b16 %v85
  %v254 = vunpack.c.l.b16 %v86
  %v255 = vpack.c.b16 %v192, %v191
  %v256 = vpack.c.b16 %v194, %v193
  %v257 = vpack.c.b16 %v196, %v195
  %v258 = vpack.c.b16 %v198, %v197
  %v259 = vpack.c.b16 %v200, %v199
  %v260 = vpack.c.b16 %v202, %v201
  %v261 = vpack.c.b16 %v204, %v203
  %v262 = vpack.c.b16 %v206, %v205
  %v263 = vpack.c.b16 %v208, %v207
  %v264 = vpack.c.b16 %v210, %v209
  %v265 = vpack.c.b16 %v212, %v211
  %v266 = vpack.c.b16 %v214, %v213
  %v267 = vpack.c.b16 %v216, %v215
  %v268 = vpack.c.b16 %v218, %v217
  %v269 = vpack.c.b16 %v220, %v219
  %v270 = vpack.c.b16 %v222, %v221
  %v271 = vpack.c.b16 %v224, %v223
  %v272 = vpack.c.b16 %v226, %v225
  %v273 = vpack.c.b16 %v228, %v227
  %v274 = vpack.c.b16 %v230, %v229
  %v275 = vpack.c.b16 %v232, %v231
  %v276 = vpack.c.b16 %v234, %v233
  %v277 = vpack.c.b16 %v236, %v235
  %v278 = vpack.c.b16 %v238, %v237
  %v279 = vpack.c.b16 %v240, %v239
  %v280 = vpack.c.b16 %v242, %v241
  %v281 = vpack.c.b16 %v244, %v243
  %v282 = vpack.c.b16 %v246, %v245
  %v283 = vpack.c.b16 %v248, %v247
  %v284 = vpack.c.b16 %v250, %v249
  %v285 = vpack.c.b16 %v252, %v251
  %v286 = vpack.c.b16 %v254, %v253
  %319 = vmatprep.subr.bf16.mxu0 0
  %320 = vmatpush1.bf16.msra.mxu0 %v255
  %321 = vmatprep.subr.bf16.mxu0 0
  %322 = vmatpush1.bf16.msra.mxu0 %v256
  %323 = vmatprep.subr.bf16.mxu0 0
  %324 = vmatpush1.bf16.msra.mxu0 %v257
  %325 = vmatprep.subr.bf16.mxu0 0
  %326 = vmatpush1.bf16.msra.mxu0 %v258
  %327 = vmatprep.subr.bf16.mxu0 0
  %328 = vmatpush1.bf16.msra.mxu0 %v259
  %329 = vmatprep.subr.bf16.mxu0 0
  %330 = vmatpush1.bf16.msra.mxu0 %v260
  %331 = vmatprep.subr.bf16.mxu0 0
  %332 = vmatpush1.bf16.msra.mxu0 %v261
  %333 = vmatprep.subr.bf16.mxu0 0
  %334 = vmatpush1.bf16.msra.mxu0 %v262
  %335 = vmatprep.subr.bf16.mxu0 0
  %336 = vmatpush1.bf16.msra.mxu0 %v263
  %337 = vmatprep.subr.bf16.mxu0 0
  %338 = vmatpush1.bf16.msra.mxu0 %v264
  %339 = vmatprep.subr.bf16.mxu0 0
  %340 = vmatpush1.bf16.msra.mxu0 %v265
  %341 = vmatprep.subr.bf16.mxu0 0
  %342 = vmatpush1.bf16.msra.mxu0 %v266
  %343 = vmatprep.subr.bf16.mxu0 0
  %344 = vmatpush1.bf16.msra.mxu0 %v267
  %345 = vmatprep.subr.bf16.mxu0 0
  %346 = vmatpush1.bf16.msra.mxu0 %v268
  %347 = vmatprep.subr.bf16.mxu0 0
  %348 = vmatpush1.bf16.msra.mxu0 %v269
  %349 = vmatprep.subr.bf16.mxu0 0
  %350 = vmatpush1.bf16.msra.mxu0 %v270
  %351 = vmatprep.mubr.bf16.mxu0 %v112
  %352 = vmatmul.mubr.bf16.gmra.mrb[0].mxu0 %v111
  %v353 = vpop.f32.mrb[0].mxu0
  %v354 = vadd.f32 0.0, %v353
  %v355 = vpop.f32.mrb[0].mxu0
  %v356 = vpop.f32.mrb[0].mxu0
  %v357 = vadd.f32 0.0, %v356
  %v358 = vpop.f32.mrb[0].mxu0
  %359 = vmatprep.mubr.bf16.mxu0 %v116
  %360 = vmatmul.mubr.bf16.gmra.mrb[0].mxu0 %v115
  %v361 = vpop.f32.mrb[0].mxu0
  %v362 = vadd.f32 0.0, %v361
  %v363 = vpop.f32.mrb[0].mxu0
  %v364 = vpop.f32.mrb[0].mxu0
  %v365 = vadd.f32 0.0, %v364
  %v366 = vpop.f32.mrb[0].mxu0
  %367 = vdwg.mxu0
  %368 = vmatprep.subr.bf16.mxu0 0
  %369 = vmatpush1.bf16.msra.mxu0 %v271
  %370 = vmatprep.subr.bf16.mxu0 0
  %371 = vmatpush1.bf16.msra.mxu0 %v272
  %372 = vmatprep.subr.bf16.mxu0 0
  %373 = vmatpush1.bf16.msra.mxu0 %v273
  %374 = vmatprep.subr.bf16.mxu0 0
  %375 = vmatpush1.bf16.msra.mxu0 %v274
  %376 = vmatprep.subr.bf16.mxu0 0
  %377 = vmatpush1.bf16.msra.mxu0 %v275
  %378 = vmatprep.subr.bf16.mxu0 0
  %379 = vmatpush1.bf16.msra.mxu0 %v276
  %380 = vmatprep.subr.bf16.mxu0 0
  %381 = vmatpush1.bf16.msra.mxu0 %v277
  %382 = vmatprep.subr.bf16.mxu0 0
  %383 = vmatpush1.bf16.msra.mxu0 %v278
  %384 = vmatprep.subr.bf16.mxu0 0
  %385 = vmatpush1.bf16.msra.mxu0 %v279
  %386 = vmatprep.subr.bf16.mxu0 0
  %387 = vmatpush1.bf16.msra.mxu0 %v280
  %388 = vmatprep.subr.bf16.mxu0 0
  %389 = vmatpush1.bf16.msra.mxu0 %v281
  %390 = vmatprep.subr.bf16.mxu0 0
  %391 = vmatpush1.bf16.msra.mxu0 %v282
  %392 = vmatprep.subr.bf16.mxu0 0
  %393 = vmatpush1.bf16.msra.mxu0 %v283
  %394 = vmatprep.subr.bf16.mxu0 0
  %395 = vmatpush1.bf16.msra.mxu0 %v284
  %396 = vmatprep.subr.bf16.mxu0 0
  %397 = vmatpush1.bf16.msra.mxu0 %v285
  %398 = vmatprep.subr.bf16.mxu0 0
  %399 = vmatpush1.bf16.msra.mxu0 %v286
  %400 = vmatprep.mubr.bf16.mxu0 %v114
  %401 = vmatmul.mubr.bf16.gmra.mrb[0].mxu0 %v113
  %v402 = vpop.f32.mrb[0].mxu0
  %v403 = vadd.f32 %v354, %v402
  %v404 = vpop.f32.mrb[0].mxu0
  %v405 = vpop.f32.mrb[0].mxu0
  %v406 = vadd.f32 %v357, %v405
  %v407 = vpop.f32.mrb[0].mxu0
  %408 = vmatprep.mubr.bf16.mxu0 %v118
  %409 = vmatmul.mubr.bf16.gmra.mrb[0].mxu0 %v117
  %v410 = vpop.f32.mrb[0].mxu0
  %v411 = vadd.f32 %v362, %v410
  %v412 = vpop.f32.mrb[0].mxu0
  %v413 = vpop.f32.mrb[0].mxu0
  %v414 = vadd.f32 %v365, %v413
  %v415 = vpop.f32.mrb[0].mxu0
  %416 = vdwg.mxu0
  %v417 = vpack.c.bf16 %v406, %v403
  %v418 = vpack.c.bf16 %v414, %v411
  %v421 = vunpack.c.l.b16 %v417
  %v422 = vunpack.c.h.b16 %v417
  %v423 = vunpack.c.l.b16 %v418
  %v424 = vunpack.c.h.b16 %v418
  %v425 = vpack.c.b16 %v421, %v421
  %v426 = vpack.c.b16 %v422, %v422
  %v427 = vpack.c.b16 %v423, %v423
  %v428 = vpack.c.b16 %v424, %v424
  %433 = vst [vmem:[%s2] sm:$0xf] %v425
  %434 = vst [vmem:[%s2 + $0x4] sm:$0xf] %v426
  %435 = vst [vmem:[%s2 + $0x8] sm:$0xf] %v427
  %436 = vst [vmem:[%s2 + $0xc] sm:$0xf] %v428
  %p437 = scmp.eq.s32.totalorder 0, 0
  // Predicated region
  $region10: #{discriminator_forward.8} parent=0 // pred_check
    %p438 = pneg %p437
  $region11: #{discriminator_forward.8} parent=0 // pred_check_branch
    %440 = sbr.rel (%p438) target = $region13
  $region12: #{discriminator_forward.8} parent=0 // pred_region
    %441 = vst [vmem:[%s3] sm:$0x1] 0.0
    %442 = vst [vmem:[%s4] sm:$0x1] 0.0
  $region13: #{discriminator_forward.8} parent=0 // pred_fallthru
    _
  %v443 = vld [vmem:[%s3] sm:$0x1]
  %v444 = vadd.f32 %v403, %v406
  %v445 = vadd.f32 %v444, %v411
  %v446 = vadd.f32 %v445, %v414
  %v447 = vrot.slane %v446, 4
  %v448 = vadd.f32 %v446, %v447
  %v449 = vrot.slane %v448, 2
  %v450 = vadd.f32 %v448, %v449
  %v451 = vrot.slane %v450, 1
  %v452 = vadd.f32 %v450, %v451
  %v453 = vadd.f32 %v443, %v452
  %454 = vst [vmem:[%s3] sm:$0x1] %v453
  %v455 = vld [vmem:[%s4] sm:$0x1]
  %v456 = vmul.f32 %v403, %v403
  %v457 = vmul.f32 %v406, %v406
  %v458 = vmul.f32 %v411, %v411
  %v459 = vmul.f32 %v414, %v414
  %v460 = vadd.f32 %v456, %v457
  %v461 = vadd.f32 %v460, %v458
  %v462 = vadd.f32 %v461, %v459
  %v463 = vrot.slane %v462, 4
  %v464 = vadd.f32 %v462, %v463
  %v465 = vrot.slane %v464, 2
  %v466 = vadd.f32 %v464, %v465
  %v467 = vrot.slane %v466, 1
  %v468 = vadd.f32 %v466, %v467
  %v469 = vadd.f32 %v455, %v468
  %470 = vst [vmem:[%s4] sm:$0x1] %v469
  // Predicated region
  $region14: #{discriminator_forward.8} parent=0 // pred_check
    _
  $region15: #{discriminator_forward.8} parent=0 // pred_check_branch
    %472 = sbr.rel (0) target = $region17
  $region16: #{discriminator_forward.8} parent=0 // pred_region
    _
  $region17: #{discriminator_forward.8} parent=0 // pred_fallthru
    _
  // Predicated region
  $region18: #{discriminator_forward.8} parent=0 // pred_check
    _
  $region19: #{discriminator_forward.8} parent=0 // pred_check_branch
    %474 = sbr.rel (0) target = $region21
  $region20: #{discriminator_forward.8} parent=0 // pred_region
    _
  $region21: #{discriminator_forward.8} parent=0 // pred_fallthru
    _
  // Predicated region
  $region22: #{discriminator_forward.8} parent=0 // pred_check
    _
  $region23: #{discriminator_forward.8} parent=0 // pred_check_branch
    %476 = sbr.rel (0) target = $region25
  $region24: #{discriminator_forward.8} parent=0 // pred_region
    _
  $region25: #{discriminator_forward.8} parent=0 // pred_fallthru
    _
  // Predicated region
  $region26: #{discriminator_forward.8} parent=0 // pred_check
    _
  $region27: #{discriminator_forward.8} parent=0 // pred_check_branch
    %478 = sbr.rel (0) target = $region29
  $region28: #{discriminator_forward.8} parent=0 // pred_region
    _
  $region29: #{discriminator_forward.8} parent=0 // pred_fallthru
    _
  // Predicated region
  $region30: #{discriminator_forward.8} parent=0 // pred_check
    _
  $region31: #{discriminator_forward.8} parent=0 // pred_check_branch
    %480 = sbr.rel (0) target = $region33
  $region32: #{discriminator_forward.8} parent=0 // pred_region
    _
  $region33: #{discriminator_forward.8} parent=0 // pred_fallthru
    _
  // Predicated region
  $region34: #{discriminator_forward.8} parent=0 // pred_check
    _
  $region35: #{discriminator_forward.8} parent=0 // pred_check_branch
    %482 = sbr.rel (0) target = $region37
  $region36: #{discriminator_forward.8} parent=0 // pred_region
    _
  $region37: #{discriminator_forward.8} parent=0 // pred_fallthru
    _

// kernel: discriminator_forward.9
$region0: #{discriminator_forward.9}
  #allocation0 [shape = 'u32[]', space=smem, size = 0x4, offset = 0x4, fixed_abs, tag = 'smem constant byte address 0x4 - core index']
  #allocation1 [shape = 'u32[144,128]{1,0:T(1,128)}', space=vmem, size = 0x12000, scoped, tag = 'internal scratch']
  %s0 = inlined_call_operand.vmem [shape: bf16[2,16,128], index: 0, kind: input, shape index: {}]
  %s1 = inlined_call_operand.vmem [shape: f32[1,128], index: 1, kind: input, shape index: {}]
  %s2 = inlined_call_operand.vmem [shape: f32[1,128], index: 2, kind: input, shape index: {}]
  %s3 = inlined_call_operand.vmem [shape: f32[16,128], index: 3, kind: input, shape index: {}]
  %s4 = inlined_call_operand.vmem [shape: f32[2,1,1], index: 4, kind: output, shape index: {}]
  %s5 = sld [smem:[#allocation0]]
  $region26: #{discriminator_forward.9} parent=0
    _
  %s7 = ssub.s32 1, %s5
  %s8 = scalar_select 0, %s7, %s5
  // Predicated region
  $region2: #{discriminator_forward.9} parent=0 // pred_check
    _
  $region3: #{discriminator_forward.9} parent=0 // pred_check_branch
    %10 = sbr.rel (0) target = $region5
  $region4: #{discriminator_forward.9} parent=0 // pred_region
    _
  $region5: #{discriminator_forward.9} parent=0 // pred_fallthru
    _
  // Predicated region
  $region6: #{discriminator_forward.9} parent=0 // pred_check
    _
  $region7: #{discriminator_forward.9} parent=0 // pred_check_branch
    %12 = sbr.rel (0) target = $region9
  $region8: #{discriminator_forward.9} parent=0 // pred_region
    _
  $region9: #{discriminator_forward.9} parent=0 // pred_fallthru
    _
  // Predicated region
  $region10: #{discriminator_forward.9} parent=0 // pred_check
    _
  $region11: #{discriminator_forward.9} parent=0 // pred_check_branch
    %14 = sbr.rel (0) target = $region13
  $region12: #{discriminator_forward.9} parent=0 // pred_region
    _
  $region13: #{discriminator_forward.9} parent=0 // pred_fallthru
    _
  // Predicated region
  $region14: #{discriminator_forward.9} parent=0 // pred_check
    _
  $region15: #{discriminator_forward.9} parent=0 // pred_check_branch
    %16 = sbr.rel (0) target = $region17
  $region16: #{discriminator_forward.9} parent=0 // pred_region
    _
  $region17: #{discriminator_forward.9} parent=0 // pred_fallthru
    _
  %v17 = vld [vmem:[%s0] sm:$0xf]
  %v18 = vld [vmem:[%s0 + $0x4] sm:$0xf]
  %v19 = vld [vmem:[%s0 + $0x8] sm:$0xf]
  %v20 = vld [vmem:[%s0 + $0xc] sm:$0xf]
  %v21 = vunpack.c.l.bf16 %v17
  %v22 = vunpack.c.l.bf16 %v18
  %v23 = vunpack.c.l.bf16 %v19
  %v24 = vunpack.c.l.bf16 %v20
  %v25 = vld [vmem:[%s1] sm:$0x1]
  %v27 = vlaneseq
  %v28 = vshrl.u32 %v27, 7
  %v29 = vsub.s32 0, %v28
  %v30 = vrot.slane %v25, %v29
  %v32 = vmul.f32 %v21, %v30
  %v33 = vmul.f32 %v22, %v30
  %v34 = vmul.f32 %v23, %v30
  %v35 = vmul.f32 %v24, %v30
  %v36 = vld [vmem:[%s2] sm:$0x1]
  %v38 = vlaneseq
  %v39 = vshrl.u32 %v38, 7
  %v40 = vsub.s32 0, %v39
  %v41 = vrot.slane %v36, %v40
  %v43 = vadd.f32 %v32, %v41
  %v44 = vadd.f32 %v33, %v41
  %v45 = vadd.f32 %v34, %v41
  %v46 = vadd.f32 %v35, %v41
  %vm47 = vcmp.gt.f32.partialorder %v43, 0.0
  %vm48 = vcmp.gt.f32.partialorder %v44, 0.0
  %vm49 = vcmp.gt.f32.partialorder %v45, 0.0
  %vm50 = vcmp.gt.f32.partialorder %v46, 0.0
  %v51 = vmul.f32 %v43, 0.2
  %v52 = vmul.f32 %v44, 0.2
  %v53 = vmul.f32 %v45, 0.2
  %v54 = vmul.f32 %v46, 0.2
  %v55 = vsel %vm47, %v43, %v51
  %v56 = vsel %vm48, %v44, %v52
  %v57 = vsel %vm49, %v45, %v53
  %v58 = vsel %vm50, %v46, %v54
  %v59 = vld [vmem:[%s3] sm:$0xff]
  %v60 = vld [vmem:[%s3 + $0x8] sm:$0xff]
  %v61 = vmul.f32 %v55, %v59
  %v62 = vmul.f32 %v56, %v60
  %v63 = vmul.f32 %v57, %v59
  %v64 = vmul.f32 %v58, %v60
  %65 = vadd.xlane.f32.xlu0 %v61
  %v66 = vpop.xlane.xlu0 %65
  %67 = vadd.xlane.f32.xlu0 %v62
  %v68 = vpop.xlane.xlu0 %67
  %69 = vadd.xlane.f32.xlu0 %v63
  %v70 = vpop.xlane.xlu0 %69
  %71 = vadd.xlane.f32.xlu0 %v64
  %v72 = vpop.xlane.xlu0 %71
  %v73 = vadd.f32 %v66, %v68
  %v74 = vrot.slane %v73, 4
  %v75 = vadd.f32 %v73, %v74
  %v76 = vrot.slane %v75, 2
  %v77 = vadd.f32 %v75, %v76
  %v78 = vrot.slane %v77, 1
  %v79 = vadd.f32 %v77, %v78
  %v80 = vadd.f32 %v70, %v72
  %v81 = vrot.slane %v80, 4
  %v82 = vadd.f32 %v80, %v81
  %v83 = vrot.slane %v82, 2
  %v84 = vadd.f32 %v82, %v83
  %v85 = vrot.slane %v84, 1
  %v86 = vadd.f32 %v84, %v85
  %v87 = vxor.u32 %v79, 2147483648
  %v88 = vxor.u32 %v86, 2147483648
  %v89 = vmul.f32 %v87, 1.442695
  %v90 = vpow.pop %v89
  %v91 = vmul.f32 %v88, 1.442695
  %v92 = vpow.pop %v91
  %v93 = vadd.f32 %v90, 1.0
  %v94 = vadd.f32 %v92, 1.0
  %v95 = vrcp.pop %v93
  %v96 = vmul.f32 1.0, %v95
  %v97 = vrcp.pop %v94
  %v98 = vmul.f32 1.0, %v97
  %vm99 = vcmask 0
  %100 = vst.msk [vmem:[%s4] sm:$0x1] %vm99, %v96
  %101 = vst.msk [vmem:[%s4 + $0x1] sm:$0x1] %vm99, %v98
  // Predicated region
  $region18: #{discriminator_forward.9} parent=0 // pred_check
    _
  $region19: #{discriminator_forward.9} parent=0 // pred_check_branch
    %103 = sbr.rel (0) target = $region21
  $region20: #{discriminator_forward.9} parent=0 // pred_region
    _
  $region21: #{discriminator_forward.9} parent=0 // pred_fallthru
    _
  // Predicated region
  $region22: #{discriminator_forward.9} parent=0 // pred_check
    _
  $region23: #{discriminator_forward.9} parent=0 // pred_check_branch
    %105 = sbr.rel (0) target = $region25
  $region24: #{discriminator_forward.9} parent=0 // pred_region
    _
  $region25: #{discriminator_forward.9} parent=0 // pred_fallthru
    _

</llo_original>
